<compile_context>
chip_gen: v6e
topology: v6e:2x2x1
jax: 0.10.0
libtpu: 0.0.40
codegen_flags: <defaults>
</compile_context>

<pallas_src>
import functools

import jax
import jax.numpy as jnp
from jax.experimental import pallas as pl
from jax.experimental.pallas import tpu as pltpu


# ----------------------------------------------------------------------------
# Fused Pallas kernel: all LSTM layers (both directions) + FC epilogue
# ----------------------------------------------------------------------------
def _decoder_core_kernel(*refs, num_layers):
    """Refs layout:
      inputs : feat(T,B,D0), [w_comb_l(Din+H,8H), b_comb_l(1,8H)] * L,
               h0(2L,B,H), c0(2L,B,H), fc_w(2H,Npad), fc_b(1,Npad)
      outputs: out(T,B,Npad), hT(2L,B,H), cT(2L,B,H)
      scratch: act_a(T,B,2H), act_b(T,B,2H), h_scr(2B,H), c_scr(2B,H),
               xh_scr(2B, max_in+H)
    """
    n_in = 1 + 2 * num_layers + 4
    feat_ref = refs[0]
    w_refs = [refs[1 + 2 * l] for l in range(num_layers)]
    b_refs = [refs[2 + 2 * l] for l in range(num_layers)]
    h0_ref, c0_ref, fcw_ref, fcb_ref = refs[1 + 2 * num_layers:n_in]
    out_ref, hT_ref, cT_ref = refs[n_in:n_in + 3]
    act_a, act_b, h_scr, c_scr, xh_scr = refs[n_in + 3:]

    T, B, _ = feat_ref.shape
    H = h0_ref.shape[-1]

    # Hoisted masks (constant across layers / steps; ~1 vreg each).
    lane = jax.lax.broadcasted_iota(jnp.int32, (2 * B, 4 * H), 1)
    g_mask = (lane >= 2 * H) & (lane < 3 * H)        # tanh lanes (gate g)
    row = jax.lax.broadcasted_iota(jnp.int32, (2 * B, 4 * H), 0)
    fwd_row = row < B                                 # rows 0:B = forward dir

    for l in range(num_layers):
        # Ping-pong the inter-layer activation between the two VMEM scratches.
        in_ref = feat_ref if l == 0 else (act_a if l % 2 == 1 else act_b)
        out_act = act_a if l % 2 == 0 else act_b
        w_ref = w_refs[l]
        b_ref = b_refs[l]
        d_in = in_ref.shape[-1]

        # Initial states: rows 0:B = forward (index 2l), B:2B = backward (2l+1).
        h_scr[0:B] = h0_ref[2 * l]
        h_scr[B:2 * B] = h0_ref[2 * l + 1]
        c_scr[0:B] = c0_ref[2 * l]
        c_scr[B:2 * B] = c0_ref[2 * l + 1]

        # Fully-unrolled time loop (T is small & static) -> no per-step grid /
        # DMA overhead; everything stays VMEM/vreg resident.
        for s in range(T):
            # Stage [x | h] for BOTH directions, then one fused matmul.
            xh_scr[0:B, 0:d_in] = in_ref[s]              # fwd consumes x_s
            xh_scr[B:2 * B, 0:d_in] = in_ref[T - 1 - s]  # bwd consumes x_{T-1-s}
            xh_scr[:, d_in:d_in + H] = h_scr[...]
            xh = xh_scr[:, 0:d_in + H]                   # (2B, d_in + H)

            gates_all = (jnp.dot(xh, w_ref[...],
                                 preferred_element_type=jnp.float32)
                         + b_ref[...])                   # (2B, 8H)
            # fwd rows take the first 4H columns (W_fwd), bwd rows the last 4H.
            gates = jnp.where(fwd_row, gates_all[:, :4 * H], gates_all[:, 4 * H:])

            # One full-vreg tanh + one full-vreg sigmoid (PyTorch order i,f,g,o).
            acts = jnp.where(g_mask, jnp.tanh(gates), jax.nn.sigmoid(gates))
            i_g = acts[:, 0:H]
            f_g = acts[:, H:2 * H]
            g_g = acts[:, 2 * H:3 * H]
            o_g = acts[:, 3 * H:4 * H]

            c_new = f_g * c_scr[...] + i_g * g_g
            h_new = o_g * jnp.tanh(c_new)
            h_scr[...] = h_new
            c_scr[...] = c_new

            # Write both directions into the lane-halves of the shared buffer.
            out_act[s, :, 0:H] = h_new[0:B]
            out_act[T - 1 - s, :, H:2 * H] = h_new[B:2 * B]

        # Final states: written ONCE per layer (not every step).
        hT_ref[2 * l] = h_scr[0:B]
        hT_ref[2 * l + 1] = h_scr[B:2 * B]
        cT_ref[2 * l] = c_scr[0:B]
        cT_ref[2 * l + 1] = c_scr[B:2 * B]

    # Fused, lane-dense FC epilogue on the VMEM-resident last-layer activation.
    last = act_a if num_layers % 2 == 1 else act_b
    for t in range(T):
        out_ref[t] = (jnp.dot(last[t], fcw_ref[...],
                              preferred_element_type=jnp.float32)
                      + fcb_ref[...])


# ----------------------------------------------------------------------------
# Decoder forward (mirrors the PyTorch module)
# ----------------------------------------------------------------------------
def decoder_forward(params, x, hidden, cell, *, num_layers, hidden_size):
    """x: (B, T, input_size + 2); x[:,:,0]=loc id, x[:,:,1]=time id (float-coded).
    hidden/cell: (num_layers*2, B, hidden_size). Returns (out, hidden, cell)."""
    B, T, _ = x.shape
    H = hidden_size

    # Embedding lookup = pure gather -> plain JAX glue.
    loc_idx = x[:, :, 0].astype(jnp.int32)
    time_idx = x[:, :, 1].astype(jnp.int32)
    emb_loc = jnp.take(params["loc_emb"], loc_idx, axis=0)     # (B, T, loc_dim)
    emb_time = jnp.take(params["time_emb"], time_idx, axis=0)  # (B, T, time_dim)
    # torch.squeeze is a no-op at these shapes (B>1, T>1, emb_dim>1).
    feat = jnp.concatenate([emb_loc, emb_time, x[:, :, 2:]], axis=2)  # (B,T,D0)
    D0 = feat.shape[-1]
    feat_tm = jnp.transpose(feat, (1, 0, 2))                   # time-major (T,B,D0)

    out_dim = D0
    n_pad = ((out_dim + 127) // 128) * 128   # lane-dense FC output

    # Wrapper-side layout plumbing (constant-folded under jit):
    #   per layer, one combined weight (D_in+H, 8H) = [[Wih_f;Whh_f] | [Wih_b;Whh_b]]
    #   and one combined bias (1, 8H) = [b_f | b_b].
    inputs = [feat_tm]
    for l in range(num_layers):
        w_f = jnp.concatenate([params[f"wih_{l}_0"], params[f"whh_{l}_0"]], axis=0)
        w_b = jnp.concatenate([params[f"wih_{l}_1"], params[f"whh_{l}_1"]], axis=0)
        inputs.append(jnp.concatenate([w_f, w_b], axis=1))                  # (Din+H,8H)
        inputs.append(jnp.concatenate([params[f"b_{l}_0"], params[f"b_{l}_1"]],
                                      axis=1))                              # (1,8H)
    fc_w_pad = jnp.zeros((2 * H, n_pad), jnp.float32).at[:, :out_dim].set(params["fc_w"])
    fc_b_pad = jnp.zeros((1, n_pad), jnp.float32).at[:, :out_dim].set(params["fc_b"])
    inputs += [hidden, cell, fc_w_pad, fc_b_pad]

    kernel = functools.partial(_decoder_core_kernel, num_layers=num_layers)
    max_in = max(D0, 2 * H)

    out_pad, h_n, c_n = pl.pallas_call(
        kernel,
        out_shape=[
            jax.ShapeDtypeStruct((T, B, n_pad), jnp.float32),
            jax.ShapeDtypeStruct((2 * num_layers, B, H), jnp.float32),
            jax.ShapeDtypeStruct((2 * num_layers, B, H), jnp.float32),
        ],
        scratch_shapes=[
            pltpu.VMEM((T, B, 2 * H), jnp.float32),          # inter-layer act (ping)
            pltpu.VMEM((T, B, 2 * H), jnp.float32),          # inter-layer act (pong)
            pltpu.VMEM((2 * B, H), jnp.float32),             # h state (fwd|bwd rows)
            pltpu.VMEM((2 * B, H), jnp.float32),             # c state
            pltpu.VMEM((2 * B, max_in + H), jnp.float32),    # [x | h] staging buffer
        ],
    )(*inputs)

    out = jnp.transpose(out_pad[:, :, :out_dim], (1, 0, 2))   # (B, T, out_dim)
    return out, h_n, c_n


# ----------------------------------------------------------------------------
# Pure-JAX reference (same math, lax.scan, f32-exact matmuls) for correctness
# ----------------------------------------------------------------------------
def _ref_lstm_dir(seq, wih_t, whh_t, b, h0, c0, reverse):
    hp = jax.lax.Precision.HIGHEST
    xs = seq[::-1] if reverse else seq

    def step(carry, x_t):
        h, c = carry
        gates = (jnp.dot(x_t, wih_t, precision=hp)
                 + jnp.dot(h, whh_t, precision=hp) + b)
        i, f, g, o = jnp.split(gates, 4, axis=-1)
        c = jax.nn.sigmoid(f) * c + jax.nn.sigmoid(i) * jnp.tanh(g)
        h = jax.nn.sigmoid(o) * jnp.tanh(c)
        return (h, c), h

    (hT, cT), outs = jax.lax.scan(step, (h0, c0), xs)
    if reverse:
        outs = outs[::-1]
    return outs, hT, cT


def decoder_reference(params, x, hidden, cell, *, num_layers, hidden_size):
    hp = jax.lax.Precision.HIGHEST
    B, T, _ = x.shape
    loc_idx = x[:, :, 0].astype(jnp.int32)
    time_idx = x[:, :, 1].astype(jnp.int32)
    emb_loc = jnp.take(params["loc_emb"], loc_idx, axis=0)
    emb_time = jnp.take(params["time_emb"], time_idx, axis=0)
    feat = jnp.concatenate([emb_loc, emb_time, x[:, :, 2:]], axis=2)
    layer_in = jnp.transpose(feat, (1, 0, 2))

    h_finals, c_finals = [], []
    for l in range(num_layers):
        dir_outs = []
        for d in range(2):
            idx = 2 * l + d
            o_d, hT, cT = _ref_lstm_dir(
                layer_in, params[f"wih_{l}_{d}"], params[f"whh_{l}_{d}"],
                params[f"b_{l}_{d}"], hidden[idx], cell[idx], reverse=(d == 1))
            dir_outs.append(o_d)
            h_finals.append(hT)
            c_finals.append(cT)
        layer_in = jnp.concatenate(dir_outs, axis=-1)

    lstm_out = jnp.transpose(layer_in, (1, 0, 2))
    flat = lstm_out.reshape(B * T, 2 * hidden_size)
    out = jnp.dot(flat, params["fc_w"], precision=hp) + params["fc_b"]
    return out.reshape(B, T, -1), jnp.stack(h_finals), jnp.stack(c_finals)


# ----------------------------------------------------------------------------
# Deterministic parameter init (shapes follow nn.Embedding / nn.LSTM / nn.Linear)
# ----------------------------------------------------------------------------
def init_params(key, *, input_size, hidden_size, num_layers,
                loc_dim, loc_vocab, time_dim, time_vocab):
    params = {}
    scale = 1.0 / jnp.sqrt(jnp.float32(hidden_size))

    def nxt(k):
        return jax.random.split(k)

    key, k = nxt(key)
    params["loc_emb"] = jax.random.normal(k, (loc_vocab, loc_dim), jnp.float32)
    key, k = nxt(key)
    params["time_emb"] = jax.random.normal(k, (time_vocab, time_dim), jnp.float32)

    D0 = input_size + loc_dim + time_dim
    for l in range(num_layers):
        d_in = D0 if l == 0 else 2 * hidden_size
        for d in range(2):
            key, k = nxt(key)
            # stored transposed: (D_in, 4H), gate order [i, f, g, o]
            params[f"wih_{l}_{d}"] = jax.random.uniform(
                k, (d_in, 4 * hidden_size), jnp.float32, -1, 1) * scale
            key, k = nxt(key)
            params[f"whh_{l}_{d}"] = jax.random.uniform(
                k, (hidden_size, 4 * hidden_size), jnp.float32, -1, 1) * scale
            key, k = nxt(key)
            b_ih = jax.random.uniform(k, (4 * hidden_size,), jnp.float32, -1, 1) * scale
            key, k = nxt(key)
            b_hh = jax.random.uniform(k, (4 * hidden_size,), jnp.float32, -1, 1) * scale
            params[f"b_{l}_{d}"] = (b_ih + b_hh)[None, :]     # (1, 4H)

    out_dim = D0
    key, k = nxt(key)
    params["fc_w"] = jax.random.uniform(
        k, (2 * hidden_size, out_dim), jnp.float32, -1, 1) * scale  # transposed
    key, k = nxt(key)
    params["fc_b"] = (jax.random.uniform(k, (out_dim,), jnp.float32, -1, 1)
                      * scale)[None, :]                              # (1, out_dim)
    return params, key


# ----------------------------------------------------------------------------
if __name__ == "__main__":
    INPUT_SIZE = 4
    HIDDEN = 32
    NUM_LAYERS = 2
    LOC_DIM = 6
    LOC_VOCAB = 20
    TIME_DIM = 6
    TIME_VOCAB = 24
    B, T = 2, 8

    key = jax.random.PRNGKey(0)
    params, key = init_params(
        key, input_size=INPUT_SIZE, hidden_size=HIDDEN, num_layers=NUM_LAYERS,
        loc_dim=LOC_DIM, loc_vocab=LOC_VOCAB,
        time_dim=TIME_DIM, time_vocab=TIME_VOCAB)

    k1, k2, k3, k4, k5 = jax.random.split(key, 5)
    loc_ids = jax.random.randint(k1, (B, T), 0, LOC_VOCAB).astype(jnp.float32)
    time_ids = jax.random.randint(k2, (B, T), 0, TIME_VOCAB).astype(jnp.float32)
    cont = jax.random.normal(k3, (B, T, INPUT_SIZE), jnp.float32)
    x = jnp.concatenate([loc_ids[..., None], time_ids[..., None], cont], axis=-1)
    hidden0 = jax.random.normal(k4, (NUM_LAYERS * 2, B, HIDDEN), jnp.float32)
    cell0 = jax.random.normal(k5, (NUM_LAYERS * 2, B, HIDDEN), jnp.float32)

    decoder_jit = jax.jit(decoder_forward,
                          static_argnames=("num_layers", "hidden_size"))
    out, h_n, c_n = decoder_jit(params, x, hidden0, cell0,
                                num_layers=NUM_LAYERS, hidden_size=HIDDEN)
    jax.block_until_ready((out, h_n, c_n))

    ref_out, ref_h, ref_c = decoder_reference(
        params, x, hidden0, cell0, num_layers=NUM_LAYERS, hidden_size=HIDDEN)

    assert out.shape == (B, T, INPUT_SIZE + LOC_DIM + TIME_DIM)
    assert h_n.shape == (NUM_LAYERS * 2, B, HIDDEN)
    assert c_n.shape == (NUM_LAYERS * 2, B, HIDDEN)
    # Tolerance bounded by the MXU's f32 matmul pass behaviour (reference runs
    # with Precision.HIGHEST); tightened from the previous 5e-2.
    assert jnp.allclose(out, ref_out, atol=2e-2, rtol=2e-2)
    assert jnp.allclose(h_n, ref_h, atol=2e-2, rtol=2e-2)
    assert jnp.allclose(c_n, ref_c, atol=2e-2, rtol=2e-2)

    print("KERNEL_OK")
</pallas_src>

<mosaic_0001>
module attributes {stable_mosaic.version = 11 : i64} {
  func.func @_decoder_core_kernel(%arg0: memref<8x2x16xf32, #tpu.memory_space<vmem>>, %arg1: memref<48x256xf32, #tpu.memory_space<vmem>>, %arg2: memref<1x256xf32, #tpu.memory_space<vmem>>, %arg3: memref<96x256xf32, #tpu.memory_space<vmem>>, %arg4: memref<1x256xf32, #tpu.memory_space<vmem>>, %arg5: memref<4x2x32xf32, #tpu.memory_space<vmem>>, %arg6: memref<4x2x32xf32, #tpu.memory_space<vmem>>, %arg7: memref<64x128xf32, #tpu.memory_space<vmem>>, %arg8: memref<1x128xf32, #tpu.memory_space<vmem>>, %arg9: memref<8x2x128xf32, #tpu.memory_space<vmem>>, %arg10: memref<4x2x32xf32, #tpu.memory_space<vmem>>, %arg11: memref<4x2x32xf32, #tpu.memory_space<vmem>>, %arg12: memref<8x2x64xf32, #tpu.memory_space<vmem>>, %arg13: memref<8x2x64xf32, #tpu.memory_space<vmem>>, %arg14: memref<4x32xf32, #tpu.memory_space<vmem>>, %arg15: memref<4x32xf32, #tpu.memory_space<vmem>>, %arg16: memref<4x96xf32, #tpu.memory_space<vmem>>) attributes {dimension_semantics = [], scalar_prefetch = 0 : i64, scratch_operands = 5 : i64, tpu.core_type = #tpu.core_type<tc>} {
    %0 = tpu.iota {dimensions = array<i32: 1>} : vector<4x128xi32>
    %c64_i32 = arith.constant 64 : i32
    %1 = vector.broadcast %c64_i32 : i32 to vector<4x128xi32>
    %2 = arith.cmpi sge, %0, %1 : vector<4x128xi32>
    %c96_i32 = arith.constant 96 : i32
    %3 = vector.broadcast %c96_i32 : i32 to vector<4x128xi32>
    %4 = arith.cmpi slt, %0, %3 : vector<4x128xi32>
    %5 = arith.andi %2, %4 : vector<4x128xi1>
    %6 = tpu.iota {dimensions = array<i32: 0>} : vector<4x128xi32>
    %c2_i32 = arith.constant 2 : i32
    %7 = vector.broadcast %c2_i32 : i32 to vector<4x128xi32>
    %8 = arith.cmpi slt, %6, %7 : vector<4x128xi32>
    %c0 = arith.constant 0 : index
    %c0_0 = arith.constant 0 : index
    %c0_1 = arith.constant 0 : index
    %9 = vector.load %arg5[%c0, %c0_0, %c0_1] : memref<4x2x32xf32, #tpu.memory_space<vmem>>, vector<1x2x32xf32>
    %10 = vector.shape_cast %9 : vector<1x2x32xf32> to vector<2x32xf32>
    %c0_2 = arith.constant 0 : index
    %c0_3 = arith.constant 0 : index
    %11 = vector.load %arg14[%c0_2, %c0_3] : memref<4x32xf32, #tpu.memory_space<vmem>>, vector<2x32xf32>
    tpu.vector_store %arg14[%c0_2, %c0_3], %10 {strides = array<i32>} : memref<4x32xf32, #tpu.memory_space<vmem>>, vector<2x32xf32>,
    %c1 = arith.constant 1 : index
    %c0_4 = arith.constant 0 : index
    %c0_5 = arith.constant 0 : index
    %12 = vector.load %arg5[%c1, %c0_4, %c0_5] : memref<4x2x32xf32, #tpu.memory_space<vmem>>, vector<1x2x32xf32>
    %13 = vector.shape_cast %12 : vector<1x2x32xf32> to vector<2x32xf32>
    %c2 = arith.constant 2 : index
    %c0_6 = arith.constant 0 : index
    %14 = vector.load %arg14[%c2, %c0_6] : memref<4x32xf32, #tpu.memory_space<vmem>>, vector<2x32xf32>
    tpu.vector_store %arg14[%c2, %c0_6], %13 {strides = array<i32>} : memref<4x32xf32, #tpu.memory_space<vmem>>, vector<2x32xf32>,
    %c0_7 = arith.constant 0 : index
    %c0_8 = arith.constant 0 : index
    %c0_9 = arith.constant 0 : index
    %15 = vector.load %arg6[%c0_7, %c0_8, %c0_9] : memref<4x2x32xf32, #tpu.memory_space<vmem>>, vector<1x2x32xf32>
    %16 = vector.shape_cast %15 : vector<1x2x32xf32> to vector<2x32xf32>
    %c0_10 = arith.constant 0 : index
    %c0_11 = arith.constant 0 : index
    %17 = vector.load %arg15[%c0_10, %c0_11] : memref<4x32xf32, #tpu.memory_space<vmem>>, vector<2x32xf32>
    tpu.vector_store %arg15[%c0_10, %c0_11], %16 {strides = array<i32>} : memref<4x32xf32, #tpu.memory_space<vmem>>, vector<2x32xf32>,
    %c1_12 = arith.constant 1 : index
    %c0_13 = arith.constant 0 : index
    %c0_14 = arith.constant 0 : index
    %18 = vector.load %arg6[%c1_12, %c0_13, %c0_14] : memref<4x2x32xf32, #tpu.memory_space<vmem>>, vector<1x2x32xf32>
    %19 = vector.shape_cast %18 : vector<1x2x32xf32> to vector<2x32xf32>
    %c2_15 = arith.constant 2 : index
    %c0_16 = arith.constant 0 : index
    %20 = vector.load %arg15[%c2_15, %c0_16] : memref<4x32xf32, #tpu.memory_space<vmem>>, vector<2x32xf32>
    tpu.vector_store %arg15[%c2_15, %c0_16], %19 {strides = array<i32>} : memref<4x32xf32, #tpu.memory_space<vmem>>, vector<2x32xf32>,
    %c0_17 = arith.constant 0 : index
    %c0_18 = arith.constant 0 : index
    %c0_19 = arith.constant 0 : index
    %21 = vector.load %arg0[%c0_17, %c0_18, %c0_19] : memref<8x2x16xf32, #tpu.memory_space<vmem>>, vector<1x2x16xf32>
    %22 = vector.shape_cast %21 : vector<1x2x16xf32> to vector<2x16xf32>
    %c0_20 = arith.constant 0 : index
    %c0_21 = arith.constant 0 : index
    %23 = vector.load %arg16[%c0_20, %c0_21] : memref<4x96xf32, #tpu.memory_space<vmem>>, vector<2x16xf32>
    tpu.vector_store %arg16[%c0_20, %c0_21], %22 {strides = array<i32>} : memref<4x96xf32, #tpu.memory_space<vmem>>, vector<2x16xf32>,
    %c7 = arith.constant 7 : index
    %c0_22 = arith.constant 0 : index
    %c0_23 = arith.constant 0 : index
    %24 = vector.load %arg0[%c7, %c0_22, %c0_23] : memref<8x2x16xf32, #tpu.memory_space<vmem>>, vector<1x2x16xf32>
    %25 = vector.shape_cast %24 : vector<1x2x16xf32> to vector<2x16xf32>
    %c2_24 = arith.constant 2 : index
    %c0_25 = arith.constant 0 : index
    %26 = vector.load %arg16[%c2_24, %c0_25] : memref<4x96xf32, #tpu.memory_space<vmem>>, vector<2x16xf32>
    tpu.vector_store %arg16[%c2_24, %c0_25], %25 {strides = array<i32>} : memref<4x96xf32, #tpu.memory_space<vmem>>, vector<2x16xf32>,
    %c0_26 = arith.constant 0 : index
    %c0_27 = arith.constant 0 : index
    %27 = vector.load %arg14[%c0_26, %c0_27] : memref<4x32xf32, #tpu.memory_space<vmem>>, vector<4x32xf32>
    %c0_28 = arith.constant 0 : index
    %c16 = arith.constant 16 : index
    %28 = vector.load %arg16[%c0_28, %c16] : memref<4x96xf32, #tpu.memory_space<vmem>>, vector<4x32xf32>
    tpu.vector_store %arg16[%c0_28, %c16], %27 {strides = array<i32>} : memref<4x96xf32, #tpu.memory_space<vmem>>, vector<4x32xf32>,
    %c0_29 = arith.constant 0 : index
    %c0_30 = arith.constant 0 : index
    %29 = vector.load %arg16[%c0_29, %c0_30] : memref<4x96xf32, #tpu.memory_space<vmem>>, vector<4x48xf32>
    %c0_31 = arith.constant 0 : index
    %c0_32 = arith.constant 0 : index
    %30 = vector.load %arg1[%c0_31, %c0_32] : memref<48x256xf32, #tpu.memory_space<vmem>>, vector<48x256xf32>
    %cst = arith.constant dense<0.000000e+00> : vector<4x256xf32>
    %31 = tpu.matmul %29, %30, %cst {dimension_numbers = #tpu.dot_dimension_numbers<[1], [0], [0], [1], [0, 0, 1, 1], [], []>} : vector<4x48xf32>, vector<48x256xf32>, vector<4x256xf32> -> vector<4x256xf32>
    %c0_33 = arith.constant 0 : index
    %c0_34 = arith.constant 0 : index
    %32 = vector.load %arg2[%c0_33, %c0_34] : memref<1x256xf32, #tpu.memory_space<vmem>>, vector<1x256xf32>
    %33 = vector.broadcast %32 : vector<1x256xf32> to vector<4x256xf32>
    %34 = arith.addf %31, %33 : vector<4x256xf32>
    %35 = vector.extract_strided_slice %34 {offsets = [0, 0], sizes = [4, 128], strides = [1, 1]} : vector<4x256xf32> to vector<4x128xf32>
    %36 = vector.extract_strided_slice %34 {offsets = [0, 128], sizes = [4, 128], strides = [1, 1]} : vector<4x256xf32> to vector<4x128xf32>
    %37 = arith.select %8, %35, %36 : vector<4x128xi1>, vector<4x128xf32>
    %38 = math.tanh %37 : vector<4x128xf32>
    %39 = arith.negf %37 : vector<4x128xf32>
    %40 = math.exp %39 : vector<4x128xf32>
    %cst_35 = arith.constant 1.000000e+00 : f32
    %41 = vector.broadcast %cst_35 : f32 to vector<4x128xf32>
    %42 = arith.addf %41, %40 : vector<4x128xf32>
    %43 = arith.divf %41, %42 : vector<4x128xf32>
    %44 = arith.select %5, %38, %43 : vector<4x128xi1>, vector<4x128xf32>
    %45 = vector.extract_strided_slice %44 {offsets = [0, 0], sizes = [4, 32], strides = [1, 1]} : vector<4x128xf32> to vector<4x32xf32>
    %46 = vector.extract_strided_slice %44 {offsets = [0, 32], sizes = [4, 32], strides = [1, 1]} : vector<4x128xf32> to vector<4x32xf32>
    %47 = vector.extract_strided_slice %44 {offsets = [0, 64], sizes = [4, 32], strides = [1, 1]} : vector<4x128xf32> to vector<4x32xf32>
    %48 = vector.extract_strided_slice %44 {offsets = [0, 96], sizes = [4, 32], strides = [1, 1]} : vector<4x128xf32> to vector<4x32xf32>
    %c0_36 = arith.constant 0 : index
    %c0_37 = arith.constant 0 : index
    %49 = vector.load %arg15[%c0_36, %c0_37] : memref<4x32xf32, #tpu.memory_space<vmem>>, vector<4x32xf32>
    %50 = arith.mulf %46, %49 : vector<4x32xf32>
    %51 = arith.mulf %45, %47 : vector<4x32xf32>
    %52 = arith.addf %50, %51 : vector<4x32xf32>
    %53 = math.tanh %52 : vector<4x32xf32>
    %54 = arith.mulf %48, %53 : vector<4x32xf32>
    %c0_38 = arith.constant 0 : index
    %c0_39 = arith.constant 0 : index
    %55 = vector.load %arg14[%c0_38, %c0_39] : memref<4x32xf32, #tpu.memory_space<vmem>>, vector<4x32xf32>
    tpu.vector_store %arg14[%c0_38, %c0_39], %54 {strides = array<i32>} : memref<4x32xf32, #tpu.memory_space<vmem>>, vector<4x32xf32>,
    %c0_40 = arith.constant 0 : index
    %c0_41 = arith.constant 0 : index
    %56 = vector.load %arg15[%c0_40, %c0_41] : memref<4x32xf32, #tpu.memory_space<vmem>>, vector<4x32xf32>
    tpu.vector_store %arg15[%c0_40, %c0_41], %52 {strides = array<i32>} : memref<4x32xf32, #tpu.memory_space<vmem>>, vector<4x32xf32>,
    %57 = vector.extract_strided_slice %54 {offsets = [0, 0], sizes = [2, 32], strides = [1, 1]} : vector<4x32xf32> to vector<2x32xf32>
    %c0_42 = arith.constant 0 : index
    %c0_43 = arith.constant 0 : index
    %c0_44 = arith.constant 0 : index
    %58 = vector.load %arg12[%c0_42, %c0_43, %c0_44] : memref<8x2x64xf32, #tpu.memory_space<vmem>>, vector<1x2x32xf32>
    %59 = vector.shape_cast %58 : vector<1x2x32xf32> to vector<2x32xf32>
    %60 = vector.shape_cast %57 : vector<2x32xf32> to vector<1x2x32xf32>
    tpu.vector_store %arg12[%c0_42, %c0_43, %c0_44], %60 {strides = array<i32>} : memref<8x2x64xf32, #tpu.memory_space<vmem>>, vector<1x2x32xf32>,
    %61 = vector.extract_strided_slice %54 {offsets = [2, 0], sizes = [2, 32], strides = [1, 1]} : vector<4x32xf32> to vector<2x32xf32>
    %c7_45 = arith.constant 7 : index
    %c0_46 = arith.constant 0 : index
    %c32 = arith.constant 32 : index
    %62 = vector.load %arg12[%c7_45, %c0_46, %c32] : memref<8x2x64xf32, #tpu.memory_space<vmem>>, vector<1x2x32xf32>
    %63 = vector.shape_cast %62 : vector<1x2x32xf32> to vector<2x32xf32>
    %64 = vector.shape_cast %61 : vector<2x32xf32> to vector<1x2x32xf32>
    tpu.vector_store %arg12[%c7_45, %c0_46, %c32], %64 {strides = array<i32>} : memref<8x2x64xf32, #tpu.memory_space<vmem>>, vector<1x2x32xf32>,
    %c1_47 = arith.constant 1 : index
    %c0_48 = arith.constant 0 : index
    %c0_49 = arith.constant 0 : index
    %65 = vector.load %arg0[%c1_47, %c0_48, %c0_49] : memref<8x2x16xf32, #tpu.memory_space<vmem>>, vector<1x2x16xf32>
    %66 = vector.shape_cast %65 : vector<1x2x16xf32> to vector<2x16xf32>
    %c0_50 = arith.constant 0 : index
    %c0_51 = arith.constant 0 : index
    %67 = vector.load %arg16[%c0_50, %c0_51] : memref<4x96xf32, #tpu.memory_space<vmem>>, vector<2x16xf32>
    tpu.vector_store %arg16[%c0_50, %c0_51], %66 {strides = array<i32>} : memref<4x96xf32, #tpu.memory_space<vmem>>, vector<2x16xf32>,
    %c6 = arith.constant 6 : index
    %c0_52 = arith.constant 0 : index
    %c0_53 = arith.constant 0 : index
    %68 = vector.load %arg0[%c6, %c0_52, %c0_53] : memref<8x2x16xf32, #tpu.memory_space<vmem>>, vector<1x2x16xf32>
    %69 = vector.shape_cast %68 : vector<1x2x16xf32> to vector<2x16xf32>
    %c2_54 = arith.constant 2 : index
    %c0_55 = arith.constant 0 : index
    %70 = vector.load %arg16[%c2_54, %c0_55] : memref<4x96xf32, #tpu.memory_space<vmem>>, vector<2x16xf32>
    tpu.vector_store %arg16[%c2_54, %c0_55], %69 {strides = array<i32>} : memref<4x96xf32, #tpu.memory_space<vmem>>, vector<2x16xf32>,
    %c0_56 = arith.constant 0 : index
    %c0_57 = arith.constant 0 : index
    %71 = vector.load %arg14[%c0_56, %c0_57] : memref<4x32xf32, #tpu.memory_space<vmem>>, vector<4x32xf32>
    %c0_58 = arith.constant 0 : index
    %c16_59 = arith.constant 16 : index
    %72 = vector.load %arg16[%c0_58, %c16_59] : memref<4x96xf32, #tpu.memory_space<vmem>>, vector<4x32xf32>
    tpu.vector_store %arg16[%c0_58, %c16_59], %71 {strides = array<i32>} : memref<4x96xf32, #tpu.memory_space<vmem>>, vector<4x32xf32>,
    %c0_60 = arith.constant 0 : index
    %c0_61 = arith.constant 0 : index
    %73 = vector.load %arg16[%c0_60, %c0_61] : memref<4x96xf32, #tpu.memory_space<vmem>>, vector<4x48xf32>
    %c0_62 = arith.constant 0 : index
    %c0_63 = arith.constant 0 : index
    %74 = vector.load %arg1[%c0_62, %c0_63] : memref<48x256xf32, #tpu.memory_space<vmem>>, vector<48x256xf32>
    %cst_64 = arith.constant dense<0.000000e+00> : vector<4x256xf32>
    %75 = tpu.matmul %73, %74, %cst_64 {dimension_numbers = #tpu.dot_dimension_numbers<[1], [0], [0], [1], [0, 0, 1, 1], [], []>} : vector<4x48xf32>, vector<48x256xf32>, vector<4x256xf32> -> vector<4x256xf32>
    %c0_65 = arith.constant 0 : index
    %c0_66 = arith.constant 0 : index
    %76 = vector.load %arg2[%c0_65, %c0_66] : memref<1x256xf32, #tpu.memory_space<vmem>>, vector<1x256xf32>
    %77 = vector.broadcast %76 : vector<1x256xf32> to vector<4x256xf32>
    %78 = arith.addf %75, %77 : vector<4x256xf32>
    %79 = vector.extract_strided_slice %78 {offsets = [0, 0], sizes = [4, 128], strides = [1, 1]} : vector<4x256xf32> to vector<4x128xf32>
    %80 = vector.extract_strided_slice %78 {offsets = [0, 128], sizes = [4, 128], strides = [1, 1]} : vector<4x256xf32> to vector<4x128xf32>
    %81 = arith.select %8, %79, %80 : vector<4x128xi1>, vector<4x128xf32>
    %82 = math.tanh %81 : vector<4x128xf32>
    %83 = arith.negf %81 : vector<4x128xf32>
    %84 = math.exp %83 : vector<4x128xf32>
    %cst_67 = arith.constant 1.000000e+00 : f32
    %85 = vector.broadcast %cst_67 : f32 to vector<4x128xf32>
    %86 = arith.addf %85, %84 : vector<4x128xf32>
    %87 = arith.divf %85, %86 : vector<4x128xf32>
    %88 = arith.select %5, %82, %87 : vector<4x128xi1>, vector<4x128xf32>
    %89 = vector.extract_strided_slice %88 {offsets = [0, 0], sizes = [4, 32], strides = [1, 1]} : vector<4x128xf32> to vector<4x32xf32>
    %90 = vector.extract_strided_slice %88 {offsets = [0, 32], sizes = [4, 32], strides = [1, 1]} : vector<4x128xf32> to vector<4x32xf32>
    %91 = vector.extract_strided_slice %88 {offsets = [0, 64], sizes = [4, 32], strides = [1, 1]} : vector<4x128xf32> to vector<4x32xf32>
    %92 = vector.extract_strided_slice %88 {offsets = [0, 96], sizes = [4, 32], strides = [1, 1]} : vector<4x128xf32> to vector<4x32xf32>
    %c0_68 = arith.constant 0 : index
    %c0_69 = arith.constant 0 : index
    %93 = vector.load %arg15[%c0_68, %c0_69] : memref<4x32xf32, #tpu.memory_space<vmem>>, vector<4x32xf32>
    %94 = arith.mulf %90, %93 : vector<4x32xf32>
    %95 = arith.mulf %89, %91 : vector<4x32xf32>
    %96 = arith.addf %94, %95 : vector<4x32xf32>
    %97 = math.tanh %96 : vector<4x32xf32>
    %98 = arith.mulf %92, %97 : vector<4x32xf32>
    %c0_70 = arith.constant 0 : index
    %c0_71 = arith.constant 0 : index
    %99 = vector.load %arg14[%c0_70, %c0_71] : memref<4x32xf32, #tpu.memory_space<vmem>>, vector<4x32xf32>
    tpu.vector_store %arg14[%c0_70, %c0_71], %98 {strides = array<i32>} : memref<4x32xf32, #tpu.memory_space<vmem>>, vector<4x32xf32>,
    %c0_72 = arith.constant 0 : index
    %c0_73 = arith.constant 0 : index
    %100 = vector.load %arg15[%c0_72, %c0_73] : memref<4x32xf32, #tpu.memory_space<vmem>>, vector<4x32xf32>
    tpu.vector_store %arg15[%c0_72, %c0_73], %96 {strides = array<i32>} : memref<4x32xf32, #tpu.memory_space<vmem>>, vector<4x32xf32>,
    %101 = vector.extract_strided_slice %98 {offsets = [0, 0], sizes = [2, 32], strides = [1, 1]} : vector<4x32xf32> to vector<2x32xf32>
    %c1_74 = arith.constant 1 : index
    %c0_75 = arith.constant 0 : index
    %c0_76 = arith.constant 0 : index
    %102 = vector.load %arg12[%c1_74, %c0_75, %c0_76] : memref<8x2x64xf32, #tpu.memory_space<vmem>>, vector<1x2x32xf32>
    %103 = vector.shape_cast %102 : vector<1x2x32xf32> to vector<2x32xf32>
    %104 = vector.shape_cast %101 : vector<2x32xf32> to vector<1x2x32xf32>
    tpu.vector_store %arg12[%c1_74, %c0_75, %c0_76], %104 {strides = array<i32>} : memref<8x2x64xf32, #tpu.memory_space<vmem>>, vector<1x2x32xf32>,
    %105 = vector.extract_strided_slice %98 {offsets = [2, 0], sizes = [2, 32], strides = [1, 1]} : vector<4x32xf32> to vector<2x32xf32>
    %c6_77 = arith.constant 6 : index
    %c0_78 = arith.constant 0 : index
    %c32_79 = arith.constant 32 : index
    %106 = vector.load %arg12[%c6_77, %c0_78, %c32_79] : memref<8x2x64xf32, #tpu.memory_space<vmem>>, vector<1x2x32xf32>
    %107 = vector.shape_cast %106 : vector<1x2x32xf32> to vector<2x32xf32>
    %108 = vector.shape_cast %105 : vector<2x32xf32> to vector<1x2x32xf32>
    tpu.vector_store %arg12[%c6_77, %c0_78, %c32_79], %108 {strides = array<i32>} : memref<8x2x64xf32, #tpu.memory_space<vmem>>, vector<1x2x32xf32>,
    %c2_80 = arith.constant 2 : index
    %c0_81 = arith.constant 0 : index
    %c0_82 = arith.constant 0 : index
    %109 = vector.load %arg0[%c2_80, %c0_81, %c0_82] : memref<8x2x16xf32, #tpu.memory_space<vmem>>, vector<1x2x16xf32>
    %110 = vector.shape_cast %109 : vector<1x2x16xf32> to vector<2x16xf32>
    %c0_83 = arith.constant 0 : index
    %c0_84 = arith.constant 0 : index
    %111 = vector.load %arg16[%c0_83, %c0_84] : memref<4x96xf32, #tpu.memory_space<vmem>>, vector<2x16xf32>
    tpu.vector_store %arg16[%c0_83, %c0_84], %110 {strides = array<i32>} : memref<4x96xf32, #tpu.memory_space<vmem>>, vector<2x16xf32>,
    %c5 = arith.constant 5 : index
    %c0_85 = arith.constant 0 : index
    %c0_86 = arith.constant 0 : index
    %112 = vector.load %arg0[%c5, %c0_85, %c0_86] : memref<8x2x16xf32, #tpu.memory_space<vmem>>, vector<1x2x16xf32>
    %113 = vector.shape_cast %112 : vector<1x2x16xf32> to vector<2x16xf32>
    %c2_87 = arith.constant 2 : index
    %c0_88 = arith.constant 0 : index
    %114 = vector.load %arg16[%c2_87, %c0_88] : memref<4x96xf32, #tpu.memory_space<vmem>>, vector<2x16xf32>
    tpu.vector_store %arg16[%c2_87, %c0_88], %113 {strides = array<i32>} : memref<4x96xf32, #tpu.memory_space<vmem>>, vector<2x16xf32>,
    %c0_89 = arith.constant 0 : index
    %c0_90 = arith.constant 0 : index
    %115 = vector.load %arg14[%c0_89, %c0_90] : memref<4x32xf32, #tpu.memory_space<vmem>>, vector<4x32xf32>
    %c0_91 = arith.constant 0 : index
    %c16_92 = arith.constant 16 : index
    %116 = vector.load %arg16[%c0_91, %c16_92] : memref<4x96xf32, #tpu.memory_space<vmem>>, vector<4x32xf32>
    tpu.vector_store %arg16[%c0_91, %c16_92], %115 {strides = array<i32>} : memref<4x96xf32, #tpu.memory_space<vmem>>, vector<4x32xf32>,
    %c0_93 = arith.constant 0 : index
    %c0_94 = arith.constant 0 : index
    %117 = vector.load %arg16[%c0_93, %c0_94] : memref<4x96xf32, #tpu.memory_space<vmem>>, vector<4x48xf32>
    %c0_95 = arith.constant 0 : index
    %c0_96 = arith.constant 0 : index
    %118 = vector.load %arg1[%c0_95, %c0_96] : memref<48x256xf32, #tpu.memory_space<vmem>>, vector<48x256xf32>
    %cst_97 = arith.constant dense<0.000000e+00> : vector<4x256xf32>
    %119 = tpu.matmul %117, %118, %cst_97 {dimension_numbers = #tpu.dot_dimension_numbers<[1], [0], [0], [1], [0, 0, 1, 1], [], []>} : vector<4x48xf32>, vector<48x256xf32>, vector<4x256xf32> -> vector<4x256xf32>
    %c0_98 = arith.constant 0 : index
    %c0_99 = arith.constant 0 : index
    %120 = vector.load %arg2[%c0_98, %c0_99] : memref<1x256xf32, #tpu.memory_space<vmem>>, vector<1x256xf32>
    %121 = vector.broadcast %120 : vector<1x256xf32> to vector<4x256xf32>
    %122 = arith.addf %119, %121 : vector<4x256xf32>
    %123 = vector.extract_strided_slice %122 {offsets = [0, 0], sizes = [4, 128], strides = [1, 1]} : vector<4x256xf32> to vector<4x128xf32>
    %124 = vector.extract_strided_slice %122 {offsets = [0, 128], sizes = [4, 128], strides = [1, 1]} : vector<4x256xf32> to vector<4x128xf32>
    %125 = arith.select %8, %123, %124 : vector<4x128xi1>, vector<4x128xf32>
    %126 = math.tanh %125 : vector<4x128xf32>
    %127 = arith.negf %125 : vector<4x128xf32>
    %128 = math.exp %127 : vector<4x128xf32>
    %cst_100 = arith.constant 1.000000e+00 : f32
    %129 = vector.broadcast %cst_100 : f32 to vector<4x128xf32>
    %130 = arith.addf %129, %128 : vector<4x128xf32>
    %131 = arith.divf %129, %130 : vector<4x128xf32>
    %132 = arith.select %5, %126, %131 : vector<4x128xi1>, vector<4x128xf32>
    %133 = vector.extract_strided_slice %132 {offsets = [0, 0], sizes = [4, 32], strides = [1, 1]} : vector<4x128xf32> to vector<4x32xf32>
    %134 = vector.extract_strided_slice %132 {offsets = [0, 32], sizes = [4, 32], strides = [1, 1]} : vector<4x128xf32> to vector<4x32xf32>
    %135 = vector.extract_strided_slice %132 {offsets = [0, 64], sizes = [4, 32], strides = [1, 1]} : vector<4x128xf32> to vector<4x32xf32>
    %136 = vector.extract_strided_slice %132 {offsets = [0, 96], sizes = [4, 32], strides = [1, 1]} : vector<4x128xf32> to vector<4x32xf32>
    %c0_101 = arith.constant 0 : index
    %c0_102 = arith.constant 0 : index
    %137 = vector.load %arg15[%c0_101, %c0_102] : memref<4x32xf32, #tpu.memory_space<vmem>>, vector<4x32xf32>
    %138 = arith.mulf %134, %137 : vector<4x32xf32>
    %139 = arith.mulf %133, %135 : vector<4x32xf32>
    %140 = arith.addf %138, %139 : vector<4x32xf32>
    %141 = math.tanh %140 : vector<4x32xf32>
    %142 = arith.mulf %136, %141 : vector<4x32xf32>
    %c0_103 = arith.constant 0 : index
    %c0_104 = arith.constant 0 : index
    %143 = vector.load %arg14[%c0_103, %c0_104] : memref<4x32xf32, #tpu.memory_space<vmem>>, vector<4x32xf32>
    tpu.vector_store %arg14[%c0_103, %c0_104], %142 {strides = array<i32>} : memref<4x32xf32, #tpu.memory_space<vmem>>, vector<4x32xf32>,
    %c0_105 = arith.constant 0 : index
    %c0_106 = arith.constant 0 : index
    %144 = vector.load %arg15[%c0_105, %c0_106] : memref<4x32xf32, #tpu.memory_space<vmem>>, vector<4x32xf32>
    tpu.vector_store %arg15[%c0_105, %c0_106], %140 {strides = array<i32>} : memref<4x32xf32, #tpu.memory_space<vmem>>, vector<4x32xf32>,
    %145 = vector.extract_strided_slice %142 {offsets = [0, 0], sizes = [2, 32], strides = [1, 1]} : vector<4x32xf32> to vector<2x32xf32>
    %c2_107 = arith.constant 2 : index
    %c0_108 = arith.constant 0 : index
    %c0_109 = arith.constant 0 : index
    %146 = vector.load %arg12[%c2_107, %c0_108, %c0_109] : memref<8x2x64xf32, #tpu.memory_space<vmem>>, vector<1x2x32xf32>
    %147 = vector.shape_cast %146 : vector<1x2x32xf32> to vector<2x32xf32>
    %148 = vector.shape_cast %145 : vector<2x32xf32> to vector<1x2x32xf32>
    tpu.vector_store %arg12[%c2_107, %c0_108, %c0_109], %148 {strides = array<i32>} : memref<8x2x64xf32, #tpu.memory_space<vmem>>, vector<1x2x32xf32>,
    %149 = vector.extract_strided_slice %142 {offsets = [2, 0], sizes = [2, 32], strides = [1, 1]} : vector<4x32xf32> to vector<2x32xf32>
    %c5_110 = arith.constant 5 : index
    %c0_111 = arith.constant 0 : index
    %c32_112 = arith.constant 32 : index
    %150 = vector.load %arg12[%c5_110, %c0_111, %c32_112] : memref<8x2x64xf32, #tpu.memory_space<vmem>>, vector<1x2x32xf32>
    %151 = vector.shape_cast %150 : vector<1x2x32xf32> to vector<2x32xf32>
    %152 = vector.shape_cast %149 : vector<2x32xf32> to vector<1x2x32xf32>
    tpu.vector_store %arg12[%c5_110, %c0_111, %c32_112], %152 {strides = array<i32>} : memref<8x2x64xf32, #tpu.memory_space<vmem>>, vector<1x2x32xf32>,
    %c3 = arith.constant 3 : index
    %c0_113 = arith.constant 0 : index
    %c0_114 = arith.constant 0 : index
    %153 = vector.load %arg0[%c3, %c0_113, %c0_114] : memref<8x2x16xf32, #tpu.memory_space<vmem>>, vector<1x2x16xf32>
    %154 = vector.shape_cast %153 : vector<1x2x16xf32> to vector<2x16xf32>
    %c0_115 = arith.constant 0 : index
    %c0_116 = arith.constant 0 : index
    %155 = vector.load %arg16[%c0_115, %c0_116] : memref<4x96xf32, #tpu.memory_space<vmem>>, vector<2x16xf32>
    tpu.vector_store %arg16[%c0_115, %c0_116], %154 {strides = array<i32>} : memref<4x96xf32, #tpu.memory_space<vmem>>, vector<2x16xf32>,
    %c4 = arith.constant 4 : index
    %c0_117 = arith.constant 0 : index
    %c0_118 = arith.constant 0 : index
    %156 = vector.load %arg0[%c4, %c0_117, %c0_118] : memref<8x2x16xf32, #tpu.memory_space<vmem>>, vector<1x2x16xf32>
    %157 = vector.shape_cast %156 : vector<1x2x16xf32> to vector<2x16xf32>
    %c2_119 = arith.constant 2 : index
    %c0_120 = arith.constant 0 : index
    %158 = vector.load %arg16[%c2_119, %c0_120] : memref<4x96xf32, #tpu.memory_space<vmem>>, vector<2x16xf32>
    tpu.vector_store %arg16[%c2_119, %c0_120], %157 {strides = array<i32>} : memref<4x96xf32, #tpu.memory_space<vmem>>, vector<2x16xf32>,
    %c0_121 = arith.constant 0 : index
    %c0_122 = arith.constant 0 : index
    %159 = vector.load %arg14[%c0_121, %c0_122] : memref<4x32xf32, #tpu.memory_space<vmem>>, vector<4x32xf32>
    %c0_123 = arith.constant 0 : index
    %c16_124 = arith.constant 16 : index
    %160 = vector.load %arg16[%c0_123, %c16_124] : memref<4x96xf32, #tpu.memory_space<vmem>>, vector<4x32xf32>
    tpu.vector_store %arg16[%c0_123, %c16_124], %159 {strides = array<i32>} : memref<4x96xf32, #tpu.memory_space<vmem>>, vector<4x32xf32>,
    %c0_125 = arith.constant 0 : index
    %c0_126 = arith.constant 0 : index
    %161 = vector.load %arg16[%c0_125, %c0_126] : memref<4x96xf32, #tpu.memory_space<vmem>>, vector<4x48xf32>
    %c0_127 = arith.constant 0 : index
    %c0_128 = arith.constant 0 : index
    %162 = vector.load %arg1[%c0_127, %c0_128] : memref<48x256xf32, #tpu.memory_space<vmem>>, vector<48x256xf32>
    %cst_129 = arith.constant dense<0.000000e+00> : vector<4x256xf32>
    %163 = tpu.matmul %161, %162, %cst_129 {dimension_numbers = #tpu.dot_dimension_numbers<[1], [0], [0], [1], [0, 0, 1, 1], [], []>} : vector<4x48xf32>, vector<48x256xf32>, vector<4x256xf32> -> vector<4x256xf32>
    %c0_130 = arith.constant 0 : index
    %c0_131 = arith.constant 0 : index
    %164 = vector.load %arg2[%c0_130, %c0_131] : memref<1x256xf32, #tpu.memory_space<vmem>>, vector<1x256xf32>
    %165 = vector.broadcast %164 : vector<1x256xf32> to vector<4x256xf32>
    %166 = arith.addf %163, %165 : vector<4x256xf32>
    %167 = vector.extract_strided_slice %166 {offsets = [0, 0], sizes = [4, 128], strides = [1, 1]} : vector<4x256xf32> to vector<4x128xf32>
    %168 = vector.extract_strided_slice %166 {offsets = [0, 128], sizes = [4, 128], strides = [1, 1]} : vector<4x256xf32> to vector<4x128xf32>
    %169 = arith.select %8, %167, %168 : vector<4x128xi1>, vector<4x128xf32>
    %170 = math.tanh %169 : vector<4x128xf32>
    %171 = arith.negf %169 : vector<4x128xf32>
    %172 = math.exp %171 : vector<4x128xf32>
    %cst_132 = arith.constant 1.000000e+00 : f32
    %173 = vector.broadcast %cst_132 : f32 to vector<4x128xf32>
    %174 = arith.addf %173, %172 : vector<4x128xf32>
    %175 = arith.divf %173, %174 : vector<4x128xf32>
    %176 = arith.select %5, %170, %175 : vector<4x128xi1>, vector<4x128xf32>
    %177 = vector.extract_strided_slice %176 {offsets = [0, 0], sizes = [4, 32], strides = [1, 1]} : vector<4x128xf32> to vector<4x32xf32>
    %178 = vector.extract_strided_slice %176 {offsets = [0, 32], sizes = [4, 32], strides = [1, 1]} : vector<4x128xf32> to vector<4x32xf32>
    %179 = vector.extract_strided_slice %176 {offsets = [0, 64], sizes = [4, 32], strides = [1, 1]} : vector<4x128xf32> to vector<4x32xf32>
    %180 = vector.extract_strided_slice %176 {offsets = [0, 96], sizes = [4, 32], strides = [1, 1]} : vector<4x128xf32> to vector<4x32xf32>
    %c0_133 = arith.constant 0 : index
    %c0_134 = arith.constant 0 : index
    %181 = vector.load %arg15[%c0_133, %c0_134] : memref<4x32xf32, #tpu.memory_space<vmem>>, vector<4x32xf32>
    %182 = arith.mulf %178, %181 : vector<4x32xf32>
    %183 = arith.mulf %177, %179 : vector<4x32xf32>
    %184 = arith.addf %182, %183 : vector<4x32xf32>
    %185 = math.tanh %184 : vector<4x32xf32>
    %186 = arith.mulf %180, %185 : vector<4x32xf32>
    %c0_135 = arith.constant 0 : index
    %c0_136 = arith.constant 0 : index
    %187 = vector.load %arg14[%c0_135, %c0_136] : memref<4x32xf32, #tpu.memory_space<vmem>>, vector<4x32xf32>
    tpu.vector_store %arg14[%c0_135, %c0_136], %186 {strides = array<i32>} : memref<4x32xf32, #tpu.memory_space<vmem>>, vector<4x32xf32>,
    %c0_137 = arith.constant 0 : index
    %c0_138 = arith.constant 0 : index
    %188 = vector.load %arg15[%c0_137, %c0_138] : memref<4x32xf32, #tpu.memory_space<vmem>>, vector<4x32xf32>
    tpu.vector_store %arg15[%c0_137, %c0_138], %184 {strides = array<i32>} : memref<4x32xf32, #tpu.memory_space<vmem>>, vector<4x32xf32>,
    %189 = vector.extract_strided_slice %186 {offsets = [0, 0], sizes = [2, 32], strides = [1, 1]} : vector<4x32xf32> to vector<2x32xf32>
    %c3_139 = arith.constant 3 : index
    %c0_140 = arith.constant 0 : index
    %c0_141 = arith.constant 0 : index
    %190 = vector.load %arg12[%c3_139, %c0_140, %c0_141] : memref<8x2x64xf32, #tpu.memory_space<vmem>>, vector<1x2x32xf32>
    %191 = vector.shape_cast %190 : vector<1x2x32xf32> to vector<2x32xf32>
    %192 = vector.shape_cast %189 : vector<2x32xf32> to vector<1x2x32xf32>
    tpu.vector_store %arg12[%c3_139, %c0_140, %c0_141], %192 {strides = array<i32>} : memref<8x2x64xf32, #tpu.memory_space<vmem>>, vector<1x2x32xf32>,
    %193 = vector.extract_strided_slice %186 {offsets = [2, 0], sizes = [2, 32], strides = [1, 1]} : vector<4x32xf32> to vector<2x32xf32>
    %c4_142 = arith.constant 4 : index
    %c0_143 = arith.constant 0 : index
    %c32_144 = arith.constant 32 : index
    %194 = vector.load %arg12[%c4_142, %c0_143, %c32_144] : memref<8x2x64xf32, #tpu.memory_space<vmem>>, vector<1x2x32xf32>
    %195 = vector.shape_cast %194 : vector<1x2x32xf32> to vector<2x32xf32>
    %196 = vector.shape_cast %193 : vector<2x32xf32> to vector<1x2x32xf32>
    tpu.vector_store %arg12[%c4_142, %c0_143, %c32_144], %196 {strides = array<i32>} : memref<8x2x64xf32, #tpu.memory_space<vmem>>, vector<1x2x32xf32>,
    %c4_145 = arith.constant 4 : index
    %c0_146 = arith.constant 0 : index
    %c0_147 = arith.constant 0 : index
    %197 = vector.load %arg0[%c4_145, %c0_146, %c0_147] : memref<8x2x16xf32, #tpu.memory_space<vmem>>, vector<1x2x16xf32>
    %198 = vector.shape_cast %197 : vector<1x2x16xf32> to vector<2x16xf32>
    %c0_148 = arith.constant 0 : index
    %c0_149 = arith.constant 0 : index
    %199 = vector.load %arg16[%c0_148, %c0_149] : memref<4x96xf32, #tpu.memory_space<vmem>>, vector<2x16xf32>
    tpu.vector_store %arg16[%c0_148, %c0_149], %198 {strides = array<i32>} : memref<4x96xf32, #tpu.memory_space<vmem>>, vector<2x16xf32>,
    %c3_150 = arith.constant 3 : index
    %c0_151 = arith.constant 0 : index
    %c0_152 = arith.constant 0 : index
    %200 = vector.load %arg0[%c3_150, %c0_151, %c0_152] : memref<8x2x16xf32, #tpu.memory_space<vmem>>, vector<1x2x16xf32>
    %201 = vector.shape_cast %200 : vector<1x2x16xf32> to vector<2x16xf32>
    %c2_153 = arith.constant 2 : index
    %c0_154 = arith.constant 0 : index
    %202 = vector.load %arg16[%c2_153, %c0_154] : memref<4x96xf32, #tpu.memory_space<vmem>>, vector<2x16xf32>
    tpu.vector_store %arg16[%c2_153, %c0_154], %201 {strides = array<i32>} : memref<4x96xf32, #tpu.memory_space<vmem>>, vector<2x16xf32>,
    %c0_155 = arith.constant 0 : index
    %c0_156 = arith.constant 0 : index
    %203 = vector.load %arg14[%c0_155, %c0_156] : memref<4x32xf32, #tpu.memory_space<vmem>>, vector<4x32xf32>
    %c0_157 = arith.constant 0 : index
    %c16_158 = arith.constant 16 : index
    %204 = vector.load %arg16[%c0_157, %c16_158] : memref<4x96xf32, #tpu.memory_space<vmem>>, vector<4x32xf32>
    tpu.vector_store %arg16[%c0_157, %c16_158], %203 {strides = array<i32>} : memref<4x96xf32, #tpu.memory_space<vmem>>, vector<4x32xf32>,
    %c0_159 = arith.constant 0 : index
    %c0_160 = arith.constant 0 : index
    %205 = vector.load %arg16[%c0_159, %c0_160] : memref<4x96xf32, #tpu.memory_space<vmem>>, vector<4x48xf32>
    %c0_161 = arith.constant 0 : index
    %c0_162 = arith.constant 0 : index
    %206 = vector.load %arg1[%c0_161, %c0_162] : memref<48x256xf32, #tpu.memory_space<vmem>>, vector<48x256xf32>
    %cst_163 = arith.constant dense<0.000000e+00> : vector<4x256xf32>
    %207 = tpu.matmul %205, %206, %cst_163 {dimension_numbers = #tpu.dot_dimension_numbers<[1], [0], [0], [1], [0, 0, 1, 1], [], []>} : vector<4x48xf32>, vector<48x256xf32>, vector<4x256xf32> -> vector<4x256xf32>
    %c0_164 = arith.constant 0 : index
    %c0_165 = arith.constant 0 : index
    %208 = vector.load %arg2[%c0_164, %c0_165] : memref<1x256xf32, #tpu.memory_space<vmem>>, vector<1x256xf32>
    %209 = vector.broadcast %208 : vector<1x256xf32> to vector<4x256xf32>
    %210 = arith.addf %207, %209 : vector<4x256xf32>
    %211 = vector.extract_strided_slice %210 {offsets = [0, 0], sizes = [4, 128], strides = [1, 1]} : vector<4x256xf32> to vector<4x128xf32>
    %212 = vector.extract_strided_slice %210 {offsets = [0, 128], sizes = [4, 128], strides = [1, 1]} : vector<4x256xf32> to vector<4x128xf32>
    %213 = arith.select %8, %211, %212 : vector<4x128xi1>, vector<4x128xf32>
    %214 = math.tanh %213 : vector<4x128xf32>
    %215 = arith.negf %213 : vector<4x128xf32>
    %216 = math.exp %215 : vector<4x128xf32>
    %cst_166 = arith.constant 1.000000e+00 : f32
    %217 = vector.broadcast %cst_166 : f32 to vector<4x128xf32>
    %218 = arith.addf %217, %216 : vector<4x128xf32>
    %219 = arith.divf %217, %218 : vector<4x128xf32>
    %220 = arith.select %5, %214, %219 : vector<4x128xi1>, vector<4x128xf32>
    %221 = vector.extract_strided_slice %220 {offsets = [0, 0], sizes = [4, 32], strides = [1, 1]} : vector<4x128xf32> to vector<4x32xf32>
    %222 = vector.extract_strided_slice %220 {offsets = [0, 32], sizes = [4, 32], strides = [1, 1]} : vector<4x128xf32> to vector<4x32xf32>
    %223 = vector.extract_strided_slice %220 {offsets = [0, 64], sizes = [4, 32], strides = [1, 1]} : vector<4x128xf32> to vector<4x32xf32>
    %224 = vector.extract_strided_slice %220 {offsets = [0, 96], sizes = [4, 32], strides = [1, 1]} : vector<4x128xf32> to vector<4x32xf32>
    %c0_167 = arith.constant 0 : index
    %c0_168 = arith.constant 0 : index
    %225 = vector.load %arg15[%c0_167, %c0_168] : memref<4x32xf32, #tpu.memory_space<vmem>>, vector<4x32xf32>
    %226 = arith.mulf %222, %225 : vector<4x32xf32>
    %227 = arith.mulf %221, %223 : vector<4x32xf32>
    %228 = arith.addf %226, %227 : vector<4x32xf32>
    %229 = math.tanh %228 : vector<4x32xf32>
    %230 = arith.mulf %224, %229 : vector<4x32xf32>
    %c0_169 = arith.constant 0 : index
    %c0_170 = arith.constant 0 : index
    %231 = vector.load %arg14[%c0_169, %c0_170] : memref<4x32xf32, #tpu.memory_space<vmem>>, vector<4x32xf32>
    tpu.vector_store %arg14[%c0_169, %c0_170], %230 {strides = array<i32>} : memref<4x32xf32, #tpu.memory_space<vmem>>, vector<4x32xf32>,
    %c0_171 = arith.constant 0 : index
    %c0_172 = arith.constant 0 : index
    %232 = vector.load %arg15[%c0_171, %c0_172] : memref<4x32xf32, #tpu.memory_space<vmem>>, vector<4x32xf32>
    tpu.vector_store %arg15[%c0_171, %c0_172], %228 {strides = array<i32>} : memref<4x32xf32, #tpu.memory_space<vmem>>, vector<4x32xf32>,
    %233 = vector.extract_strided_slice %230 {offsets = [0, 0], sizes = [2, 32], strides = [1, 1]} : vector<4x32xf32> to vector<2x32xf32>
    %c4_173 = arith.constant 4 : index
    %c0_174 = arith.constant 0 : index
    %c0_175 = arith.constant 0 : index
    %234 = vector.load %arg12[%c4_173, %c0_174, %c0_175] : memref<8x2x64xf32, #tpu.memory_space<vmem>>, vector<1x2x32xf32>
    %235 = vector.shape_cast %234 : vector<1x2x32xf32> to vector<2x32xf32>
    %236 = vector.shape_cast %233 : vector<2x32xf32> to vector<1x2x32xf32>
    tpu.vector_store %arg12[%c4_173, %c0_174, %c0_175], %236 {strides = array<i32>} : memref<8x2x64xf32, #tpu.memory_space<vmem>>, vector<1x2x32xf32>,
    %237 = vector.extract_strided_slice %230 {offsets = [2, 0], sizes = [2, 32], strides = [1, 1]} : vector<4x32xf32> to vector<2x32xf32>
    %c3_176 = arith.constant 3 : index
    %c0_177 = arith.constant 0 : index
    %c32_178 = arith.constant 32 : index
    %238 = vector.load %arg12[%c3_176, %c0_177, %c32_178] : memref<8x2x64xf32, #tpu.memory_space<vmem>>, vector<1x2x32xf32>
    %239 = vector.shape_cast %238 : vector<1x2x32xf32> to vector<2x32xf32>
    %240 = vector.shape_cast %237 : vector<2x32xf32> to vector<1x2x32xf32>
    tpu.vector_store %arg12[%c3_176, %c0_177, %c32_178], %240 {strides = array<i32>} : memref<8x2x64xf32, #tpu.memory_space<vmem>>, vector<1x2x32xf32>,
    %c5_179 = arith.constant 5 : index
    %c0_180 = arith.constant 0 : index
    %c0_181 = arith.constant 0 : index
    %241 = vector.load %arg0[%c5_179, %c0_180, %c0_181] : memref<8x2x16xf32, #tpu.memory_space<vmem>>, vector<1x2x16xf32>
    %242 = vector.shape_cast %241 : vector<1x2x16xf32> to vector<2x16xf32>
    %c0_182 = arith.constant 0 : index
    %c0_183 = arith.constant 0 : index
    %243 = vector.load %arg16[%c0_182, %c0_183] : memref<4x96xf32, #tpu.memory_space<vmem>>, vector<2x16xf32>
    tpu.vector_store %arg16[%c0_182, %c0_183], %242 {strides = array<i32>} : memref<4x96xf32, #tpu.memory_space<vmem>>, vector<2x16xf32>,
    %c2_184 = arith.constant 2 : index
    %c0_185 = arith.constant 0 : index
    %c0_186 = arith.constant 0 : index
    %244 = vector.load %arg0[%c2_184, %c0_185, %c0_186] : memref<8x2x16xf32, #tpu.memory_space<vmem>>, vector<1x2x16xf32>
    %245 = vector.shape_cast %244 : vector<1x2x16xf32> to vector<2x16xf32>
    %c2_187 = arith.constant 2 : index
    %c0_188 = arith.constant 0 : index
    %246 = vector.load %arg16[%c2_187, %c0_188] : memref<4x96xf32, #tpu.memory_space<vmem>>, vector<2x16xf32>
    tpu.vector_store %arg16[%c2_187, %c0_188], %245 {strides = array<i32>} : memref<4x96xf32, #tpu.memory_space<vmem>>, vector<2x16xf32>,
    %c0_189 = arith.constant 0 : index
    %c0_190 = arith.constant 0 : index
    %247 = vector.load %arg14[%c0_189, %c0_190] : memref<4x32xf32, #tpu.memory_space<vmem>>, vector<4x32xf32>
    %c0_191 = arith.constant 0 : index
    %c16_192 = arith.constant 16 : index
    %248 = vector.load %arg16[%c0_191, %c16_192] : memref<4x96xf32, #tpu.memory_space<vmem>>, vector<4x32xf32>
    tpu.vector_store %arg16[%c0_191, %c16_192], %247 {strides = array<i32>} : memref<4x96xf32, #tpu.memory_space<vmem>>, vector<4x32xf32>,
    %c0_193 = arith.constant 0 : index
    %c0_194 = arith.constant 0 : index
    %249 = vector.load %arg16[%c0_193, %c0_194] : memref<4x96xf32, #tpu.memory_space<vmem>>, vector<4x48xf32>
    %c0_195 = arith.constant 0 : index
    %c0_196 = arith.constant 0 : index
    %250 = vector.load %arg1[%c0_195, %c0_196] : memref<48x256xf32, #tpu.memory_space<vmem>>, vector<48x256xf32>
    %cst_197 = arith.constant dense<0.000000e+00> : vector<4x256xf32>
    %251 = tpu.matmul %249, %250, %cst_197 {dimension_numbers = #tpu.dot_dimension_numbers<[1], [0], [0], [1], [0, 0, 1, 1], [], []>} : vector<4x48xf32>, vector<48x256xf32>, vector<4x256xf32> -> vector<4x256xf32>
    %c0_198 = arith.constant 0 : index
    %c0_199 = arith.constant 0 : index
    %252 = vector.load %arg2[%c0_198, %c0_199] : memref<1x256xf32, #tpu.memory_space<vmem>>, vector<1x256xf32>
    %253 = vector.broadcast %252 : vector<1x256xf32> to vector<4x256xf32>
    %254 = arith.addf %251, %253 : vector<4x256xf32>
    %255 = vector.extract_strided_slice %254 {offsets = [0, 0], sizes = [4, 128], strides = [1, 1]} : vector<4x256xf32> to vector<4x128xf32>
    %256 = vector.extract_strided_slice %254 {offsets = [0, 128], sizes = [4, 128], strides = [1, 1]} : vector<4x256xf32> to vector<4x128xf32>
    %257 = arith.select %8, %255, %256 : vector<4x128xi1>, vector<4x128xf32>
    %258 = math.tanh %257 : vector<4x128xf32>
    %259 = arith.negf %257 : vector<4x128xf32>
    %260 = math.exp %259 : vector<4x128xf32>
    %cst_200 = arith.constant 1.000000e+00 : f32
    %261 = vector.broadcast %cst_200 : f32 to vector<4x128xf32>
    %262 = arith.addf %261, %260 : vector<4x128xf32>
    %263 = arith.divf %261, %262 : vector<4x128xf32>
    %264 = arith.select %5, %258, %263 : vector<4x128xi1>, vector<4x128xf32>
    %265 = vector.extract_strided_slice %264 {offsets = [0, 0], sizes = [4, 32], strides = [1, 1]} : vector<4x128xf32> to vector<4x32xf32>
    %266 = vector.extract_strided_slice %264 {offsets = [0, 32], sizes = [4, 32], strides = [1, 1]} : vector<4x128xf32> to vector<4x32xf32>
    %267 = vector.extract_strided_slice %264 {offsets = [0, 64], sizes = [4, 32], strides = [1, 1]} : vector<4x128xf32> to vector<4x32xf32>
    %268 = vector.extract_strided_slice %264 {offsets = [0, 96], sizes = [4, 32], strides = [1, 1]} : vector<4x128xf32> to vector<4x32xf32>
    %c0_201 = arith.constant 0 : index
    %c0_202 = arith.constant 0 : index
    %269 = vector.load %arg15[%c0_201, %c0_202] : memref<4x32xf32, #tpu.memory_space<vmem>>, vector<4x32xf32>
    %270 = arith.mulf %266, %269 : vector<4x32xf32>
    %271 = arith.mulf %265, %267 : vector<4x32xf32>
    %272 = arith.addf %270, %271 : vector<4x32xf32>
    %273 = math.tanh %272 : vector<4x32xf32>
    %274 = arith.mulf %268, %273 : vector<4x32xf32>
    %c0_203 = arith.constant 0 : index
    %c0_204 = arith.constant 0 : index
    %275 = vector.load %arg14[%c0_203, %c0_204] : memref<4x32xf32, #tpu.memory_space<vmem>>, vector<4x32xf32>
    tpu.vector_store %arg14[%c0_203, %c0_204], %274 {strides = array<i32>} : memref<4x32xf32, #tpu.memory_space<vmem>>, vector<4x32xf32>,
    %c0_205 = arith.constant 0 : index
    %c0_206 = arith.constant 0 : index
    %276 = vector.load %arg15[%c0_205, %c0_206] : memref<4x32xf32, #tpu.memory_space<vmem>>, vector<4x32xf32>
    tpu.vector_store %arg15[%c0_205, %c0_206], %272 {strides = array<i32>} : memref<4x32xf32, #tpu.memory_space<vmem>>, vector<4x32xf32>,
    %277 = vector.extract_strided_slice %274 {offsets = [0, 0], sizes = [2, 32], strides = [1, 1]} : vector<4x32xf32> to vector<2x32xf32>
    %c5_207 = arith.constant 5 : index
    %c0_208 = arith.constant 0 : index
    %c0_209 = arith.constant 0 : index
    %278 = vector.load %arg12[%c5_207, %c0_208, %c0_209] : memref<8x2x64xf32, #tpu.memory_space<vmem>>, vector<1x2x32xf32>
    %279 = vector.shape_cast %278 : vector<1x2x32xf32> to vector<2x32xf32>
    %280 = vector.shape_cast %277 : vector<2x32xf32> to vector<1x2x32xf32>
    tpu.vector_store %arg12[%c5_207, %c0_208, %c0_209], %280 {strides = array<i32>} : memref<8x2x64xf32, #tpu.memory_space<vmem>>, vector<1x2x32xf32>,
    %281 = vector.extract_strided_slice %274 {offsets = [2, 0], sizes = [2, 32], strides = [1, 1]} : vector<4x32xf32> to vector<2x32xf32>
    %c2_210 = arith.constant 2 : index
    %c0_211 = arith.constant 0 : index
    %c32_212 = arith.constant 32 : index
    %282 = vector.load %arg12[%c2_210, %c0_211, %c32_212] : memref<8x2x64xf32, #tpu.memory_space<vmem>>, vector<1x2x32xf32>
    %283 = vector.shape_cast %282 : vector<1x2x32xf32> to vector<2x32xf32>
    %284 = vector.shape_cast %281 : vector<2x32xf32> to vector<1x2x32xf32>
    tpu.vector_store %arg12[%c2_210, %c0_211, %c32_212], %284 {strides = array<i32>} : memref<8x2x64xf32, #tpu.memory_space<vmem>>, vector<1x2x32xf32>,
    %c6_213 = arith.constant 6 : index
    %c0_214 = arith.constant 0 : index
    %c0_215 = arith.constant 0 : index
    %285 = vector.load %arg0[%c6_213, %c0_214, %c0_215] : memref<8x2x16xf32, #tpu.memory_space<vmem>>, vector<1x2x16xf32>
    %286 = vector.shape_cast %285 : vector<1x2x16xf32> to vector<2x16xf32>
    %c0_216 = arith.constant 0 : index
    %c0_217 = arith.constant 0 : index
    %287 = vector.load %arg16[%c0_216, %c0_217] : memref<4x96xf32, #tpu.memory_space<vmem>>, vector<2x16xf32>
    tpu.vector_store %arg16[%c0_216, %c0_217], %286 {strides = array<i32>} : memref<4x96xf32, #tpu.memory_space<vmem>>, vector<2x16xf32>,
    %c1_218 = arith.constant 1 : index
    %c0_219 = arith.constant 0 : index
    %c0_220 = arith.constant 0 : index
    %288 = vector.load %arg0[%c1_218, %c0_219, %c0_220] : memref<8x2x16xf32, #tpu.memory_space<vmem>>, vector<1x2x16xf32>
    %289 = vector.shape_cast %288 : vector<1x2x16xf32> to vector<2x16xf32>
    %c2_221 = arith.constant 2 : index
    %c0_222 = arith.constant 0 : index
    %290 = vector.load %arg16[%c2_221, %c0_222] : memref<4x96xf32, #tpu.memory_space<vmem>>, vector<2x16xf32>
    tpu.vector_store %arg16[%c2_221, %c0_222], %289 {strides = array<i32>} : memref<4x96xf32, #tpu.memory_space<vmem>>, vector<2x16xf32>,
    %c0_223 = arith.constant 0 : index
    %c0_224 = arith.constant 0 : index
    %291 = vector.load %arg14[%c0_223, %c0_224] : memref<4x32xf32, #tpu.memory_space<vmem>>, vector<4x32xf32>
    %c0_225 = arith.constant 0 : index
    %c16_226 = arith.constant 16 : index
    %292 = vector.load %arg16[%c0_225, %c16_226] : memref<4x96xf32, #tpu.memory_space<vmem>>, vector<4x32xf32>
    tpu.vector_store %arg16[%c0_225, %c16_226], %291 {strides = array<i32>} : memref<4x96xf32, #tpu.memory_space<vmem>>, vector<4x32xf32>,
    %c0_227 = arith.constant 0 : index
    %c0_228 = arith.constant 0 : index
    %293 = vector.load %arg16[%c0_227, %c0_228] : memref<4x96xf32, #tpu.memory_space<vmem>>, vector<4x48xf32>
    %c0_229 = arith.constant 0 : index
    %c0_230 = arith.constant 0 : index
    %294 = vector.load %arg1[%c0_229, %c0_230] : memref<48x256xf32, #tpu.memory_space<vmem>>, vector<48x256xf32>
    %cst_231 = arith.constant dense<0.000000e+00> : vector<4x256xf32>
    %295 = tpu.matmul %293, %294, %cst_231 {dimension_numbers = #tpu.dot_dimension_numbers<[1], [0], [0], [1], [0, 0, 1, 1], [], []>} : vector<4x48xf32>, vector<48x256xf32>, vector<4x256xf32> -> vector<4x256xf32>
    %c0_232 = arith.constant 0 : index
    %c0_233 = arith.constant 0 : index
    %296 = vector.load %arg2[%c0_232, %c0_233] : memref<1x256xf32, #tpu.memory_space<vmem>>, vector<1x256xf32>
    %297 = vector.broadcast %296 : vector<1x256xf32> to vector<4x256xf32>
    %298 = arith.addf %295, %297 : vector<4x256xf32>
    %299 = vector.extract_strided_slice %298 {offsets = [0, 0], sizes = [4, 128], strides = [1, 1]} : vector<4x256xf32> to vector<4x128xf32>
    %300 = vector.extract_strided_slice %298 {offsets = [0, 128], sizes = [4, 128], strides = [1, 1]} : vector<4x256xf32> to vector<4x128xf32>
    %301 = arith.select %8, %299, %300 : vector<4x128xi1>, vector<4x128xf32>
    %302 = math.tanh %301 : vector<4x128xf32>
    %303 = arith.negf %301 : vector<4x128xf32>
    %304 = math.exp %303 : vector<4x128xf32>
    %cst_234 = arith.constant 1.000000e+00 : f32
    %305 = vector.broadcast %cst_234 : f32 to vector<4x128xf32>
    %306 = arith.addf %305, %304 : vector<4x128xf32>
    %307 = arith.divf %305, %306 : vector<4x128xf32>
    %308 = arith.select %5, %302, %307 : vector<4x128xi1>, vector<4x128xf32>
    %309 = vector.extract_strided_slice %308 {offsets = [0, 0], sizes = [4, 32], strides = [1, 1]} : vector<4x128xf32> to vector<4x32xf32>
    %310 = vector.extract_strided_slice %308 {offsets = [0, 32], sizes = [4, 32], strides = [1, 1]} : vector<4x128xf32> to vector<4x32xf32>
    %311 = vector.extract_strided_slice %308 {offsets = [0, 64], sizes = [4, 32], strides = [1, 1]} : vector<4x128xf32> to vector<4x32xf32>
    %312 = vector.extract_strided_slice %308 {offsets = [0, 96], sizes = [4, 32], strides = [1, 1]} : vector<4x128xf32> to vector<4x32xf32>
    %c0_235 = arith.constant 0 : index
    %c0_236 = arith.constant 0 : index
    %313 = vector.load %arg15[%c0_235, %c0_236] : memref<4x32xf32, #tpu.memory_space<vmem>>, vector<4x32xf32>
    %314 = arith.mulf %310, %313 : vector<4x32xf32>
    %315 = arith.mulf %309, %311 : vector<4x32xf32>
    %316 = arith.addf %314, %315 : vector<4x32xf32>
    %317 = math.tanh %316 : vector<4x32xf32>
    %318 = arith.mulf %312, %317 : vector<4x32xf32>
    %c0_237 = arith.constant 0 : index
    %c0_238 = arith.constant 0 : index
    %319 = vector.load %arg14[%c0_237, %c0_238] : memref<4x32xf32, #tpu.memory_space<vmem>>, vector<4x32xf32>
    tpu.vector_store %arg14[%c0_237, %c0_238], %318 {strides = array<i32>} : memref<4x32xf32, #tpu.memory_space<vmem>>, vector<4x32xf32>,
    %c0_239 = arith.constant 0 : index
    %c0_240 = arith.constant 0 : index
    %320 = vector.load %arg15[%c0_239, %c0_240] : memref<4x32xf32, #tpu.memory_space<vmem>>, vector<4x32xf32>
    tpu.vector_store %arg15[%c0_239, %c0_240], %316 {strides = array<i32>} : memref<4x32xf32, #tpu.memory_space<vmem>>, vector<4x32xf32>,
    %321 = vector.extract_strided_slice %318 {offsets = [0, 0], sizes = [2, 32], strides = [1, 1]} : vector<4x32xf32> to vector<2x32xf32>
    %c6_241 = arith.constant 6 : index
    %c0_242 = arith.constant 0 : index
    %c0_243 = arith.constant 0 : index
    %322 = vector.load %arg12[%c6_241, %c0_242, %c0_243] : memref<8x2x64xf32, #tpu.memory_space<vmem>>, vector<1x2x32xf32>
    %323 = vector.shape_cast %322 : vector<1x2x32xf32> to vector<2x32xf32>
    %324 = vector.shape_cast %321 : vector<2x32xf32> to vector<1x2x32xf32>
    tpu.vector_store %arg12[%c6_241, %c0_242, %c0_243], %324 {strides = array<i32>} : memref<8x2x64xf32, #tpu.memory_space<vmem>>, vector<1x2x32xf32>,
    %325 = vector.extract_strided_slice %318 {offsets = [2, 0], sizes = [2, 32], strides = [1, 1]} : vector<4x32xf32> to vector<2x32xf32>
    %c1_244 = arith.constant 1 : index
    %c0_245 = arith.constant 0 : index
    %c32_246 = arith.constant 32 : index
    %326 = vector.load %arg12[%c1_244, %c0_245, %c32_246] : memref<8x2x64xf32, #tpu.memory_space<vmem>>, vector<1x2x32xf32>
    %327 = vector.shape_cast %326 : vector<1x2x32xf32> to vector<2x32xf32>
    %328 = vector.shape_cast %325 : vector<2x32xf32> to vector<1x2x32xf32>
    tpu.vector_store %arg12[%c1_244, %c0_245, %c32_246], %328 {strides = array<i32>} : memref<8x2x64xf32, #tpu.memory_space<vmem>>, vector<1x2x32xf32>,
    %c7_247 = arith.constant 7 : index
    %c0_248 = arith.constant 0 : index
    %c0_249 = arith.constant 0 : index
    %329 = vector.load %arg0[%c7_247, %c0_248, %c0_249] : memref<8x2x16xf32, #tpu.memory_space<vmem>>, vector<1x2x16xf32>
    %330 = vector.shape_cast %329 : vector<1x2x16xf32> to vector<2x16xf32>
    %c0_250 = arith.constant 0 : index
    %c0_251 = arith.constant 0 : index
    %331 = vector.load %arg16[%c0_250, %c0_251] : memref<4x96xf32, #tpu.memory_space<vmem>>, vector<2x16xf32>
    tpu.vector_store %arg16[%c0_250, %c0_251], %330 {strides = array<i32>} : memref<4x96xf32, #tpu.memory_space<vmem>>, vector<2x16xf32>,
    %c0_252 = arith.constant 0 : index
    %c0_253 = arith.constant 0 : index
    %c0_254 = arith.constant 0 : index
    %332 = vector.load %arg0[%c0_252, %c0_253, %c0_254] : memref<8x2x16xf32, #tpu.memory_space<vmem>>, vector<1x2x16xf32>
    %333 = vector.shape_cast %332 : vector<1x2x16xf32> to vector<2x16xf32>
    %c2_255 = arith.constant 2 : index
    %c0_256 = arith.constant 0 : index
    %334 = vector.load %arg16[%c2_255, %c0_256] : memref<4x96xf32, #tpu.memory_space<vmem>>, vector<2x16xf32>
    tpu.vector_store %arg16[%c2_255, %c0_256], %333 {strides = array<i32>} : memref<4x96xf32, #tpu.memory_space<vmem>>, vector<2x16xf32>,
    %c0_257 = arith.constant 0 : index
    %c0_258 = arith.constant 0 : index
    %335 = vector.load %arg14[%c0_257, %c0_258] : memref<4x32xf32, #tpu.memory_space<vmem>>, vector<4x32xf32>
    %c0_259 = arith.constant 0 : index
    %c16_260 = arith.constant 16 : index
    %336 = vector.load %arg16[%c0_259, %c16_260] : memref<4x96xf32, #tpu.memory_space<vmem>>, vector<4x32xf32>
    tpu.vector_store %arg16[%c0_259, %c16_260], %335 {strides = array<i32>} : memref<4x96xf32, #tpu.memory_space<vmem>>, vector<4x32xf32>,
    %c0_261 = arith.constant 0 : index
    %c0_262 = arith.constant 0 : index
    %337 = vector.load %arg16[%c0_261, %c0_262] : memref<4x96xf32, #tpu.memory_space<vmem>>, vector<4x48xf32>
    %c0_263 = arith.constant 0 : index
    %c0_264 = arith.constant 0 : index
    %338 = vector.load %arg1[%c0_263, %c0_264] : memref<48x256xf32, #tpu.memory_space<vmem>>, vector<48x256xf32>
    %cst_265 = arith.constant dense<0.000000e+00> : vector<4x256xf32>
    %339 = tpu.matmul %337, %338, %cst_265 {dimension_numbers = #tpu.dot_dimension_numbers<[1], [0], [0], [1], [0, 0, 1, 1], [], []>} : vector<4x48xf32>, vector<48x256xf32>, vector<4x256xf32> -> vector<4x256xf32>
    %c0_266 = arith.constant 0 : index
    %c0_267 = arith.constant 0 : index
    %340 = vector.load %arg2[%c0_266, %c0_267] : memref<1x256xf32, #tpu.memory_space<vmem>>, vector<1x256xf32>
    %341 = vector.broadcast %340 : vector<1x256xf32> to vector<4x256xf32>
    %342 = arith.addf %339, %341 : vector<4x256xf32>
    %343 = vector.extract_strided_slice %342 {offsets = [0, 0], sizes = [4, 128], strides = [1, 1]} : vector<4x256xf32> to vector<4x128xf32>
    %344 = vector.extract_strided_slice %342 {offsets = [0, 128], sizes = [4, 128], strides = [1, 1]} : vector<4x256xf32> to vector<4x128xf32>
    %345 = arith.select %8, %343, %344 : vector<4x128xi1>, vector<4x128xf32>
    %346 = math.tanh %345 : vector<4x128xf32>
    %347 = arith.negf %345 : vector<4x128xf32>
    %348 = math.exp %347 : vector<4x128xf32>
    %cst_268 = arith.constant 1.000000e+00 : f32
    %349 = vector.broadcast %cst_268 : f32 to vector<4x128xf32>
    %350 = arith.addf %349, %348 : vector<4x128xf32>
    %351 = arith.divf %349, %350 : vector<4x128xf32>
    %352 = arith.select %5, %346, %351 : vector<4x128xi1>, vector<4x128xf32>
    %353 = vector.extract_strided_slice %352 {offsets = [0, 0], sizes = [4, 32], strides = [1, 1]} : vector<4x128xf32> to vector<4x32xf32>
    %354 = vector.extract_strided_slice %352 {offsets = [0, 32], sizes = [4, 32], strides = [1, 1]} : vector<4x128xf32> to vector<4x32xf32>
    %355 = vector.extract_strided_slice %352 {offsets = [0, 64], sizes = [4, 32], strides = [1, 1]} : vector<4x128xf32> to vector<4x32xf32>
    %356 = vector.extract_strided_slice %352 {offsets = [0, 96], sizes = [4, 32], strides = [1, 1]} : vector<4x128xf32> to vector<4x32xf32>
    %c0_269 = arith.constant 0 : index
    %c0_270 = arith.constant 0 : index
    %357 = vector.load %arg15[%c0_269, %c0_270] : memref<4x32xf32, #tpu.memory_space<vmem>>, vector<4x32xf32>
    %358 = arith.mulf %354, %357 : vector<4x32xf32>
    %359 = arith.mulf %353, %355 : vector<4x32xf32>
    %360 = arith.addf %358, %359 : vector<4x32xf32>
    %361 = math.tanh %360 : vector<4x32xf32>
    %362 = arith.mulf %356, %361 : vector<4x32xf32>
    %c0_271 = arith.constant 0 : index
    %c0_272 = arith.constant 0 : index
    %363 = vector.load %arg14[%c0_271, %c0_272] : memref<4x32xf32, #tpu.memory_space<vmem>>, vector<4x32xf32>
    tpu.vector_store %arg14[%c0_271, %c0_272], %362 {strides = array<i32>} : memref<4x32xf32, #tpu.memory_space<vmem>>, vector<4x32xf32>,
    %c0_273 = arith.constant 0 : index
    %c0_274 = arith.constant 0 : index
    %364 = vector.load %arg15[%c0_273, %c0_274] : memref<4x32xf32, #tpu.memory_space<vmem>>, vector<4x32xf32>
    tpu.vector_store %arg15[%c0_273, %c0_274], %360 {strides = array<i32>} : memref<4x32xf32, #tpu.memory_space<vmem>>, vector<4x32xf32>,
    %365 = vector.extract_strided_slice %362 {offsets = [0, 0], sizes = [2, 32], strides = [1, 1]} : vector<4x32xf32> to vector<2x32xf32>
    %c7_275 = arith.constant 7 : index
    %c0_276 = arith.constant 0 : index
    %c0_277 = arith.constant 0 : index
    %366 = vector.load %arg12[%c7_275, %c0_276, %c0_277] : memref<8x2x64xf32, #tpu.memory_space<vmem>>, vector<1x2x32xf32>
    %367 = vector.shape_cast %366 : vector<1x2x32xf32> to vector<2x32xf32>
    %368 = vector.shape_cast %365 : vector<2x32xf32> to vector<1x2x32xf32>
    tpu.vector_store %arg12[%c7_275, %c0_276, %c0_277], %368 {strides = array<i32>} : memref<8x2x64xf32, #tpu.memory_space<vmem>>, vector<1x2x32xf32>,
    %369 = vector.extract_strided_slice %362 {offsets = [2, 0], sizes = [2, 32], strides = [1, 1]} : vector<4x32xf32> to vector<2x32xf32>
    %c0_278 = arith.constant 0 : index
    %c0_279 = arith.constant 0 : index
    %c32_280 = arith.constant 32 : index
    %370 = vector.load %arg12[%c0_278, %c0_279, %c32_280] : memref<8x2x64xf32, #tpu.memory_space<vmem>>, vector<1x2x32xf32>
    %371 = vector.shape_cast %370 : vector<1x2x32xf32> to vector<2x32xf32>
    %372 = vector.shape_cast %369 : vector<2x32xf32> to vector<1x2x32xf32>
    tpu.vector_store %arg12[%c0_278, %c0_279, %c32_280], %372 {strides = array<i32>} : memref<8x2x64xf32, #tpu.memory_space<vmem>>, vector<1x2x32xf32>,
    %c0_281 = arith.constant 0 : index
    %c0_282 = arith.constant 0 : index
    %373 = vector.load %arg14[%c0_281, %c0_282] : memref<4x32xf32, #tpu.memory_space<vmem>>, vector<2x32xf32>
    %c0_283 = arith.constant 0 : index
    %c0_284 = arith.constant 0 : index
    %c0_285 = arith.constant 0 : index
    %374 = vector.load %arg10[%c0_283, %c0_284, %c0_285] : memref<4x2x32xf32, #tpu.memory_space<vmem>>, vector<1x2x32xf32>
    %375 = vector.shape_cast %374 : vector<1x2x32xf32> to vector<2x32xf32>
    %376 = vector.shape_cast %373 : vector<2x32xf32> to vector<1x2x32xf32>
    tpu.vector_store %arg10[%c0_283, %c0_284, %c0_285], %376 {strides = array<i32>} : memref<4x2x32xf32, #tpu.memory_space<vmem>>, vector<1x2x32xf32>,
    %c2_286 = arith.constant 2 : index
    %c0_287 = arith.constant 0 : index
    %377 = vector.load %arg14[%c2_286, %c0_287] : memref<4x32xf32, #tpu.memory_space<vmem>>, vector<2x32xf32>
    %c1_288 = arith.constant 1 : index
    %c0_289 = arith.constant 0 : index
    %c0_290 = arith.constant 0 : index
    %378 = vector.load %arg10[%c1_288, %c0_289, %c0_290] : memref<4x2x32xf32, #tpu.memory_space<vmem>>, vector<1x2x32xf32>
    %379 = vector.shape_cast %378 : vector<1x2x32xf32> to vector<2x32xf32>
    %380 = vector.shape_cast %377 : vector<2x32xf32> to vector<1x2x32xf32>
    tpu.vector_store %arg10[%c1_288, %c0_289, %c0_290], %380 {strides = array<i32>} : memref<4x2x32xf32, #tpu.memory_space<vmem>>, vector<1x2x32xf32>,
    %c0_291 = arith.constant 0 : index
    %c0_292 = arith.constant 0 : index
    %381 = vector.load %arg15[%c0_291, %c0_292] : memref<4x32xf32, #tpu.memory_space<vmem>>, vector<2x32xf32>
    %c0_293 = arith.constant 0 : index
    %c0_294 = arith.constant 0 : index
    %c0_295 = arith.constant 0 : index
    %382 = vector.load %arg11[%c0_293, %c0_294, %c0_295] : memref<4x2x32xf32, #tpu.memory_space<vmem>>, vector<1x2x32xf32>
    %383 = vector.shape_cast %382 : vector<1x2x32xf32> to vector<2x32xf32>
    %384 = vector.shape_cast %381 : vector<2x32xf32> to vector<1x2x32xf32>
    tpu.vector_store %arg11[%c0_293, %c0_294, %c0_295], %384 {strides = array<i32>} : memref<4x2x32xf32, #tpu.memory_space<vmem>>, vector<1x2x32xf32>,
    %c2_296 = arith.constant 2 : index
    %c0_297 = arith.constant 0 : index
    %385 = vector.load %arg15[%c2_296, %c0_297] : memref<4x32xf32, #tpu.memory_space<vmem>>, vector<2x32xf32>
    %c1_298 = arith.constant 1 : index
    %c0_299 = arith.constant 0 : index
    %c0_300 = arith.constant 0 : index
    %386 = vector.load %arg11[%c1_298, %c0_299, %c0_300] : memref<4x2x32xf32, #tpu.memory_space<vmem>>, vector<1x2x32xf32>
    %387 = vector.shape_cast %386 : vector<1x2x32xf32> to vector<2x32xf32>
    %388 = vector.shape_cast %385 : vector<2x32xf32> to vector<1x2x32xf32>
    tpu.vector_store %arg11[%c1_298, %c0_299, %c0_300], %388 {strides = array<i32>} : memref<4x2x32xf32, #tpu.memory_space<vmem>>, vector<1x2x32xf32>,
    %c2_301 = arith.constant 2 : index
    %c0_302 = arith.constant 0 : index
    %c0_303 = arith.constant 0 : index
    %389 = vector.load %arg5[%c2_301, %c0_302, %c0_303] : memref<4x2x32xf32, #tpu.memory_space<vmem>>, vector<1x2x32xf32>
    %390 = vector.shape_cast %389 : vector<1x2x32xf32> to vector<2x32xf32>
    %c0_304 = arith.constant 0 : index
    %c0_305 = arith.constant 0 : index
    %391 = vector.load %arg14[%c0_304, %c0_305] : memref<4x32xf32, #tpu.memory_space<vmem>>, vector<2x32xf32>
    tpu.vector_store %arg14[%c0_304, %c0_305], %390 {strides = array<i32>} : memref<4x32xf32, #tpu.memory_space<vmem>>, vector<2x32xf32>,
    %c3_306 = arith.constant 3 : index
    %c0_307 = arith.constant 0 : index
    %c0_308 = arith.constant 0 : index
    %392 = vector.load %arg5[%c3_306, %c0_307, %c0_308] : memref<4x2x32xf32, #tpu.memory_space<vmem>>, vector<1x2x32xf32>
    %393 = vector.shape_cast %392 : vector<1x2x32xf32> to vector<2x32xf32>
    %c2_309 = arith.constant 2 : index
    %c0_310 = arith.constant 0 : index
    %394 = vector.load %arg14[%c2_309, %c0_310] : memref<4x32xf32, #tpu.memory_space<vmem>>, vector<2x32xf32>
    tpu.vector_store %arg14[%c2_309, %c0_310], %393 {strides = array<i32>} : memref<4x32xf32, #tpu.memory_space<vmem>>, vector<2x32xf32>,
    %c2_311 = arith.constant 2 : index
    %c0_312 = arith.constant 0 : index
    %c0_313 = arith.constant 0 : index
    %395 = vector.load %arg6[%c2_311, %c0_312, %c0_313] : memref<4x2x32xf32, #tpu.memory_space<vmem>>, vector<1x2x32xf32>
    %396 = vector.shape_cast %395 : vector<1x2x32xf32> to vector<2x32xf32>
    %c0_314 = arith.constant 0 : index
    %c0_315 = arith.constant 0 : index
    %397 = vector.load %arg15[%c0_314, %c0_315] : memref<4x32xf32, #tpu.memory_space<vmem>>, vector<2x32xf32>
    tpu.vector_store %arg15[%c0_314, %c0_315], %396 {strides = array<i32>} : memref<4x32xf32, #tpu.memory_space<vmem>>, vector<2x32xf32>,
    %c3_316 = arith.constant 3 : index
    %c0_317 = arith.constant 0 : index
    %c0_318 = arith.constant 0 : index
    %398 = vector.load %arg6[%c3_316, %c0_317, %c0_318] : memref<4x2x32xf32, #tpu.memory_space<vmem>>, vector<1x2x32xf32>
    %399 = vector.shape_cast %398 : vector<1x2x32xf32> to vector<2x32xf32>
    %c2_319 = arith.constant 2 : index
    %c0_320 = arith.constant 0 : index
    %400 = vector.load %arg15[%c2_319, %c0_320] : memref<4x32xf32, #tpu.memory_space<vmem>>, vector<2x32xf32>
    tpu.vector_store %arg15[%c2_319, %c0_320], %399 {strides = array<i32>} : memref<4x32xf32, #tpu.memory_space<vmem>>, vector<2x32xf32>,
    %c0_321 = arith.constant 0 : index
    %c0_322 = arith.constant 0 : index
    %c0_323 = arith.constant 0 : index
    %401 = vector.load %arg12[%c0_321, %c0_322, %c0_323] : memref<8x2x64xf32, #tpu.memory_space<vmem>>, vector<1x2x64xf32>
    %402 = vector.shape_cast %401 : vector<1x2x64xf32> to vector<2x64xf32>
    %c0_324 = arith.constant 0 : index
    %c0_325 = arith.constant 0 : index
    %403 = vector.load %arg16[%c0_324, %c0_325] : memref<4x96xf32, #tpu.memory_space<vmem>>, vector<2x64xf32>
    tpu.vector_store %arg16[%c0_324, %c0_325], %402 {strides = array<i32>} : memref<4x96xf32, #tpu.memory_space<vmem>>, vector<2x64xf32>,
    %c7_326 = arith.constant 7 : index
    %c0_327 = arith.constant 0 : index
    %c0_328 = arith.constant 0 : index
    %404 = vector.load %arg12[%c7_326, %c0_327, %c0_328] : memref<8x2x64xf32, #tpu.memory_space<vmem>>, vector<1x2x64xf32>
    %405 = vector.shape_cast %404 : vector<1x2x64xf32> to vector<2x64xf32>
    %c2_329 = arith.constant 2 : index
    %c0_330 = arith.constant 0 : index
    %406 = vector.load %arg16[%c2_329, %c0_330] : memref<4x96xf32, #tpu.memory_space<vmem>>, vector<2x64xf32>
    tpu.vector_store %arg16[%c2_329, %c0_330], %405 {strides = array<i32>} : memref<4x96xf32, #tpu.memory_space<vmem>>, vector<2x64xf32>,
    %c0_331 = arith.constant 0 : index
    %c0_332 = arith.constant 0 : index
    %407 = vector.load %arg14[%c0_331, %c0_332] : memref<4x32xf32, #tpu.memory_space<vmem>>, vector<4x32xf32>
    %c0_333 = arith.constant 0 : index
    %c64 = arith.constant 64 : index
    %408 = vector.load %arg16[%c0_333, %c64] : memref<4x96xf32, #tpu.memory_space<vmem>>, vector<4x32xf32>
    tpu.vector_store %arg16[%c0_333, %c64], %407 {strides = array<i32>} : memref<4x96xf32, #tpu.memory_space<vmem>>, vector<4x32xf32>,
    %c0_334 = arith.constant 0 : index
    %c0_335 = arith.constant 0 : index
    %409 = vector.load %arg16[%c0_334, %c0_335] : memref<4x96xf32, #tpu.memory_space<vmem>>, vector<4x96xf32>
    %c0_336 = arith.constant 0 : index
    %c0_337 = arith.constant 0 : index
    %410 = vector.load %arg3[%c0_336, %c0_337] : memref<96x256xf32, #tpu.memory_space<vmem>>, vector<96x256xf32>
    %cst_338 = arith.constant dense<0.000000e+00> : vector<4x256xf32>
    %411 = tpu.matmul %409, %410, %cst_338 {dimension_numbers = #tpu.dot_dimension_numbers<[1], [0], [0], [1], [0, 0, 1, 1], [], []>} : vector<4x96xf32>, vector<96x256xf32>, vector<4x256xf32> -> vector<4x256xf32>
    %c0_339 = arith.constant 0 : index
    %c0_340 = arith.constant 0 : index
    %412 = vector.load %arg4[%c0_339, %c0_340] : memref<1x256xf32, #tpu.memory_space<vmem>>, vector<1x256xf32>
    %413 = vector.broadcast %412 : vector<1x256xf32> to vector<4x256xf32>
    %414 = arith.addf %411, %413 : vector<4x256xf32>
    %415 = vector.extract_strided_slice %414 {offsets = [0, 0], sizes = [4, 128], strides = [1, 1]} : vector<4x256xf32> to vector<4x128xf32>
    %416 = vector.extract_strided_slice %414 {offsets = [0, 128], sizes = [4, 128], strides = [1, 1]} : vector<4x256xf32> to vector<4x128xf32>
    %417 = arith.select %8, %415, %416 : vector<4x128xi1>, vector<4x128xf32>
    %418 = math.tanh %417 : vector<4x128xf32>
    %419 = arith.negf %417 : vector<4x128xf32>
    %420 = math.exp %419 : vector<4x128xf32>
    %cst_341 = arith.constant 1.000000e+00 : f32
    %421 = vector.broadcast %cst_341 : f32 to vector<4x128xf32>
    %422 = arith.addf %421, %420 : vector<4x128xf32>
    %423 = arith.divf %421, %422 : vector<4x128xf32>
    %424 = arith.select %5, %418, %423 : vector<4x128xi1>, vector<4x128xf32>
    %425 = vector.extract_strided_slice %424 {offsets = [0, 0], sizes = [4, 32], strides = [1, 1]} : vector<4x128xf32> to vector<4x32xf32>
    %426 = vector.extract_strided_slice %424 {offsets = [0, 32], sizes = [4, 32], strides = [1, 1]} : vector<4x128xf32> to vector<4x32xf32>
    %427 = vector.extract_strided_slice %424 {offsets = [0, 64], sizes = [4, 32], strides = [1, 1]} : vector<4x128xf32> to vector<4x32xf32>
    %428 = vector.extract_strided_slice %424 {offsets = [0, 96], sizes = [4, 32], strides = [1, 1]} : vector<4x128xf32> to vector<4x32xf32>
    %c0_342 = arith.constant 0 : index
    %c0_343 = arith.constant 0 : index
    %429 = vector.load %arg15[%c0_342, %c0_343] : memref<4x32xf32, #tpu.memory_space<vmem>>, vector<4x32xf32>
    %430 = arith.mulf %426, %429 : vector<4x32xf32>
    %431 = arith.mulf %425, %427 : vector<4x32xf32>
    %432 = arith.addf %430, %431 : vector<4x32xf32>
    %433 = math.tanh %432 : vector<4x32xf32>
    %434 = arith.mulf %428, %433 : vector<4x32xf32>
    %c0_344 = arith.constant 0 : index
    %c0_345 = arith.constant 0 : index
    %435 = vector.load %arg14[%c0_344, %c0_345] : memref<4x32xf32, #tpu.memory_space<vmem>>, vector<4x32xf32>
    tpu.vector_store %arg14[%c0_344, %c0_345], %434 {strides = array<i32>} : memref<4x32xf32, #tpu.memory_space<vmem>>, vector<4x32xf32>,
    %c0_346 = arith.constant 0 : index
    %c0_347 = arith.constant 0 : index
    %436 = vector.load %arg15[%c0_346, %c0_347] : memref<4x32xf32, #tpu.memory_space<vmem>>, vector<4x32xf32>
    tpu.vector_store %arg15[%c0_346, %c0_347], %432 {strides = array<i32>} : memref<4x32xf32, #tpu.memory_space<vmem>>, vector<4x32xf32>,
    %437 = vector.extract_strided_slice %434 {offsets = [0, 0], sizes = [2, 32], strides = [1, 1]} : vector<4x32xf32> to vector<2x32xf32>
    %c0_348 = arith.constant 0 : index
    %c0_349 = arith.constant 0 : index
    %c0_350 = arith.constant 0 : index
    %438 = vector.load %arg13[%c0_348, %c0_349, %c0_350] : memref<8x2x64xf32, #tpu.memory_space<vmem>>, vector<1x2x32xf32>
    %439 = vector.shape_cast %438 : vector<1x2x32xf32> to vector<2x32xf32>
    %440 = vector.shape_cast %437 : vector<2x32xf32> to vector<1x2x32xf32>
    tpu.vector_store %arg13[%c0_348, %c0_349, %c0_350], %440 {strides = array<i32>} : memref<8x2x64xf32, #tpu.memory_space<vmem>>, vector<1x2x32xf32>,
    %441 = vector.extract_strided_slice %434 {offsets = [2, 0], sizes = [2, 32], strides = [1, 1]} : vector<4x32xf32> to vector<2x32xf32>
    %c7_351 = arith.constant 7 : index
    %c0_352 = arith.constant 0 : index
    %c32_353 = arith.constant 32 : index
    %442 = vector.load %arg13[%c7_351, %c0_352, %c32_353] : memref<8x2x64xf32, #tpu.memory_space<vmem>>, vector<1x2x32xf32>
    %443 = vector.shape_cast %442 : vector<1x2x32xf32> to vector<2x32xf32>
    %444 = vector.shape_cast %441 : vector<2x32xf32> to vector<1x2x32xf32>
    tpu.vector_store %arg13[%c7_351, %c0_352, %c32_353], %444 {strides = array<i32>} : memref<8x2x64xf32, #tpu.memory_space<vmem>>, vector<1x2x32xf32>,
    %c1_354 = arith.constant 1 : index
    %c0_355 = arith.constant 0 : index
    %c0_356 = arith.constant 0 : index
    %445 = vector.load %arg12[%c1_354, %c0_355, %c0_356] : memref<8x2x64xf32, #tpu.memory_space<vmem>>, vector<1x2x64xf32>
    %446 = vector.shape_cast %445 : vector<1x2x64xf32> to vector<2x64xf32>
    %c0_357 = arith.constant 0 : index
    %c0_358 = arith.constant 0 : index
    %447 = vector.load %arg16[%c0_357, %c0_358] : memref<4x96xf32, #tpu.memory_space<vmem>>, vector<2x64xf32>
    tpu.vector_store %arg16[%c0_357, %c0_358], %446 {strides = array<i32>} : memref<4x96xf32, #tpu.memory_space<vmem>>, vector<2x64xf32>,
    %c6_359 = arith.constant 6 : index
    %c0_360 = arith.constant 0 : index
    %c0_361 = arith.constant 0 : index
    %448 = vector.load %arg12[%c6_359, %c0_360, %c0_361] : memref<8x2x64xf32, #tpu.memory_space<vmem>>, vector<1x2x64xf32>
    %449 = vector.shape_cast %448 : vector<1x2x64xf32> to vector<2x64xf32>
    %c2_362 = arith.constant 2 : index
    %c0_363 = arith.constant 0 : index
    %450 = vector.load %arg16[%c2_362, %c0_363] : memref<4x96xf32, #tpu.memory_space<vmem>>, vector<2x64xf32>
    tpu.vector_store %arg16[%c2_362, %c0_363], %449 {strides = array<i32>} : memref<4x96xf32, #tpu.memory_space<vmem>>, vector<2x64xf32>,
    %c0_364 = arith.constant 0 : index
    %c0_365 = arith.constant 0 : index
    %451 = vector.load %arg14[%c0_364, %c0_365] : memref<4x32xf32, #tpu.memory_space<vmem>>, vector<4x32xf32>
    %c0_366 = arith.constant 0 : index
    %c64_367 = arith.constant 64 : index
    %452 = vector.load %arg16[%c0_366, %c64_367] : memref<4x96xf32, #tpu.memory_space<vmem>>, vector<4x32xf32>
    tpu.vector_store %arg16[%c0_366, %c64_367], %451 {strides = array<i32>} : memref<4x96xf32, #tpu.memory_space<vmem>>, vector<4x32xf32>,
    %c0_368 = arith.constant 0 : index
    %c0_369 = arith.constant 0 : index
    %453 = vector.load %arg16[%c0_368, %c0_369] : memref<4x96xf32, #tpu.memory_space<vmem>>, vector<4x96xf32>
    %c0_370 = arith.constant 0 : index
    %c0_371 = arith.constant 0 : index
    %454 = vector.load %arg3[%c0_370, %c0_371] : memref<96x256xf32, #tpu.memory_space<vmem>>, vector<96x256xf32>
    %cst_372 = arith.constant dense<0.000000e+00> : vector<4x256xf32>
    %455 = tpu.matmul %453, %454, %cst_372 {dimension_numbers = #tpu.dot_dimension_numbers<[1], [0], [0], [1], [0, 0, 1, 1], [], []>} : vector<4x96xf32>, vector<96x256xf32>, vector<4x256xf32> -> vector<4x256xf32>
    %c0_373 = arith.constant 0 : index
    %c0_374 = arith.constant 0 : index
    %456 = vector.load %arg4[%c0_373, %c0_374] : memref<1x256xf32, #tpu.memory_space<vmem>>, vector<1x256xf32>
    %457 = vector.broadcast %456 : vector<1x256xf32> to vector<4x256xf32>
    %458 = arith.addf %455, %457 : vector<4x256xf32>
    %459 = vector.extract_strided_slice %458 {offsets = [0, 0], sizes = [4, 128], strides = [1, 1]} : vector<4x256xf32> to vector<4x128xf32>
    %460 = vector.extract_strided_slice %458 {offsets = [0, 128], sizes = [4, 128], strides = [1, 1]} : vector<4x256xf32> to vector<4x128xf32>
    %461 = arith.select %8, %459, %460 : vector<4x128xi1>, vector<4x128xf32>
    %462 = math.tanh %461 : vector<4x128xf32>
    %463 = arith.negf %461 : vector<4x128xf32>
    %464 = math.exp %463 : vector<4x128xf32>
    %cst_375 = arith.constant 1.000000e+00 : f32
    %465 = vector.broadcast %cst_375 : f32 to vector<4x128xf32>
    %466 = arith.addf %465, %464 : vector<4x128xf32>
    %467 = arith.divf %465, %466 : vector<4x128xf32>
    %468 = arith.select %5, %462, %467 : vector<4x128xi1>, vector<4x128xf32>
    %469 = vector.extract_strided_slice %468 {offsets = [0, 0], sizes = [4, 32], strides = [1, 1]} : vector<4x128xf32> to vector<4x32xf32>
    %470 = vector.extract_strided_slice %468 {offsets = [0, 32], sizes = [4, 32], strides = [1, 1]} : vector<4x128xf32> to vector<4x32xf32>
    %471 = vector.extract_strided_slice %468 {offsets = [0, 64], sizes = [4, 32], strides = [1, 1]} : vector<4x128xf32> to vector<4x32xf32>
    %472 = vector.extract_strided_slice %468 {offsets = [0, 96], sizes = [4, 32], strides = [1, 1]} : vector<4x128xf32> to vector<4x32xf32>
    %c0_376 = arith.constant 0 : index
    %c0_377 = arith.constant 0 : index
    %473 = vector.load %arg15[%c0_376, %c0_377] : memref<4x32xf32, #tpu.memory_space<vmem>>, vector<4x32xf32>
    %474 = arith.mulf %470, %473 : vector<4x32xf32>
    %475 = arith.mulf %469, %471 : vector<4x32xf32>
    %476 = arith.addf %474, %475 : vector<4x32xf32>
    %477 = math.tanh %476 : vector<4x32xf32>
    %478 = arith.mulf %472, %477 : vector<4x32xf32>
    %c0_378 = arith.constant 0 : index
    %c0_379 = arith.constant 0 : index
    %479 = vector.load %arg14[%c0_378, %c0_379] : memref<4x32xf32, #tpu.memory_space<vmem>>, vector<4x32xf32>
    tpu.vector_store %arg14[%c0_378, %c0_379], %478 {strides = array<i32>} : memref<4x32xf32, #tpu.memory_space<vmem>>, vector<4x32xf32>,
    %c0_380 = arith.constant 0 : index
    %c0_381 = arith.constant 0 : index
    %480 = vector.load %arg15[%c0_380, %c0_381] : memref<4x32xf32, #tpu.memory_space<vmem>>, vector<4x32xf32>
    tpu.vector_store %arg15[%c0_380, %c0_381], %476 {strides = array<i32>} : memref<4x32xf32, #tpu.memory_space<vmem>>, vector<4x32xf32>,
    %481 = vector.extract_strided_slice %478 {offsets = [0, 0], sizes = [2, 32], strides = [1, 1]} : vector<4x32xf32> to vector<2x32xf32>
    %c1_382 = arith.constant 1 : index
    %c0_383 = arith.constant 0 : index
    %c0_384 = arith.constant 0 : index
    %482 = vector.load %arg13[%c1_382, %c0_383, %c0_384] : memref<8x2x64xf32, #tpu.memory_space<vmem>>, vector<1x2x32xf32>
    %483 = vector.shape_cast %482 : vector<1x2x32xf32> to vector<2x32xf32>
    %484 = vector.shape_cast %481 : vector<2x32xf32> to vector<1x2x32xf32>
    tpu.vector_store %arg13[%c1_382, %c0_383, %c0_384], %484 {strides = array<i32>} : memref<8x2x64xf32, #tpu.memory_space<vmem>>, vector<1x2x32xf32>,
    %485 = vector.extract_strided_slice %478 {offsets = [2, 0], sizes = [2, 32], strides = [1, 1]} : vector<4x32xf32> to vector<2x32xf32>
    %c6_385 = arith.constant 6 : index
    %c0_386 = arith.constant 0 : index
    %c32_387 = arith.constant 32 : index
    %486 = vector.load %arg13[%c6_385, %c0_386, %c32_387] : memref<8x2x64xf32, #tpu.memory_space<vmem>>, vector<1x2x32xf32>
    %487 = vector.shape_cast %486 : vector<1x2x32xf32> to vector<2x32xf32>
    %488 = vector.shape_cast %485 : vector<2x32xf32> to vector<1x2x32xf32>
    tpu.vector_store %arg13[%c6_385, %c0_386, %c32_387], %488 {strides = array<i32>} : memref<8x2x64xf32, #tpu.memory_space<vmem>>, vector<1x2x32xf32>,
    %c2_388 = arith.constant 2 : index
    %c0_389 = arith.constant 0 : index
    %c0_390 = arith.constant 0 : index
    %489 = vector.load %arg12[%c2_388, %c0_389, %c0_390] : memref<8x2x64xf32, #tpu.memory_space<vmem>>, vector<1x2x64xf32>
    %490 = vector.shape_cast %489 : vector<1x2x64xf32> to vector<2x64xf32>
    %c0_391 = arith.constant 0 : index
    %c0_392 = arith.constant 0 : index
    %491 = vector.load %arg16[%c0_391, %c0_392] : memref<4x96xf32, #tpu.memory_space<vmem>>, vector<2x64xf32>
    tpu.vector_store %arg16[%c0_391, %c0_392], %490 {strides = array<i32>} : memref<4x96xf32, #tpu.memory_space<vmem>>, vector<2x64xf32>,
    %c5_393 = arith.constant 5 : index
    %c0_394 = arith.constant 0 : index
    %c0_395 = arith.constant 0 : index
    %492 = vector.load %arg12[%c5_393, %c0_394, %c0_395] : memref<8x2x64xf32, #tpu.memory_space<vmem>>, vector<1x2x64xf32>
    %493 = vector.shape_cast %492 : vector<1x2x64xf32> to vector<2x64xf32>
    %c2_396 = arith.constant 2 : index
    %c0_397 = arith.constant 0 : index
    %494 = vector.load %arg16[%c2_396, %c0_397] : memref<4x96xf32, #tpu.memory_space<vmem>>, vector<2x64xf32>
    tpu.vector_store %arg16[%c2_396, %c0_397], %493 {strides = array<i32>} : memref<4x96xf32, #tpu.memory_space<vmem>>, vector<2x64xf32>,
    %c0_398 = arith.constant 0 : index
    %c0_399 = arith.constant 0 : index
    %495 = vector.load %arg14[%c0_398, %c0_399] : memref<4x32xf32, #tpu.memory_space<vmem>>, vector<4x32xf32>
    %c0_400 = arith.constant 0 : index
    %c64_401 = arith.constant 64 : index
    %496 = vector.load %arg16[%c0_400, %c64_401] : memref<4x96xf32, #tpu.memory_space<vmem>>, vector<4x32xf32>
    tpu.vector_store %arg16[%c0_400, %c64_401], %495 {strides = array<i32>} : memref<4x96xf32, #tpu.memory_space<vmem>>, vector<4x32xf32>,
    %c0_402 = arith.constant 0 : index
    %c0_403 = arith.constant 0 : index
    %497 = vector.load %arg16[%c0_402, %c0_403] : memref<4x96xf32, #tpu.memory_space<vmem>>, vector<4x96xf32>
    %c0_404 = arith.constant 0 : index
    %c0_405 = arith.constant 0 : index
    %498 = vector.load %arg3[%c0_404, %c0_405] : memref<96x256xf32, #tpu.memory_space<vmem>>, vector<96x256xf32>
    %cst_406 = arith.constant dense<0.000000e+00> : vector<4x256xf32>
    %499 = tpu.matmul %497, %498, %cst_406 {dimension_numbers = #tpu.dot_dimension_numbers<[1], [0], [0], [1], [0, 0, 1, 1], [], []>} : vector<4x96xf32>, vector<96x256xf32>, vector<4x256xf32> -> vector<4x256xf32>
    %c0_407 = arith.constant 0 : index
    %c0_408 = arith.constant 0 : index
    %500 = vector.load %arg4[%c0_407, %c0_408] : memref<1x256xf32, #tpu.memory_space<vmem>>, vector<1x256xf32>
    %501 = vector.broadcast %500 : vector<1x256xf32> to vector<4x256xf32>
    %502 = arith.addf %499, %501 : vector<4x256xf32>
    %503 = vector.extract_strided_slice %502 {offsets = [0, 0], sizes = [4, 128], strides = [1, 1]} : vector<4x256xf32> to vector<4x128xf32>
    %504 = vector.extract_strided_slice %502 {offsets = [0, 128], sizes = [4, 128], strides = [1, 1]} : vector<4x256xf32> to vector<4x128xf32>
    %505 = arith.select %8, %503, %504 : vector<4x128xi1>, vector<4x128xf32>
    %506 = math.tanh %505 : vector<4x128xf32>
    %507 = arith.negf %505 : vector<4x128xf32>
    %508 = math.exp %507 : vector<4x128xf32>
    %cst_409 = arith.constant 1.000000e+00 : f32
    %509 = vector.broadcast %cst_409 : f32 to vector<4x128xf32>
    %510 = arith.addf %509, %508 : vector<4x128xf32>
    %511 = arith.divf %509, %510 : vector<4x128xf32>
    %512 = arith.select %5, %506, %511 : vector<4x128xi1>, vector<4x128xf32>
    %513 = vector.extract_strided_slice %512 {offsets = [0, 0], sizes = [4, 32], strides = [1, 1]} : vector<4x128xf32> to vector<4x32xf32>
    %514 = vector.extract_strided_slice %512 {offsets = [0, 32], sizes = [4, 32], strides = [1, 1]} : vector<4x128xf32> to vector<4x32xf32>
    %515 = vector.extract_strided_slice %512 {offsets = [0, 64], sizes = [4, 32], strides = [1, 1]} : vector<4x128xf32> to vector<4x32xf32>
    %516 = vector.extract_strided_slice %512 {offsets = [0, 96], sizes = [4, 32], strides = [1, 1]} : vector<4x128xf32> to vector<4x32xf32>
    %c0_410 = arith.constant 0 : index
    %c0_411 = arith.constant 0 : index
    %517 = vector.load %arg15[%c0_410, %c0_411] : memref<4x32xf32, #tpu.memory_space<vmem>>, vector<4x32xf32>
    %518 = arith.mulf %514, %517 : vector<4x32xf32>
    %519 = arith.mulf %513, %515 : vector<4x32xf32>
    %520 = arith.addf %518, %519 : vector<4x32xf32>
    %521 = math.tanh %520 : vector<4x32xf32>
    %522 = arith.mulf %516, %521 : vector<4x32xf32>
    %c0_412 = arith.constant 0 : index
    %c0_413 = arith.constant 0 : index
    %523 = vector.load %arg14[%c0_412, %c0_413] : memref<4x32xf32, #tpu.memory_space<vmem>>, vector<4x32xf32>
    tpu.vector_store %arg14[%c0_412, %c0_413], %522 {strides = array<i32>} : memref<4x32xf32, #tpu.memory_space<vmem>>, vector<4x32xf32>,
    %c0_414 = arith.constant 0 : index
    %c0_415 = arith.constant 0 : index
    %524 = vector.load %arg15[%c0_414, %c0_415] : memref<4x32xf32, #tpu.memory_space<vmem>>, vector<4x32xf32>
    tpu.vector_store %arg15[%c0_414, %c0_415], %520 {strides = array<i32>} : memref<4x32xf32, #tpu.memory_space<vmem>>, vector<4x32xf32>,
    %525 = vector.extract_strided_slice %522 {offsets = [0, 0], sizes = [2, 32], strides = [1, 1]} : vector<4x32xf32> to vector<2x32xf32>
    %c2_416 = arith.constant 2 : index
    %c0_417 = arith.constant 0 : index
    %c0_418 = arith.constant 0 : index
    %526 = vector.load %arg13[%c2_416, %c0_417, %c0_418] : memref<8x2x64xf32, #tpu.memory_space<vmem>>, vector<1x2x32xf32>
    %527 = vector.shape_cast %526 : vector<1x2x32xf32> to vector<2x32xf32>
    %528 = vector.shape_cast %525 : vector<2x32xf32> to vector<1x2x32xf32>
    tpu.vector_store %arg13[%c2_416, %c0_417, %c0_418], %528 {strides = array<i32>} : memref<8x2x64xf32, #tpu.memory_space<vmem>>, vector<1x2x32xf32>,
    %529 = vector.extract_strided_slice %522 {offsets = [2, 0], sizes = [2, 32], strides = [1, 1]} : vector<4x32xf32> to vector<2x32xf32>
    %c5_419 = arith.constant 5 : index
    %c0_420 = arith.constant 0 : index
    %c32_421 = arith.constant 32 : index
    %530 = vector.load %arg13[%c5_419, %c0_420, %c32_421] : memref<8x2x64xf32, #tpu.memory_space<vmem>>, vector<1x2x32xf32>
    %531 = vector.shape_cast %530 : vector<1x2x32xf32> to vector<2x32xf32>
    %532 = vector.shape_cast %529 : vector<2x32xf32> to vector<1x2x32xf32>
    tpu.vector_store %arg13[%c5_419, %c0_420, %c32_421], %532 {strides = array<i32>} : memref<8x2x64xf32, #tpu.memory_space<vmem>>, vector<1x2x32xf32>,
    %c3_422 = arith.constant 3 : index
    %c0_423 = arith.constant 0 : index
    %c0_424 = arith.constant 0 : index
    %533 = vector.load %arg12[%c3_422, %c0_423, %c0_424] : memref<8x2x64xf32, #tpu.memory_space<vmem>>, vector<1x2x64xf32>
    %534 = vector.shape_cast %533 : vector<1x2x64xf32> to vector<2x64xf32>
    %c0_425 = arith.constant 0 : index
    %c0_426 = arith.constant 0 : index
    %535 = vector.load %arg16[%c0_425, %c0_426] : memref<4x96xf32, #tpu.memory_space<vmem>>, vector<2x64xf32>
    tpu.vector_store %arg16[%c0_425, %c0_426], %534 {strides = array<i32>} : memref<4x96xf32, #tpu.memory_space<vmem>>, vector<2x64xf32>,
    %c4_427 = arith.constant 4 : index
    %c0_428 = arith.constant 0 : index
    %c0_429 = arith.constant 0 : index
    %536 = vector.load %arg12[%c4_427, %c0_428, %c0_429] : memref<8x2x64xf32, #tpu.memory_space<vmem>>, vector<1x2x64xf32>
    %537 = vector.shape_cast %536 : vector<1x2x64xf32> to vector<2x64xf32>
    %c2_430 = arith.constant 2 : index
    %c0_431 = arith.constant 0 : index
    %538 = vector.load %arg16[%c2_430, %c0_431] : memref<4x96xf32, #tpu.memory_space<vmem>>, vector<2x64xf32>
    tpu.vector_store %arg16[%c2_430, %c0_431], %537 {strides = array<i32>} : memref<4x96xf32, #tpu.memory_space<vmem>>, vector<2x64xf32>,
    %c0_432 = arith.constant 0 : index
    %c0_433 = arith.constant 0 : index
    %539 = vector.load %arg14[%c0_432, %c0_433] : memref<4x32xf32, #tpu.memory_space<vmem>>, vector<4x32xf32>
    %c0_434 = arith.constant 0 : index
    %c64_435 = arith.constant 64 : index
    %540 = vector.load %arg16[%c0_434, %c64_435] : memref<4x96xf32, #tpu.memory_space<vmem>>, vector<4x32xf32>
    tpu.vector_store %arg16[%c0_434, %c64_435], %539 {strides = array<i32>} : memref<4x96xf32, #tpu.memory_space<vmem>>, vector<4x32xf32>,
    %c0_436 = arith.constant 0 : index
    %c0_437 = arith.constant 0 : index
    %541 = vector.load %arg16[%c0_436, %c0_437] : memref<4x96xf32, #tpu.memory_space<vmem>>, vector<4x96xf32>
    %c0_438 = arith.constant 0 : index
    %c0_439 = arith.constant 0 : index
    %542 = vector.load %arg3[%c0_438, %c0_439] : memref<96x256xf32, #tpu.memory_space<vmem>>, vector<96x256xf32>
    %cst_440 = arith.constant dense<0.000000e+00> : vector<4x256xf32>
    %543 = tpu.matmul %541, %542, %cst_440 {dimension_numbers = #tpu.dot_dimension_numbers<[1], [0], [0], [1], [0, 0, 1, 1], [], []>} : vector<4x96xf32>, vector<96x256xf32>, vector<4x256xf32> -> vector<4x256xf32>
    %c0_441 = arith.constant 0 : index
    %c0_442 = arith.constant 0 : index
    %544 = vector.load %arg4[%c0_441, %c0_442] : memref<1x256xf32, #tpu.memory_space<vmem>>, vector<1x256xf32>
    %545 = vector.broadcast %544 : vector<1x256xf32> to vector<4x256xf32>
    %546 = arith.addf %543, %545 : vector<4x256xf32>
    %547 = vector.extract_strided_slice %546 {offsets = [0, 0], sizes = [4, 128], strides = [1, 1]} : vector<4x256xf32> to vector<4x128xf32>
    %548 = vector.extract_strided_slice %546 {offsets = [0, 128], sizes = [4, 128], strides = [1, 1]} : vector<4x256xf32> to vector<4x128xf32>
    %549 = arith.select %8, %547, %548 : vector<4x128xi1>, vector<4x128xf32>
    %550 = math.tanh %549 : vector<4x128xf32>
    %551 = arith.negf %549 : vector<4x128xf32>
    %552 = math.exp %551 : vector<4x128xf32>
    %cst_443 = arith.constant 1.000000e+00 : f32
    %553 = vector.broadcast %cst_443 : f32 to vector<4x128xf32>
    %554 = arith.addf %553, %552 : vector<4x128xf32>
    %555 = arith.divf %553, %554 : vector<4x128xf32>
    %556 = arith.select %5, %550, %555 : vector<4x128xi1>, vector<4x128xf32>
    %557 = vector.extract_strided_slice %556 {offsets = [0, 0], sizes = [4, 32], strides = [1, 1]} : vector<4x128xf32> to vector<4x32xf32>
    %558 = vector.extract_strided_slice %556 {offsets = [0, 32], sizes = [4, 32], strides = [1, 1]} : vector<4x128xf32> to vector<4x32xf32>
    %559 = vector.extract_strided_slice %556 {offsets = [0, 64], sizes = [4, 32], strides = [1, 1]} : vector<4x128xf32> to vector<4x32xf32>
    %560 = vector.extract_strided_slice %556 {offsets = [0, 96], sizes = [4, 32], strides = [1, 1]} : vector<4x128xf32> to vector<4x32xf32>
    %c0_444 = arith.constant 0 : index
    %c0_445 = arith.constant 0 : index
    %561 = vector.load %arg15[%c0_444, %c0_445] : memref<4x32xf32, #tpu.memory_space<vmem>>, vector<4x32xf32>
    %562 = arith.mulf %558, %561 : vector<4x32xf32>
    %563 = arith.mulf %557, %559 : vector<4x32xf32>
    %564 = arith.addf %562, %563 : vector<4x32xf32>
    %565 = math.tanh %564 : vector<4x32xf32>
    %566 = arith.mulf %560, %565 : vector<4x32xf32>
    %c0_446 = arith.constant 0 : index
    %c0_447 = arith.constant 0 : index
    %567 = vector.load %arg14[%c0_446, %c0_447] : memref<4x32xf32, #tpu.memory_space<vmem>>, vector<4x32xf32>
    tpu.vector_store %arg14[%c0_446, %c0_447], %566 {strides = array<i32>} : memref<4x32xf32, #tpu.memory_space<vmem>>, vector<4x32xf32>,
    %c0_448 = arith.constant 0 : index
    %c0_449 = arith.constant 0 : index
    %568 = vector.load %arg15[%c0_448, %c0_449] : memref<4x32xf32, #tpu.memory_space<vmem>>, vector<4x32xf32>
    tpu.vector_store %arg15[%c0_448, %c0_449], %564 {strides = array<i32>} : memref<4x32xf32, #tpu.memory_space<vmem>>, vector<4x32xf32>,
    %569 = vector.extract_strided_slice %566 {offsets = [0, 0], sizes = [2, 32], strides = [1, 1]} : vector<4x32xf32> to vector<2x32xf32>
    %c3_450 = arith.constant 3 : index
    %c0_451 = arith.constant 0 : index
    %c0_452 = arith.constant 0 : index
    %570 = vector.load %arg13[%c3_450, %c0_451, %c0_452] : memref<8x2x64xf32, #tpu.memory_space<vmem>>, vector<1x2x32xf32>
    %571 = vector.shape_cast %570 : vector<1x2x32xf32> to vector<2x32xf32>
    %572 = vector.shape_cast %569 : vector<2x32xf32> to vector<1x2x32xf32>
    tpu.vector_store %arg13[%c3_450, %c0_451, %c0_452], %572 {strides = array<i32>} : memref<8x2x64xf32, #tpu.memory_space<vmem>>, vector<1x2x32xf32>,
    %573 = vector.extract_strided_slice %566 {offsets = [2, 0], sizes = [2, 32], strides = [1, 1]} : vector<4x32xf32> to vector<2x32xf32>
    %c4_453 = arith.constant 4 : index
    %c0_454 = arith.constant 0 : index
    %c32_455 = arith.constant 32 : index
    %574 = vector.load %arg13[%c4_453, %c0_454, %c32_455] : memref<8x2x64xf32, #tpu.memory_space<vmem>>, vector<1x2x32xf32>
    %575 = vector.shape_cast %574 : vector<1x2x32xf32> to vector<2x32xf32>
    %576 = vector.shape_cast %573 : vector<2x32xf32> to vector<1x2x32xf32>
    tpu.vector_store %arg13[%c4_453, %c0_454, %c32_455], %576 {strides = array<i32>} : memref<8x2x64xf32, #tpu.memory_space<vmem>>, vector<1x2x32xf32>,
    %c4_456 = arith.constant 4 : index
    %c0_457 = arith.constant 0 : index
    %c0_458 = arith.constant 0 : index
    %577 = vector.load %arg12[%c4_456, %c0_457, %c0_458] : memref<8x2x64xf32, #tpu.memory_space<vmem>>, vector<1x2x64xf32>
    %578 = vector.shape_cast %577 : vector<1x2x64xf32> to vector<2x64xf32>
    %c0_459 = arith.constant 0 : index
    %c0_460 = arith.constant 0 : index
    %579 = vector.load %arg16[%c0_459, %c0_460] : memref<4x96xf32, #tpu.memory_space<vmem>>, vector<2x64xf32>
    tpu.vector_store %arg16[%c0_459, %c0_460], %578 {strides = array<i32>} : memref<4x96xf32, #tpu.memory_space<vmem>>, vector<2x64xf32>,
    %c3_461 = arith.constant 3 : index
    %c0_462 = arith.constant 0 : index
    %c0_463 = arith.constant 0 : index
    %580 = vector.load %arg12[%c3_461, %c0_462, %c0_463] : memref<8x2x64xf32, #tpu.memory_space<vmem>>, vector<1x2x64xf32>
    %581 = vector.shape_cast %580 : vector<1x2x64xf32> to vector<2x64xf32>
    %c2_464 = arith.constant 2 : index
    %c0_465 = arith.constant 0 : index
    %582 = vector.load %arg16[%c2_464, %c0_465] : memref<4x96xf32, #tpu.memory_space<vmem>>, vector<2x64xf32>
    tpu.vector_store %arg16[%c2_464, %c0_465], %581 {strides = array<i32>} : memref<4x96xf32, #tpu.memory_space<vmem>>, vector<2x64xf32>,
    %c0_466 = arith.constant 0 : index
    %c0_467 = arith.constant 0 : index
    %583 = vector.load %arg14[%c0_466, %c0_467] : memref<4x32xf32, #tpu.memory_space<vmem>>, vector<4x32xf32>
    %c0_468 = arith.constant 0 : index
    %c64_469 = arith.constant 64 : index
    %584 = vector.load %arg16[%c0_468, %c64_469] : memref<4x96xf32, #tpu.memory_space<vmem>>, vector<4x32xf32>
    tpu.vector_store %arg16[%c0_468, %c64_469], %583 {strides = array<i32>} : memref<4x96xf32, #tpu.memory_space<vmem>>, vector<4x32xf32>,
    %c0_470 = arith.constant 0 : index
    %c0_471 = arith.constant 0 : index
    %585 = vector.load %arg16[%c0_470, %c0_471] : memref<4x96xf32, #tpu.memory_space<vmem>>, vector<4x96xf32>
    %c0_472 = arith.constant 0 : index
    %c0_473 = arith.constant 0 : index
    %586 = vector.load %arg3[%c0_472, %c0_473] : memref<96x256xf32, #tpu.memory_space<vmem>>, vector<96x256xf32>
    %cst_474 = arith.constant dense<0.000000e+00> : vector<4x256xf32>
    %587 = tpu.matmul %585, %586, %cst_474 {dimension_numbers = #tpu.dot_dimension_numbers<[1], [0], [0], [1], [0, 0, 1, 1], [], []>} : vector<4x96xf32>, vector<96x256xf32>, vector<4x256xf32> -> vector<4x256xf32>
    %c0_475 = arith.constant 0 : index
    %c0_476 = arith.constant 0 : index
    %588 = vector.load %arg4[%c0_475, %c0_476] : memref<1x256xf32, #tpu.memory_space<vmem>>, vector<1x256xf32>
    %589 = vector.broadcast %588 : vector<1x256xf32> to vector<4x256xf32>
    %590 = arith.addf %587, %589 : vector<4x256xf32>
    %591 = vector.extract_strided_slice %590 {offsets = [0, 0], sizes = [4, 128], strides = [1, 1]} : vector<4x256xf32> to vector<4x128xf32>
    %592 = vector.extract_strided_slice %590 {offsets = [0, 128], sizes = [4, 128], strides = [1, 1]} : vector<4x256xf32> to vector<4x128xf32>
    %593 = arith.select %8, %591, %592 : vector<4x128xi1>, vector<4x128xf32>
    %594 = math.tanh %593 : vector<4x128xf32>
    %595 = arith.negf %593 : vector<4x128xf32>
    %596 = math.exp %595 : vector<4x128xf32>
    %cst_477 = arith.constant 1.000000e+00 : f32
    %597 = vector.broadcast %cst_477 : f32 to vector<4x128xf32>
    %598 = arith.addf %597, %596 : vector<4x128xf32>
    %599 = arith.divf %597, %598 : vector<4x128xf32>
    %600 = arith.select %5, %594, %599 : vector<4x128xi1>, vector<4x128xf32>
    %601 = vector.extract_strided_slice %600 {offsets = [0, 0], sizes = [4, 32], strides = [1, 1]} : vector<4x128xf32> to vector<4x32xf32>
    %602 = vector.extract_strided_slice %600 {offsets = [0, 32], sizes = [4, 32], strides = [1, 1]} : vector<4x128xf32> to vector<4x32xf32>
    %603 = vector.extract_strided_slice %600 {offsets = [0, 64], sizes = [4, 32], strides = [1, 1]} : vector<4x128xf32> to vector<4x32xf32>
    %604 = vector.extract_strided_slice %600 {offsets = [0, 96], sizes = [4, 32], strides = [1, 1]} : vector<4x128xf32> to vector<4x32xf32>
    %c0_478 = arith.constant 0 : index
    %c0_479 = arith.constant 0 : index
    %605 = vector.load %arg15[%c0_478, %c0_479] : memref<4x32xf32, #tpu.memory_space<vmem>>, vector<4x32xf32>
    %606 = arith.mulf %602, %605 : vector<4x32xf32>
    %607 = arith.mulf %601, %603 : vector<4x32xf32>
    %608 = arith.addf %606, %607 : vector<4x32xf32>
    %609 = math.tanh %608 : vector<4x32xf32>
    %610 = arith.mulf %604, %609 : vector<4x32xf32>
    %c0_480 = arith.constant 0 : index
    %c0_481 = arith.constant 0 : index
    %611 = vector.load %arg14[%c0_480, %c0_481] : memref<4x32xf32, #tpu.memory_space<vmem>>, vector<4x32xf32>
    tpu.vector_store %arg14[%c0_480, %c0_481], %610 {strides = array<i32>} : memref<4x32xf32, #tpu.memory_space<vmem>>, vector<4x32xf32>,
    %c0_482 = arith.constant 0 : index
    %c0_483 = arith.constant 0 : index
    %612 = vector.load %arg15[%c0_482, %c0_483] : memref<4x32xf32, #tpu.memory_space<vmem>>, vector<4x32xf32>
    tpu.vector_store %arg15[%c0_482, %c0_483], %608 {strides = array<i32>} : memref<4x32xf32, #tpu.memory_space<vmem>>, vector<4x32xf32>,
    %613 = vector.extract_strided_slice %610 {offsets = [0, 0], sizes = [2, 32], strides = [1, 1]} : vector<4x32xf32> to vector<2x32xf32>
    %c4_484 = arith.constant 4 : index
    %c0_485 = arith.constant 0 : index
    %c0_486 = arith.constant 0 : index
    %614 = vector.load %arg13[%c4_484, %c0_485, %c0_486] : memref<8x2x64xf32, #tpu.memory_space<vmem>>, vector<1x2x32xf32>
    %615 = vector.shape_cast %614 : vector<1x2x32xf32> to vector<2x32xf32>
    %616 = vector.shape_cast %613 : vector<2x32xf32> to vector<1x2x32xf32>
    tpu.vector_store %arg13[%c4_484, %c0_485, %c0_486], %616 {strides = array<i32>} : memref<8x2x64xf32, #tpu.memory_space<vmem>>, vector<1x2x32xf32>,
    %617 = vector.extract_strided_slice %610 {offsets = [2, 0], sizes = [2, 32], strides = [1, 1]} : vector<4x32xf32> to vector<2x32xf32>
    %c3_487 = arith.constant 3 : index
    %c0_488 = arith.constant 0 : index
    %c32_489 = arith.constant 32 : index
    %618 = vector.load %arg13[%c3_487, %c0_488, %c32_489] : memref<8x2x64xf32, #tpu.memory_space<vmem>>, vector<1x2x32xf32>
    %619 = vector.shape_cast %618 : vector<1x2x32xf32> to vector<2x32xf32>
    %620 = vector.shape_cast %617 : vector<2x32xf32> to vector<1x2x32xf32>
    tpu.vector_store %arg13[%c3_487, %c0_488, %c32_489], %620 {strides = array<i32>} : memref<8x2x64xf32, #tpu.memory_space<vmem>>, vector<1x2x32xf32>,
    %c5_490 = arith.constant 5 : index
    %c0_491 = arith.constant 0 : index
    %c0_492 = arith.constant 0 : index
    %621 = vector.load %arg12[%c5_490, %c0_491, %c0_492] : memref<8x2x64xf32, #tpu.memory_space<vmem>>, vector<1x2x64xf32>
    %622 = vector.shape_cast %621 : vector<1x2x64xf32> to vector<2x64xf32>
    %c0_493 = arith.constant 0 : index
    %c0_494 = arith.constant 0 : index
    %623 = vector.load %arg16[%c0_493, %c0_494] : memref<4x96xf32, #tpu.memory_space<vmem>>, vector<2x64xf32>
    tpu.vector_store %arg16[%c0_493, %c0_494], %622 {strides = array<i32>} : memref<4x96xf32, #tpu.memory_space<vmem>>, vector<2x64xf32>,
    %c2_495 = arith.constant 2 : index
    %c0_496 = arith.constant 0 : index
    %c0_497 = arith.constant 0 : index
    %624 = vector.load %arg12[%c2_495, %c0_496, %c0_497] : memref<8x2x64xf32, #tpu.memory_space<vmem>>, vector<1x2x64xf32>
    %625 = vector.shape_cast %624 : vector<1x2x64xf32> to vector<2x64xf32>
    %c2_498 = arith.constant 2 : index
    %c0_499 = arith.constant 0 : index
    %626 = vector.load %arg16[%c2_498, %c0_499] : memref<4x96xf32, #tpu.memory_space<vmem>>, vector<2x64xf32>
    tpu.vector_store %arg16[%c2_498, %c0_499], %625 {strides = array<i32>} : memref<4x96xf32, #tpu.memory_space<vmem>>, vector<2x64xf32>,
    %c0_500 = arith.constant 0 : index
    %c0_501 = arith.constant 0 : index
    %627 = vector.load %arg14[%c0_500, %c0_501] : memref<4x32xf32, #tpu.memory_space<vmem>>, vector<4x32xf32>
    %c0_502 = arith.constant 0 : index
    %c64_503 = arith.constant 64 : index
    %628 = vector.load %arg16[%c0_502, %c64_503] : memref<4x96xf32, #tpu.memory_space<vmem>>, vector<4x32xf32>
    tpu.vector_store %arg16[%c0_502, %c64_503], %627 {strides = array<i32>} : memref<4x96xf32, #tpu.memory_space<vmem>>, vector<4x32xf32>,
    %c0_504 = arith.constant 0 : index
    %c0_505 = arith.constant 0 : index
    %629 = vector.load %arg16[%c0_504, %c0_505] : memref<4x96xf32, #tpu.memory_space<vmem>>, vector<4x96xf32>
    %c0_506 = arith.constant 0 : index
    %c0_507 = arith.constant 0 : index
    %630 = vector.load %arg3[%c0_506, %c0_507] : memref<96x256xf32, #tpu.memory_space<vmem>>, vector<96x256xf32>
    %cst_508 = arith.constant dense<0.000000e+00> : vector<4x256xf32>
    %631 = tpu.matmul %629, %630, %cst_508 {dimension_numbers = #tpu.dot_dimension_numbers<[1], [0], [0], [1], [0, 0, 1, 1], [], []>} : vector<4x96xf32>, vector<96x256xf32>, vector<4x256xf32> -> vector<4x256xf32>
    %c0_509 = arith.constant 0 : index
    %c0_510 = arith.constant 0 : index
    %632 = vector.load %arg4[%c0_509, %c0_510] : memref<1x256xf32, #tpu.memory_space<vmem>>, vector<1x256xf32>
    %633 = vector.broadcast %632 : vector<1x256xf32> to vector<4x256xf32>
    %634 = arith.addf %631, %633 : vector<4x256xf32>
    %635 = vector.extract_strided_slice %634 {offsets = [0, 0], sizes = [4, 128], strides = [1, 1]} : vector<4x256xf32> to vector<4x128xf32>
    %636 = vector.extract_strided_slice %634 {offsets = [0, 128], sizes = [4, 128], strides = [1, 1]} : vector<4x256xf32> to vector<4x128xf32>
    %637 = arith.select %8, %635, %636 : vector<4x128xi1>, vector<4x128xf32>
    %638 = math.tanh %637 : vector<4x128xf32>
    %639 = arith.negf %637 : vector<4x128xf32>
    %640 = math.exp %639 : vector<4x128xf32>
    %cst_511 = arith.constant 1.000000e+00 : f32
    %641 = vector.broadcast %cst_511 : f32 to vector<4x128xf32>
    %642 = arith.addf %641, %640 : vector<4x128xf32>
    %643 = arith.divf %641, %642 : vector<4x128xf32>
    %644 = arith.select %5, %638, %643 : vector<4x128xi1>, vector<4x128xf32>
    %645 = vector.extract_strided_slice %644 {offsets = [0, 0], sizes = [4, 32], strides = [1, 1]} : vector<4x128xf32> to vector<4x32xf32>
    %646 = vector.extract_strided_slice %644 {offsets = [0, 32], sizes = [4, 32], strides = [1, 1]} : vector<4x128xf32> to vector<4x32xf32>
    %647 = vector.extract_strided_slice %644 {offsets = [0, 64], sizes = [4, 32], strides = [1, 1]} : vector<4x128xf32> to vector<4x32xf32>
    %648 = vector.extract_strided_slice %644 {offsets = [0, 96], sizes = [4, 32], strides = [1, 1]} : vector<4x128xf32> to vector<4x32xf32>
    %c0_512 = arith.constant 0 : index
    %c0_513 = arith.constant 0 : index
    %649 = vector.load %arg15[%c0_512, %c0_513] : memref<4x32xf32, #tpu.memory_space<vmem>>, vector<4x32xf32>
    %650 = arith.mulf %646, %649 : vector<4x32xf32>
    %651 = arith.mulf %645, %647 : vector<4x32xf32>
    %652 = arith.addf %650, %651 : vector<4x32xf32>
    %653 = math.tanh %652 : vector<4x32xf32>
    %654 = arith.mulf %648, %653 : vector<4x32xf32>
    %c0_514 = arith.constant 0 : index
    %c0_515 = arith.constant 0 : index
    %655 = vector.load %arg14[%c0_514, %c0_515] : memref<4x32xf32, #tpu.memory_space<vmem>>, vector<4x32xf32>
    tpu.vector_store %arg14[%c0_514, %c0_515], %654 {strides = array<i32>} : memref<4x32xf32, #tpu.memory_space<vmem>>, vector<4x32xf32>,
    %c0_516 = arith.constant 0 : index
    %c0_517 = arith.constant 0 : index
    %656 = vector.load %arg15[%c0_516, %c0_517] : memref<4x32xf32, #tpu.memory_space<vmem>>, vector<4x32xf32>
    tpu.vector_store %arg15[%c0_516, %c0_517], %652 {strides = array<i32>} : memref<4x32xf32, #tpu.memory_space<vmem>>, vector<4x32xf32>,
    %657 = vector.extract_strided_slice %654 {offsets = [0, 0], sizes = [2, 32], strides = [1, 1]} : vector<4x32xf32> to vector<2x32xf32>
    %c5_518 = arith.constant 5 : index
    %c0_519 = arith.constant 0 : index
    %c0_520 = arith.constant 0 : index
    %658 = vector.load %arg13[%c5_518, %c0_519, %c0_520] : memref<8x2x64xf32, #tpu.memory_space<vmem>>, vector<1x2x32xf32>
    %659 = vector.shape_cast %658 : vector<1x2x32xf32> to vector<2x32xf32>
    %660 = vector.shape_cast %657 : vector<2x32xf32> to vector<1x2x32xf32>
    tpu.vector_store %arg13[%c5_518, %c0_519, %c0_520], %660 {strides = array<i32>} : memref<8x2x64xf32, #tpu.memory_space<vmem>>, vector<1x2x32xf32>,
    %661 = vector.extract_strided_slice %654 {offsets = [2, 0], sizes = [2, 32], strides = [1, 1]} : vector<4x32xf32> to vector<2x32xf32>
    %c2_521 = arith.constant 2 : index
    %c0_522 = arith.constant 0 : index
    %c32_523 = arith.constant 32 : index
    %662 = vector.load %arg13[%c2_521, %c0_522, %c32_523] : memref<8x2x64xf32, #tpu.memory_space<vmem>>, vector<1x2x32xf32>
    %663 = vector.shape_cast %662 : vector<1x2x32xf32> to vector<2x32xf32>
    %664 = vector.shape_cast %661 : vector<2x32xf32> to vector<1x2x32xf32>
    tpu.vector_store %arg13[%c2_521, %c0_522, %c32_523], %664 {strides = array<i32>} : memref<8x2x64xf32, #tpu.memory_space<vmem>>, vector<1x2x32xf32>,
    %c6_524 = arith.constant 6 : index
    %c0_525 = arith.constant 0 : index
    %c0_526 = arith.constant 0 : index
    %665 = vector.load %arg12[%c6_524, %c0_525, %c0_526] : memref<8x2x64xf32, #tpu.memory_space<vmem>>, vector<1x2x64xf32>
    %666 = vector.shape_cast %665 : vector<1x2x64xf32> to vector<2x64xf32>
    %c0_527 = arith.constant 0 : index
    %c0_528 = arith.constant 0 : index
    %667 = vector.load %arg16[%c0_527, %c0_528] : memref<4x96xf32, #tpu.memory_space<vmem>>, vector<2x64xf32>
    tpu.vector_store %arg16[%c0_527, %c0_528], %666 {strides = array<i32>} : memref<4x96xf32, #tpu.memory_space<vmem>>, vector<2x64xf32>,
    %c1_529 = arith.constant 1 : index
    %c0_530 = arith.constant 0 : index
    %c0_531 = arith.constant 0 : index
    %668 = vector.load %arg12[%c1_529, %c0_530, %c0_531] : memref<8x2x64xf32, #tpu.memory_space<vmem>>, vector<1x2x64xf32>
    %669 = vector.shape_cast %668 : vector<1x2x64xf32> to vector<2x64xf32>
    %c2_532 = arith.constant 2 : index
    %c0_533 = arith.constant 0 : index
    %670 = vector.load %arg16[%c2_532, %c0_533] : memref<4x96xf32, #tpu.memory_space<vmem>>, vector<2x64xf32>
    tpu.vector_store %arg16[%c2_532, %c0_533], %669 {strides = array<i32>} : memref<4x96xf32, #tpu.memory_space<vmem>>, vector<2x64xf32>,
    %c0_534 = arith.constant 0 : index
    %c0_535 = arith.constant 0 : index
    %671 = vector.load %arg14[%c0_534, %c0_535] : memref<4x32xf32, #tpu.memory_space<vmem>>, vector<4x32xf32>
    %c0_536 = arith.constant 0 : index
    %c64_537 = arith.constant 64 : index
    %672 = vector.load %arg16[%c0_536, %c64_537] : memref<4x96xf32, #tpu.memory_space<vmem>>, vector<4x32xf32>
    tpu.vector_store %arg16[%c0_536, %c64_537], %671 {strides = array<i32>} : memref<4x96xf32, #tpu.memory_space<vmem>>, vector<4x32xf32>,
    %c0_538 = arith.constant 0 : index
    %c0_539 = arith.constant 0 : index
    %673 = vector.load %arg16[%c0_538, %c0_539] : memref<4x96xf32, #tpu.memory_space<vmem>>, vector<4x96xf32>
    %c0_540 = arith.constant 0 : index
    %c0_541 = arith.constant 0 : index
    %674 = vector.load %arg3[%c0_540, %c0_541] : memref<96x256xf32, #tpu.memory_space<vmem>>, vector<96x256xf32>
    %cst_542 = arith.constant dense<0.000000e+00> : vector<4x256xf32>
    %675 = tpu.matmul %673, %674, %cst_542 {dimension_numbers = #tpu.dot_dimension_numbers<[1], [0], [0], [1], [0, 0, 1, 1], [], []>} : vector<4x96xf32>, vector<96x256xf32>, vector<4x256xf32> -> vector<4x256xf32>
    %c0_543 = arith.constant 0 : index
    %c0_544 = arith.constant 0 : index
    %676 = vector.load %arg4[%c0_543, %c0_544] : memref<1x256xf32, #tpu.memory_space<vmem>>, vector<1x256xf32>
    %677 = vector.broadcast %676 : vector<1x256xf32> to vector<4x256xf32>
    %678 = arith.addf %675, %677 : vector<4x256xf32>
    %679 = vector.extract_strided_slice %678 {offsets = [0, 0], sizes = [4, 128], strides = [1, 1]} : vector<4x256xf32> to vector<4x128xf32>
    %680 = vector.extract_strided_slice %678 {offsets = [0, 128], sizes = [4, 128], strides = [1, 1]} : vector<4x256xf32> to vector<4x128xf32>
    %681 = arith.select %8, %679, %680 : vector<4x128xi1>, vector<4x128xf32>
    %682 = math.tanh %681 : vector<4x128xf32>
    %683 = arith.negf %681 : vector<4x128xf32>
    %684 = math.exp %683 : vector<4x128xf32>
    %cst_545 = arith.constant 1.000000e+00 : f32
    %685 = vector.broadcast %cst_545 : f32 to vector<4x128xf32>
    %686 = arith.addf %685, %684 : vector<4x128xf32>
    %687 = arith.divf %685, %686 : vector<4x128xf32>
    %688 = arith.select %5, %682, %687 : vector<4x128xi1>, vector<4x128xf32>
    %689 = vector.extract_strided_slice %688 {offsets = [0, 0], sizes = [4, 32], strides = [1, 1]} : vector<4x128xf32> to vector<4x32xf32>
    %690 = vector.extract_strided_slice %688 {offsets = [0, 32], sizes = [4, 32], strides = [1, 1]} : vector<4x128xf32> to vector<4x32xf32>
    %691 = vector.extract_strided_slice %688 {offsets = [0, 64], sizes = [4, 32], strides = [1, 1]} : vector<4x128xf32> to vector<4x32xf32>
    %692 = vector.extract_strided_slice %688 {offsets = [0, 96], sizes = [4, 32], strides = [1, 1]} : vector<4x128xf32> to vector<4x32xf32>
    %c0_546 = arith.constant 0 : index
    %c0_547 = arith.constant 0 : index
    %693 = vector.load %arg15[%c0_546, %c0_547] : memref<4x32xf32, #tpu.memory_space<vmem>>, vector<4x32xf32>
    %694 = arith.mulf %690, %693 : vector<4x32xf32>
    %695 = arith.mulf %689, %691 : vector<4x32xf32>
    %696 = arith.addf %694, %695 : vector<4x32xf32>
    %697 = math.tanh %696 : vector<4x32xf32>
    %698 = arith.mulf %692, %697 : vector<4x32xf32>
    %c0_548 = arith.constant 0 : index
    %c0_549 = arith.constant 0 : index
    %699 = vector.load %arg14[%c0_548, %c0_549] : memref<4x32xf32, #tpu.memory_space<vmem>>, vector<4x32xf32>
    tpu.vector_store %arg14[%c0_548, %c0_549], %698 {strides = array<i32>} : memref<4x32xf32, #tpu.memory_space<vmem>>, vector<4x32xf32>,
    %c0_550 = arith.constant 0 : index
    %c0_551 = arith.constant 0 : index
    %700 = vector.load %arg15[%c0_550, %c0_551] : memref<4x32xf32, #tpu.memory_space<vmem>>, vector<4x32xf32>
    tpu.vector_store %arg15[%c0_550, %c0_551], %696 {strides = array<i32>} : memref<4x32xf32, #tpu.memory_space<vmem>>, vector<4x32xf32>,
    %701 = vector.extract_strided_slice %698 {offsets = [0, 0], sizes = [2, 32], strides = [1, 1]} : vector<4x32xf32> to vector<2x32xf32>
    %c6_552 = arith.constant 6 : index
    %c0_553 = arith.constant 0 : index
    %c0_554 = arith.constant 0 : index
    %702 = vector.load %arg13[%c6_552, %c0_553, %c0_554] : memref<8x2x64xf32, #tpu.memory_space<vmem>>, vector<1x2x32xf32>
    %703 = vector.shape_cast %702 : vector<1x2x32xf32> to vector<2x32xf32>
    %704 = vector.shape_cast %701 : vector<2x32xf32> to vector<1x2x32xf32>
    tpu.vector_store %arg13[%c6_552, %c0_553, %c0_554], %704 {strides = array<i32>} : memref<8x2x64xf32, #tpu.memory_space<vmem>>, vector<1x2x32xf32>,
    %705 = vector.extract_strided_slice %698 {offsets = [2, 0], sizes = [2, 32], strides = [1, 1]} : vector<4x32xf32> to vector<2x32xf32>
    %c1_555 = arith.constant 1 : index
    %c0_556 = arith.constant 0 : index
    %c32_557 = arith.constant 32 : index
    %706 = vector.load %arg13[%c1_555, %c0_556, %c32_557] : memref<8x2x64xf32, #tpu.memory_space<vmem>>, vector<1x2x32xf32>
    %707 = vector.shape_cast %706 : vector<1x2x32xf32> to vector<2x32xf32>
    %708 = vector.shape_cast %705 : vector<2x32xf32> to vector<1x2x32xf32>
    tpu.vector_store %arg13[%c1_555, %c0_556, %c32_557], %708 {strides = array<i32>} : memref<8x2x64xf32, #tpu.memory_space<vmem>>, vector<1x2x32xf32>,
    %c7_558 = arith.constant 7 : index
    %c0_559 = arith.constant 0 : index
    %c0_560 = arith.constant 0 : index
    %709 = vector.load %arg12[%c7_558, %c0_559, %c0_560] : memref<8x2x64xf32, #tpu.memory_space<vmem>>, vector<1x2x64xf32>
    %710 = vector.shape_cast %709 : vector<1x2x64xf32> to vector<2x64xf32>
    %c0_561 = arith.constant 0 : index
    %c0_562 = arith.constant 0 : index
    %711 = vector.load %arg16[%c0_561, %c0_562] : memref<4x96xf32, #tpu.memory_space<vmem>>, vector<2x64xf32>
    tpu.vector_store %arg16[%c0_561, %c0_562], %710 {strides = array<i32>} : memref<4x96xf32, #tpu.memory_space<vmem>>, vector<2x64xf32>,
    %c0_563 = arith.constant 0 : index
    %c0_564 = arith.constant 0 : index
    %c0_565 = arith.constant 0 : index
    %712 = vector.load %arg12[%c0_563, %c0_564, %c0_565] : memref<8x2x64xf32, #tpu.memory_space<vmem>>, vector<1x2x64xf32>
    %713 = vector.shape_cast %712 : vector<1x2x64xf32> to vector<2x64xf32>
    %c2_566 = arith.constant 2 : index
    %c0_567 = arith.constant 0 : index
    %714 = vector.load %arg16[%c2_566, %c0_567] : memref<4x96xf32, #tpu.memory_space<vmem>>, vector<2x64xf32>
    tpu.vector_store %arg16[%c2_566, %c0_567], %713 {strides = array<i32>} : memref<4x96xf32, #tpu.memory_space<vmem>>, vector<2x64xf32>,
    %c0_568 = arith.constant 0 : index
    %c0_569 = arith.constant 0 : index
    %715 = vector.load %arg14[%c0_568, %c0_569] : memref<4x32xf32, #tpu.memory_space<vmem>>, vector<4x32xf32>
    %c0_570 = arith.constant 0 : index
    %c64_571 = arith.constant 64 : index
    %716 = vector.load %arg16[%c0_570, %c64_571] : memref<4x96xf32, #tpu.memory_space<vmem>>, vector<4x32xf32>
    tpu.vector_store %arg16[%c0_570, %c64_571], %715 {strides = array<i32>} : memref<4x96xf32, #tpu.memory_space<vmem>>, vector<4x32xf32>,
    %c0_572 = arith.constant 0 : index
    %c0_573 = arith.constant 0 : index
    %717 = vector.load %arg16[%c0_572, %c0_573] : memref<4x96xf32, #tpu.memory_space<vmem>>, vector<4x96xf32>
    %c0_574 = arith.constant 0 : index
    %c0_575 = arith.constant 0 : index
    %718 = vector.load %arg3[%c0_574, %c0_575] : memref<96x256xf32, #tpu.memory_space<vmem>>, vector<96x256xf32>
    %cst_576 = arith.constant dense<0.000000e+00> : vector<4x256xf32>
    %719 = tpu.matmul %717, %718, %cst_576 {dimension_numbers = #tpu.dot_dimension_numbers<[1], [0], [0], [1], [0, 0, 1, 1], [], []>} : vector<4x96xf32>, vector<96x256xf32>, vector<4x256xf32> -> vector<4x256xf32>
    %c0_577 = arith.constant 0 : index
    %c0_578 = arith.constant 0 : index
    %720 = vector.load %arg4[%c0_577, %c0_578] : memref<1x256xf32, #tpu.memory_space<vmem>>, vector<1x256xf32>
    %721 = vector.broadcast %720 : vector<1x256xf32> to vector<4x256xf32>
    %722 = arith.addf %719, %721 : vector<4x256xf32>
    %723 = vector.extract_strided_slice %722 {offsets = [0, 0], sizes = [4, 128], strides = [1, 1]} : vector<4x256xf32> to vector<4x128xf32>
    %724 = vector.extract_strided_slice %722 {offsets = [0, 128], sizes = [4, 128], strides = [1, 1]} : vector<4x256xf32> to vector<4x128xf32>
    %725 = arith.select %8, %723, %724 : vector<4x128xi1>, vector<4x128xf32>
    %726 = math.tanh %725 : vector<4x128xf32>
    %727 = arith.negf %725 : vector<4x128xf32>
    %728 = math.exp %727 : vector<4x128xf32>
    %cst_579 = arith.constant 1.000000e+00 : f32
    %729 = vector.broadcast %cst_579 : f32 to vector<4x128xf32>
    %730 = arith.addf %729, %728 : vector<4x128xf32>
    %731 = arith.divf %729, %730 : vector<4x128xf32>
    %732 = arith.select %5, %726, %731 : vector<4x128xi1>, vector<4x128xf32>
    %733 = vector.extract_strided_slice %732 {offsets = [0, 0], sizes = [4, 32], strides = [1, 1]} : vector<4x128xf32> to vector<4x32xf32>
    %734 = vector.extract_strided_slice %732 {offsets = [0, 32], sizes = [4, 32], strides = [1, 1]} : vector<4x128xf32> to vector<4x32xf32>
    %735 = vector.extract_strided_slice %732 {offsets = [0, 64], sizes = [4, 32], strides = [1, 1]} : vector<4x128xf32> to vector<4x32xf32>
    %736 = vector.extract_strided_slice %732 {offsets = [0, 96], sizes = [4, 32], strides = [1, 1]} : vector<4x128xf32> to vector<4x32xf32>
    %c0_580 = arith.constant 0 : index
    %c0_581 = arith.constant 0 : index
    %737 = vector.load %arg15[%c0_580, %c0_581] : memref<4x32xf32, #tpu.memory_space<vmem>>, vector<4x32xf32>
    %738 = arith.mulf %734, %737 : vector<4x32xf32>
    %739 = arith.mulf %733, %735 : vector<4x32xf32>
    %740 = arith.addf %738, %739 : vector<4x32xf32>
    %741 = math.tanh %740 : vector<4x32xf32>
    %742 = arith.mulf %736, %741 : vector<4x32xf32>
    %c0_582 = arith.constant 0 : index
    %c0_583 = arith.constant 0 : index
    %743 = vector.load %arg14[%c0_582, %c0_583] : memref<4x32xf32, #tpu.memory_space<vmem>>, vector<4x32xf32>
    tpu.vector_store %arg14[%c0_582, %c0_583], %742 {strides = array<i32>} : memref<4x32xf32, #tpu.memory_space<vmem>>, vector<4x32xf32>,
    %c0_584 = arith.constant 0 : index
    %c0_585 = arith.constant 0 : index
    %744 = vector.load %arg15[%c0_584, %c0_585] : memref<4x32xf32, #tpu.memory_space<vmem>>, vector<4x32xf32>
    tpu.vector_store %arg15[%c0_584, %c0_585], %740 {strides = array<i32>} : memref<4x32xf32, #tpu.memory_space<vmem>>, vector<4x32xf32>,
    %745 = vector.extract_strided_slice %742 {offsets = [0, 0], sizes = [2, 32], strides = [1, 1]} : vector<4x32xf32> to vector<2x32xf32>
    %c7_586 = arith.constant 7 : index
    %c0_587 = arith.constant 0 : index
    %c0_588 = arith.constant 0 : index
    %746 = vector.load %arg13[%c7_586, %c0_587, %c0_588] : memref<8x2x64xf32, #tpu.memory_space<vmem>>, vector<1x2x32xf32>
    %747 = vector.shape_cast %746 : vector<1x2x32xf32> to vector<2x32xf32>
    %748 = vector.shape_cast %745 : vector<2x32xf32> to vector<1x2x32xf32>
    tpu.vector_store %arg13[%c7_586, %c0_587, %c0_588], %748 {strides = array<i32>} : memref<8x2x64xf32, #tpu.memory_space<vmem>>, vector<1x2x32xf32>,
    %749 = vector.extract_strided_slice %742 {offsets = [2, 0], sizes = [2, 32], strides = [1, 1]} : vector<4x32xf32> to vector<2x32xf32>
    %c0_589 = arith.constant 0 : index
    %c0_590 = arith.constant 0 : index
    %c32_591 = arith.constant 32 : index
    %750 = vector.load %arg13[%c0_589, %c0_590, %c32_591] : memref<8x2x64xf32, #tpu.memory_space<vmem>>, vector<1x2x32xf32>
    %751 = vector.shape_cast %750 : vector<1x2x32xf32> to vector<2x32xf32>
    %752 = vector.shape_cast %749 : vector<2x32xf32> to vector<1x2x32xf32>
    tpu.vector_store %arg13[%c0_589, %c0_590, %c32_591], %752 {strides = array<i32>} : memref<8x2x64xf32, #tpu.memory_space<vmem>>, vector<1x2x32xf32>,
    %c0_592 = arith.constant 0 : index
    %c0_593 = arith.constant 0 : index
    %753 = vector.load %arg14[%c0_592, %c0_593] : memref<4x32xf32, #tpu.memory_space<vmem>>, vector<2x32xf32>
    %c2_594 = arith.constant 2 : index
    %c0_595 = arith.constant 0 : index
    %c0_596 = arith.constant 0 : index
    %754 = vector.load %arg10[%c2_594, %c0_595, %c0_596] : memref<4x2x32xf32, #tpu.memory_space<vmem>>, vector<1x2x32xf32>
    %755 = vector.shape_cast %754 : vector<1x2x32xf32> to vector<2x32xf32>
    %756 = vector.shape_cast %753 : vector<2x32xf32> to vector<1x2x32xf32>
    tpu.vector_store %arg10[%c2_594, %c0_595, %c0_596], %756 {strides = array<i32>} : memref<4x2x32xf32, #tpu.memory_space<vmem>>, vector<1x2x32xf32>,
    %c2_597 = arith.constant 2 : index
    %c0_598 = arith.constant 0 : index
    %757 = vector.load %arg14[%c2_597, %c0_598] : memref<4x32xf32, #tpu.memory_space<vmem>>, vector<2x32xf32>
    %c3_599 = arith.constant 3 : index
    %c0_600 = arith.constant 0 : index
    %c0_601 = arith.constant 0 : index
    %758 = vector.load %arg10[%c3_599, %c0_600, %c0_601] : memref<4x2x32xf32, #tpu.memory_space<vmem>>, vector<1x2x32xf32>
    %759 = vector.shape_cast %758 : vector<1x2x32xf32> to vector<2x32xf32>
    %760 = vector.shape_cast %757 : vector<2x32xf32> to vector<1x2x32xf32>
    tpu.vector_store %arg10[%c3_599, %c0_600, %c0_601], %760 {strides = array<i32>} : memref<4x2x32xf32, #tpu.memory_space<vmem>>, vector<1x2x32xf32>,
    %c0_602 = arith.constant 0 : index
    %c0_603 = arith.constant 0 : index
    %761 = vector.load %arg15[%c0_602, %c0_603] : memref<4x32xf32, #tpu.memory_space<vmem>>, vector<2x32xf32>
    %c2_604 = arith.constant 2 : index
    %c0_605 = arith.constant 0 : index
    %c0_606 = arith.constant 0 : index
    %762 = vector.load %arg11[%c2_604, %c0_605, %c0_606] : memref<4x2x32xf32, #tpu.memory_space<vmem>>, vector<1x2x32xf32>
    %763 = vector.shape_cast %762 : vector<1x2x32xf32> to vector<2x32xf32>
    %764 = vector.shape_cast %761 : vector<2x32xf32> to vector<1x2x32xf32>
    tpu.vector_store %arg11[%c2_604, %c0_605, %c0_606], %764 {strides = array<i32>} : memref<4x2x32xf32, #tpu.memory_space<vmem>>, vector<1x2x32xf32>,
    %c2_607 = arith.constant 2 : index
    %c0_608 = arith.constant 0 : index
    %765 = vector.load %arg15[%c2_607, %c0_608] : memref<4x32xf32, #tpu.memory_space<vmem>>, vector<2x32xf32>
    %c3_609 = arith.constant 3 : index
    %c0_610 = arith.constant 0 : index
    %c0_611 = arith.constant 0 : index
    %766 = vector.load %arg11[%c3_609, %c0_610, %c0_611] : memref<4x2x32xf32, #tpu.memory_space<vmem>>, vector<1x2x32xf32>
    %767 = vector.shape_cast %766 : vector<1x2x32xf32> to vector<2x32xf32>
    %768 = vector.shape_cast %765 : vector<2x32xf32> to vector<1x2x32xf32>
    tpu.vector_store %arg11[%c3_609, %c0_610, %c0_611], %768 {strides = array<i32>} : memref<4x2x32xf32, #tpu.memory_space<vmem>>, vector<1x2x32xf32>,
    %c0_612 = arith.constant 0 : index
    %c0_613 = arith.constant 0 : index
    %c0_614 = arith.constant 0 : index
    %769 = vector.load %arg13[%c0_612, %c0_613, %c0_614] : memref<8x2x64xf32, #tpu.memory_space<vmem>>, vector<1x2x64xf32>
    %770 = vector.shape_cast %769 : vector<1x2x64xf32> to vector<2x64xf32>
    %c0_615 = arith.constant 0 : index
    %c0_616 = arith.constant 0 : index
    %771 = vector.load %arg7[%c0_615, %c0_616] : memref<64x128xf32, #tpu.memory_space<vmem>>, vector<64x128xf32>
    %cst_617 = arith.constant dense<0.000000e+00> : vector<2x128xf32>
    %772 = tpu.matmul %770, %771, %cst_617 {dimension_numbers = #tpu.dot_dimension_numbers<[1], [0], [0], [1], [0, 0, 1, 1], [], []>} : vector<2x64xf32>, vector<64x128xf32>, vector<2x128xf32> -> vector<2x128xf32>
    %c0_618 = arith.constant 0 : index
    %c0_619 = arith.constant 0 : index
    %773 = vector.load %arg8[%c0_618, %c0_619] : memref<1x128xf32, #tpu.memory_space<vmem>>, vector<1x128xf32>
    %774 = vector.broadcast %773 : vector<1x128xf32> to vector<2x128xf32>
    %775 = arith.addf %772, %774 : vector<2x128xf32>
    %c0_620 = arith.constant 0 : index
    %c0_621 = arith.constant 0 : index
    %c0_622 = arith.constant 0 : index
    %776 = vector.load %arg9[%c0_620, %c0_621, %c0_622] : memref<8x2x128xf32, #tpu.memory_space<vmem>>, vector<1x2x128xf32>
    %777 = vector.shape_cast %776 : vector<1x2x128xf32> to vector<2x128xf32>
    %778 = vector.shape_cast %775 : vector<2x128xf32> to vector<1x2x128xf32>
    tpu.vector_store %arg9[%c0_620, %c0_621, %c0_622], %778 {strides = array<i32>} : memref<8x2x128xf32, #tpu.memory_space<vmem>>, vector<1x2x128xf32>,
    %c1_623 = arith.constant 1 : index
    %c0_624 = arith.constant 0 : index
    %c0_625 = arith.constant 0 : index
    %779 = vector.load %arg13[%c1_623, %c0_624, %c0_625] : memref<8x2x64xf32, #tpu.memory_space<vmem>>, vector<1x2x64xf32>
    %780 = vector.shape_cast %779 : vector<1x2x64xf32> to vector<2x64xf32>
    %c0_626 = arith.constant 0 : index
    %c0_627 = arith.constant 0 : index
    %781 = vector.load %arg7[%c0_626, %c0_627] : memref<64x128xf32, #tpu.memory_space<vmem>>, vector<64x128xf32>
    %cst_628 = arith.constant dense<0.000000e+00> : vector<2x128xf32>
    %782 = tpu.matmul %780, %781, %cst_628 {dimension_numbers = #tpu.dot_dimension_numbers<[1], [0], [0], [1], [0, 0, 1, 1], [], []>} : vector<2x64xf32>, vector<64x128xf32>, vector<2x128xf32> -> vector<2x128xf32>
    %c0_629 = arith.constant 0 : index
    %c0_630 = arith.constant 0 : index
    %783 = vector.load %arg8[%c0_629, %c0_630] : memref<1x128xf32, #tpu.memory_space<vmem>>, vector<1x128xf32>
    %784 = vector.broadcast %783 : vector<1x128xf32> to vector<2x128xf32>
    %785 = arith.addf %782, %784 : vector<2x128xf32>
    %c1_631 = arith.constant 1 : index
    %c0_632 = arith.constant 0 : index
    %c0_633 = arith.constant 0 : index
    %786 = vector.load %arg9[%c1_631, %c0_632, %c0_633] : memref<8x2x128xf32, #tpu.memory_space<vmem>>, vector<1x2x128xf32>
    %787 = vector.shape_cast %786 : vector<1x2x128xf32> to vector<2x128xf32>
    %788 = vector.shape_cast %785 : vector<2x128xf32> to vector<1x2x128xf32>
    tpu.vector_store %arg9[%c1_631, %c0_632, %c0_633], %788 {strides = array<i32>} : memref<8x2x128xf32, #tpu.memory_space<vmem>>, vector<1x2x128xf32>,
    %c2_634 = arith.constant 2 : index
    %c0_635 = arith.constant 0 : index
    %c0_636 = arith.constant 0 : index
    %789 = vector.load %arg13[%c2_634, %c0_635, %c0_636] : memref<8x2x64xf32, #tpu.memory_space<vmem>>, vector<1x2x64xf32>
    %790 = vector.shape_cast %789 : vector<1x2x64xf32> to vector<2x64xf32>
    %c0_637 = arith.constant 0 : index
    %c0_638 = arith.constant 0 : index
    %791 = vector.load %arg7[%c0_637, %c0_638] : memref<64x128xf32, #tpu.memory_space<vmem>>, vector<64x128xf32>
    %cst_639 = arith.constant dense<0.000000e+00> : vector<2x128xf32>
    %792 = tpu.matmul %790, %791, %cst_639 {dimension_numbers = #tpu.dot_dimension_numbers<[1], [0], [0], [1], [0, 0, 1, 1], [], []>} : vector<2x64xf32>, vector<64x128xf32>, vector<2x128xf32> -> vector<2x128xf32>
    %c0_640 = arith.constant 0 : index
    %c0_641 = arith.constant 0 : index
    %793 = vector.load %arg8[%c0_640, %c0_641] : memref<1x128xf32, #tpu.memory_space<vmem>>, vector<1x128xf32>
    %794 = vector.broadcast %793 : vector<1x128xf32> to vector<2x128xf32>
    %795 = arith.addf %792, %794 : vector<2x128xf32>
    %c2_642 = arith.constant 2 : index
    %c0_643 = arith.constant 0 : index
    %c0_644 = arith.constant 0 : index
    %796 = vector.load %arg9[%c2_642, %c0_643, %c0_644] : memref<8x2x128xf32, #tpu.memory_space<vmem>>, vector<1x2x128xf32>
    %797 = vector.shape_cast %796 : vector<1x2x128xf32> to vector<2x128xf32>
    %798 = vector.shape_cast %795 : vector<2x128xf32> to vector<1x2x128xf32>
    tpu.vector_store %arg9[%c2_642, %c0_643, %c0_644], %798 {strides = array<i32>} : memref<8x2x128xf32, #tpu.memory_space<vmem>>, vector<1x2x128xf32>,
    %c3_645 = arith.constant 3 : index
    %c0_646 = arith.constant 0 : index
    %c0_647 = arith.constant 0 : index
    %799 = vector.load %arg13[%c3_645, %c0_646, %c0_647] : memref<8x2x64xf32, #tpu.memory_space<vmem>>, vector<1x2x64xf32>
    %800 = vector.shape_cast %799 : vector<1x2x64xf32> to vector<2x64xf32>
    %c0_648 = arith.constant 0 : index
    %c0_649 = arith.constant 0 : index
    %801 = vector.load %arg7[%c0_648, %c0_649] : memref<64x128xf32, #tpu.memory_space<vmem>>, vector<64x128xf32>
    %cst_650 = arith.constant dense<0.000000e+00> : vector<2x128xf32>
    %802 = tpu.matmul %800, %801, %cst_650 {dimension_numbers = #tpu.dot_dimension_numbers<[1], [0], [0], [1], [0, 0, 1, 1], [], []>} : vector<2x64xf32>, vector<64x128xf32>, vector<2x128xf32> -> vector<2x128xf32>
    %c0_651 = arith.constant 0 : index
    %c0_652 = arith.constant 0 : index
    %803 = vector.load %arg8[%c0_651, %c0_652] : memref<1x128xf32, #tpu.memory_space<vmem>>, vector<1x128xf32>
    %804 = vector.broadcast %803 : vector<1x128xf32> to vector<2x128xf32>
    %805 = arith.addf %802, %804 : vector<2x128xf32>
    %c3_653 = arith.constant 3 : index
    %c0_654 = arith.constant 0 : index
    %c0_655 = arith.constant 0 : index
    %806 = vector.load %arg9[%c3_653, %c0_654, %c0_655] : memref<8x2x128xf32, #tpu.memory_space<vmem>>, vector<1x2x128xf32>
    %807 = vector.shape_cast %806 : vector<1x2x128xf32> to vector<2x128xf32>
    %808 = vector.shape_cast %805 : vector<2x128xf32> to vector<1x2x128xf32>
    tpu.vector_store %arg9[%c3_653, %c0_654, %c0_655], %808 {strides = array<i32>} : memref<8x2x128xf32, #tpu.memory_space<vmem>>, vector<1x2x128xf32>,
    %c4_656 = arith.constant 4 : index
    %c0_657 = arith.constant 0 : index
    %c0_658 = arith.constant 0 : index
    %809 = vector.load %arg13[%c4_656, %c0_657, %c0_658] : memref<8x2x64xf32, #tpu.memory_space<vmem>>, vector<1x2x64xf32>
    %810 = vector.shape_cast %809 : vector<1x2x64xf32> to vector<2x64xf32>
    %c0_659 = arith.constant 0 : index
    %c0_660 = arith.constant 0 : index
    %811 = vector.load %arg7[%c0_659, %c0_660] : memref<64x128xf32, #tpu.memory_space<vmem>>, vector<64x128xf32>
    %cst_661 = arith.constant dense<0.000000e+00> : vector<2x128xf32>
    %812 = tpu.matmul %810, %811, %cst_661 {dimension_numbers = #tpu.dot_dimension_numbers<[1], [0], [0], [1], [0, 0, 1, 1], [], []>} : vector<2x64xf32>, vector<64x128xf32>, vector<2x128xf32> -> vector<2x128xf32>
    %c0_662 = arith.constant 0 : index
    %c0_663 = arith.constant 0 : index
    %813 = vector.load %arg8[%c0_662, %c0_663] : memref<1x128xf32, #tpu.memory_space<vmem>>, vector<1x128xf32>
    %814 = vector.broadcast %813 : vector<1x128xf32> to vector<2x128xf32>
    %815 = arith.addf %812, %814 : vector<2x128xf32>
    %c4_664 = arith.constant 4 : index
    %c0_665 = arith.constant 0 : index
    %c0_666 = arith.constant 0 : index
    %816 = vector.load %arg9[%c4_664, %c0_665, %c0_666] : memref<8x2x128xf32, #tpu.memory_space<vmem>>, vector<1x2x128xf32>
    %817 = vector.shape_cast %816 : vector<1x2x128xf32> to vector<2x128xf32>
    %818 = vector.shape_cast %815 : vector<2x128xf32> to vector<1x2x128xf32>
    tpu.vector_store %arg9[%c4_664, %c0_665, %c0_666], %818 {strides = array<i32>} : memref<8x2x128xf32, #tpu.memory_space<vmem>>, vector<1x2x128xf32>,
    %c5_667 = arith.constant 5 : index
    %c0_668 = arith.constant 0 : index
    %c0_669 = arith.constant 0 : index
    %819 = vector.load %arg13[%c5_667, %c0_668, %c0_669] : memref<8x2x64xf32, #tpu.memory_space<vmem>>, vector<1x2x64xf32>
    %820 = vector.shape_cast %819 : vector<1x2x64xf32> to vector<2x64xf32>
    %c0_670 = arith.constant 0 : index
    %c0_671 = arith.constant 0 : index
    %821 = vector.load %arg7[%c0_670, %c0_671] : memref<64x128xf32, #tpu.memory_space<vmem>>, vector<64x128xf32>
    %cst_672 = arith.constant dense<0.000000e+00> : vector<2x128xf32>
    %822 = tpu.matmul %820, %821, %cst_672 {dimension_numbers = #tpu.dot_dimension_numbers<[1], [0], [0], [1], [0, 0, 1, 1], [], []>} : vector<2x64xf32>, vector<64x128xf32>, vector<2x128xf32> -> vector<2x128xf32>
    %c0_673 = arith.constant 0 : index
    %c0_674 = arith.constant 0 : index
    %823 = vector.load %arg8[%c0_673, %c0_674] : memref<1x128xf32, #tpu.memory_space<vmem>>, vector<1x128xf32>
    %824 = vector.broadcast %823 : vector<1x128xf32> to vector<2x128xf32>
    %825 = arith.addf %822, %824 : vector<2x128xf32>
    %c5_675 = arith.constant 5 : index
    %c0_676 = arith.constant 0 : index
    %c0_677 = arith.constant 0 : index
    %826 = vector.load %arg9[%c5_675, %c0_676, %c0_677] : memref<8x2x128xf32, #tpu.memory_space<vmem>>, vector<1x2x128xf32>
    %827 = vector.shape_cast %826 : vector<1x2x128xf32> to vector<2x128xf32>
    %828 = vector.shape_cast %825 : vector<2x128xf32> to vector<1x2x128xf32>
    tpu.vector_store %arg9[%c5_675, %c0_676, %c0_677], %828 {strides = array<i32>} : memref<8x2x128xf32, #tpu.memory_space<vmem>>, vector<1x2x128xf32>,
    %c6_678 = arith.constant 6 : index
    %c0_679 = arith.constant 0 : index
    %c0_680 = arith.constant 0 : index
    %829 = vector.load %arg13[%c6_678, %c0_679, %c0_680] : memref<8x2x64xf32, #tpu.memory_space<vmem>>, vector<1x2x64xf32>
    %830 = vector.shape_cast %829 : vector<1x2x64xf32> to vector<2x64xf32>
    %c0_681 = arith.constant 0 : index
    %c0_682 = arith.constant 0 : index
    %831 = vector.load %arg7[%c0_681, %c0_682] : memref<64x128xf32, #tpu.memory_space<vmem>>, vector<64x128xf32>
    %cst_683 = arith.constant dense<0.000000e+00> : vector<2x128xf32>
    %832 = tpu.matmul %830, %831, %cst_683 {dimension_numbers = #tpu.dot_dimension_numbers<[1], [0], [0], [1], [0, 0, 1, 1], [], []>} : vector<2x64xf32>, vector<64x128xf32>, vector<2x128xf32> -> vector<2x128xf32>
    %c0_684 = arith.constant 0 : index
    %c0_685 = arith.constant 0 : index
    %833 = vector.load %arg8[%c0_684, %c0_685] : memref<1x128xf32, #tpu.memory_space<vmem>>, vector<1x128xf32>
    %834 = vector.broadcast %833 : vector<1x128xf32> to vector<2x128xf32>
    %835 = arith.addf %832, %834 : vector<2x128xf32>
    %c6_686 = arith.constant 6 : index
    %c0_687 = arith.constant 0 : index
    %c0_688 = arith.constant 0 : index
    %836 = vector.load %arg9[%c6_686, %c0_687, %c0_688] : memref<8x2x128xf32, #tpu.memory_space<vmem>>, vector<1x2x128xf32>
    %837 = vector.shape_cast %836 : vector<1x2x128xf32> to vector<2x128xf32>
    %838 = vector.shape_cast %835 : vector<2x128xf32> to vector<1x2x128xf32>
    tpu.vector_store %arg9[%c6_686, %c0_687, %c0_688], %838 {strides = array<i32>} : memref<8x2x128xf32, #tpu.memory_space<vmem>>, vector<1x2x128xf32>,
    %c7_689 = arith.constant 7 : index
    %c0_690 = arith.constant 0 : index
    %c0_691 = arith.constant 0 : index
    %839 = vector.load %arg13[%c7_689, %c0_690, %c0_691] : memref<8x2x64xf32, #tpu.memory_space<vmem>>, vector<1x2x64xf32>
    %840 = vector.shape_cast %839 : vector<1x2x64xf32> to vector<2x64xf32>
    %c0_692 = arith.constant 0 : index
    %c0_693 = arith.constant 0 : index
    %841 = vector.load %arg7[%c0_692, %c0_693] : memref<64x128xf32, #tpu.memory_space<vmem>>, vector<64x128xf32>
    %cst_694 = arith.constant dense<0.000000e+00> : vector<2x128xf32>
    %842 = tpu.matmul %840, %841, %cst_694 {dimension_numbers = #tpu.dot_dimension_numbers<[1], [0], [0], [1], [0, 0, 1, 1], [], []>} : vector<2x64xf32>, vector<64x128xf32>, vector<2x128xf32> -> vector<2x128xf32>
    %c0_695 = arith.constant 0 : index
    %c0_696 = arith.constant 0 : index
    %843 = vector.load %arg8[%c0_695, %c0_696] : memref<1x128xf32, #tpu.memory_space<vmem>>, vector<1x128xf32>
    %844 = vector.broadcast %843 : vector<1x128xf32> to vector<2x128xf32>
    %845 = arith.addf %842, %844 : vector<2x128xf32>
    %c7_697 = arith.constant 7 : index
    %c0_698 = arith.constant 0 : index
    %c0_699 = arith.constant 0 : index
    %846 = vector.load %arg9[%c7_697, %c0_698, %c0_699] : memref<8x2x128xf32, #tpu.memory_space<vmem>>, vector<1x2x128xf32>
    %847 = vector.shape_cast %846 : vector<1x2x128xf32> to vector<2x128xf32>
    %848 = vector.shape_cast %845 : vector<2x128xf32> to vector<1x2x128xf32>
    tpu.vector_store %arg9[%c7_697, %c0_698, %c0_699], %848 {strides = array<i32>} : memref<8x2x128xf32, #tpu.memory_space<vmem>>, vector<1x2x128xf32>,
    return
  }
}

</mosaic_0001>

<llo_original>
// kernel: decoder_forward.1
$region0: #{decoder_forward.1}
  #allocation0 [shape = 'u32[]', space=smem, size = 0x4, offset = 0x4, fixed_abs, tag = 'smem constant byte address 0x4 - core index']
  #allocation1 [shape = 'u32[144,128]{1,0:T(1,128)}', space=vmem, size = 0x12000, scoped, tag = 'internal scratch']
  #allocation2 [shape = 'f32[8,2,64]{2,1,0:T(2,128)}', space=vmem, size = 0x2000, scoped, tag = 'scratch operand']
  #allocation3 [shape = 'f32[8,2,64]{2,1,0:T(2,128)}', space=vmem, size = 0x2000, scoped, tag = 'scratch operand']
  #allocation4 [shape = 'f32[4,32]{1,0:T(4,128)}', space=vmem, size = 0x800, scoped, tag = 'scratch operand']
  #allocation5 [shape = 'f32[4,32]{1,0:T(4,128)}', space=vmem, size = 0x800, scoped, tag = 'scratch operand']
  #allocation6 [shape = 'f32[4,96]{1,0:T(4,128)}', space=vmem, size = 0x800, scoped, tag = 'scratch operand']
  %s0 = inlined_call_operand.vmem [shape: f32[8,2,16], index: 0, kind: input, shape index: {}]
  %s1 = inlined_call_operand.vmem [shape: f32[48,256], index: 1, kind: input, shape index: {}]
  %s2 = inlined_call_operand.vmem [shape: f32[1,256], index: 2, kind: input, shape index: {}]
  %s3 = inlined_call_operand.vmem [shape: f32[96,256], index: 3, kind: input, shape index: {}]
  %s4 = inlined_call_operand.vmem [shape: f32[1,256], index: 4, kind: input, shape index: {}]
  %s5 = inlined_call_operand.vmem [shape: f32[4,2,32], index: 5, kind: input, shape index: {}]
  %s6 = inlined_call_operand.vmem [shape: f32[4,2,32], index: 6, kind: input, shape index: {}]
  %s7 = inlined_call_operand.vmem [shape: f32[64,128], index: 7, kind: input, shape index: {}]
  %s8 = inlined_call_operand.vmem [shape: f32[1,128], index: 8, kind: input, shape index: {}]
  %s9 = inlined_call_operand.vmem [shape: f32[8,2,128], index: 9, kind: output, shape index: {0}]
  %s10 = inlined_call_operand.hbm [shape: f32[4,2,32], index: 10, kind: output, shape index: {1}]
  %s11 = inlined_call_operand.hbm [shape: f32[4,2,32], index: 11, kind: output, shape index: {2}]
  %12 = xla_tuple %s9, %s10, %s11
  %s13 = sld [smem:[#allocation0]]
  $region62: #{decoder_forward.1} parent=0
    _
  %s15 = ssub.s32 1, %s13
  %s16 = scalar_select 0, %s15, %s13
  $region1: #{decoder_forward.1} parent=0
    #allocation7 [shape = 'u8[4096]{0}', space=vmem, size = 0x1000, scoped, tag = 'output window, operand 1, single buffered']
    #allocation8 [shape = 's32[1]{0}', space=sflag, size = 0x4, scoped, tag = 'scoped memory for decoder_forward.1']
    #allocation9 [shape = 'u8[4096]{0}', space=vmem, size = 0x1000, scoped, tag = 'output window, operand 2, single buffered']
    #allocation10 [shape = 's32[1]{0}', space=sflag, size = 0x4, scoped, tag = 'scoped memory for decoder_forward.1']
    %17 = vsyncpa [#allocation8], 0
    %18 = vsyncpa [#allocation10], 0
    // Predicated region
    $region2: #{decoder_forward.1} parent=1 // pred_check
      _
    $region3: #{decoder_forward.1} parent=1 // pred_check_branch
      %20 = sbr.rel (0) target = $region5
    $region4: #{decoder_forward.1} parent=1 // pred_region
      _
    $region5: #{decoder_forward.1} parent=1 // pred_fallthru
      _
    // Predicated region
    $region6: #{decoder_forward.1} parent=1 // pred_check
      _
    $region7: #{decoder_forward.1} parent=1 // pred_check_branch
      %22 = sbr.rel (0) target = $region9
    $region8: #{decoder_forward.1} parent=1 // pred_region
      _
    $region9: #{decoder_forward.1} parent=1 // pred_fallthru
      _
    // Predicated region
    $region10: #{decoder_forward.1} parent=1 // pred_check
      _
    $region11: #{decoder_forward.1} parent=1 // pred_check_branch
      %24 = sbr.rel (0) target = $region13
    $region12: #{decoder_forward.1} parent=1 // pred_region
      _
    $region13: #{decoder_forward.1} parent=1 // pred_fallthru
      _
    // Predicated region
    $region14: #{decoder_forward.1} parent=1 // pred_check
      _
    $region15: #{decoder_forward.1} parent=1 // pred_check_branch
      %26 = sbr.rel (0) target = $region17
    $region16: #{decoder_forward.1} parent=1 // pred_region
      _
    $region17: #{decoder_forward.1} parent=1 // pred_fallthru
      _
    // Predicated region
    $region18: #{decoder_forward.1} parent=1 // pred_check
      _
    $region19: #{decoder_forward.1} parent=1 // pred_check_branch
      %28 = sbr.rel (0) target = $region21
    $region20: #{decoder_forward.1} parent=1 // pred_region
      _
    $region21: #{decoder_forward.1} parent=1 // pred_fallthru
      _
    // Predicated region
    $region22: #{decoder_forward.1} parent=1 // pred_check
      _
    $region23: #{decoder_forward.1} parent=1 // pred_check_branch
      %30 = sbr.rel (0) target = $region25
    $region24: #{decoder_forward.1} parent=1 // pred_region
      _
    $region25: #{decoder_forward.1} parent=1 // pred_fallthru
      _
    // Predicated region
    $region26: #{decoder_forward.1} parent=1 // pred_check
      _
    $region27: #{decoder_forward.1} parent=1 // pred_check_branch
      %32 = sbr.rel (0) target = $region29
    $region28: #{decoder_forward.1} parent=1 // pred_region
      _
    $region29: #{decoder_forward.1} parent=1 // pred_fallthru
      _
    // Predicated region
    $region30: #{decoder_forward.1} parent=1 // pred_check
      _
    $region31: #{decoder_forward.1} parent=1 // pred_check_branch
      %34 = sbr.rel (0) target = $region33
    $region32: #{decoder_forward.1} parent=1 // pred_region
      _
    $region33: #{decoder_forward.1} parent=1 // pred_fallthru
      _
    // Predicated region
    $region34: #{decoder_forward.1} parent=1 // pred_check
      _
    $region35: #{decoder_forward.1} parent=1 // pred_check_branch
      %36 = sbr.rel (0) target = $region37
    $region36: #{decoder_forward.1} parent=1 // pred_region
      _
    $region37: #{decoder_forward.1} parent=1 // pred_fallthru
      _
    %v37 = vlaneseq
    %v38 = vand.u32 %v37, 127
    %vm39 = vcmp.ge.s32.totalorder %v38, 64
    %vm40 = vcmp.lt.s32.totalorder %v38, 96
    %vm41 = vmand %vm39, %vm40
    %v42 = vlaneseq
    %v43 = vshrl.u32 %v42, 7
    %vm44 = vcmp.lt.s32.totalorder %v43, 2
    %v45 = vld [vmem:[%s5] sm:$0x3]
    %vm46 = vcmask 254976
    %47 = vst.msk [vmem:[#allocation4] sm:$0x3] %vm46, %v45
    %s48 = scalar_lea.vmem %s5, 2
    %v49 = vld [vmem:[%s48] sm:$0x3]
    %50 = vst.msk [vmem:[#allocation4 + $0x2] sm:$0x3] %vm46, %v49
    %v51 = vld [vmem:[%s6] sm:$0x3]
    %52 = vst.msk [vmem:[#allocation5] sm:$0x3] %vm46, %v51
    %s53 = scalar_lea.vmem %s6, 2
    %v54 = vld [vmem:[%s53] sm:$0x3]
    %55 = vst.msk [vmem:[#allocation5 + $0x2] sm:$0x3] %vm46, %v54
    %v56 = vld [vmem:[%s0] sm:$0x3]
    %vm57 = vcmask 123904
    %58 = vst.msk [vmem:[#allocation6] sm:$0x3] %vm57, %v56
    %s59 = scalar_lea.vmem %s0, 14
    %v60 = vld [vmem:[%s59] sm:$0x3]
    %61 = vst.msk [vmem:[#allocation6 + $0x2] sm:$0x3] %vm57, %v60
    %v62 = vld [vmem:[#allocation4] sm:$0xf]
    %64 = vrot.lane.b32.xlu0 %v62, 16
    %v65 = vpop.permute.xlu0 %64
    %vm67 = vcmask 388224
    %68 = vst.msk [vmem:[#allocation6] sm:$0xf] %vm67, %v65
    %v69 = vld [vmem:[#allocation6] sm:$0xf]
    %v70 = vld [vmem:[%s1] sm:$0xff]
    %v71 = vld [vmem:[%s1 + $0x8] sm:$0xff]
    %v72 = vld [vmem:[%s1 + $0x10] sm:$0xff]
    %v73 = vld [vmem:[%s1 + $0x18] sm:$0xff]
    %v74 = vld [vmem:[%s1 + $0x20] sm:$0xff]
    %v75 = vld [vmem:[%s1 + $0x28] sm:$0xff]
    %v76 = vld [vmem:[%s1 + $0x30] sm:$0xff]
    %v77 = vld [vmem:[%s1 + $0x38] sm:$0xff]
    %v78 = vld [vmem:[%s1 + $0x40] sm:$0xff]
    %v79 = vld [vmem:[%s1 + $0x48] sm:$0xff]
    %v80 = vld [vmem:[%s1 + $0x50] sm:$0xff]
    %v81 = vld [vmem:[%s1 + $0x58] sm:$0xff]
    %v82 = vld [vmem:[%s2] sm:$0x3]
    %v84 = vlaneseq
    %v85 = vshrl.u32 %v84, 7
    %v86 = vsub.s32 0, %v85
    %v87 = vrot.slane %v82, %v86
    %v88 = vlaneseq
    %v89 = vshrl.u32 %v88, 7
    %v90 = vsub.s32 1, %v89
    %v91 = vrot.slane %v82, %v90
    %vm94 = vcmask 392192
    %v96 = vsel %vm94, %v69, 0
    %98 = vmatprep.subr.mxu0 0.0
    %99 = vmatpush1.msra.mxu0 0.0
    %100 = vmatprep.subr.mxu0 0.0
    %101 = vmatpush1.msra.mxu0 0.0
    %102 = vmatprep.subr.mxu0 0.0
    %103 = vmatpush1.msra.mxu0 0.0
    %104 = vmatprep.subr.mxu0 0.0
    %105 = vmatpush1.msra.mxu0 0.0
    %106 = vmatprep.subr.mxu0 0.0
    %107 = vmatpush1.msra.mxu0 0.0
    %108 = vmatprep.subr.mxu0 0.0
    %109 = vmatpush1.msra.mxu0 0.0
    %110 = vmatprep.subr.mxu0 0.0
    %111 = vmatpush1.msra.mxu0 0.0
    %112 = vmatprep.subr.mxu0 0.0
    %113 = vmatpush1.msra.mxu0 0.0
    %114 = vmatprep.subr.mxu0 0.0
    %115 = vmatpush1.msra.mxu0 0.0
    %116 = vmatprep.subr.mxu0 0.0
    %117 = vmatpush1.msra.mxu0 0.0
    %118 = vmatprep.subr.mxu0 %v81
    %119 = vmatpush1.msra.mxu0 %v80
    %120 = vmatprep.subr.mxu0 %v79
    %121 = vmatpush1.msra.mxu0 %v78
    %122 = vmatprep.subr.mxu0 %v77
    %123 = vmatpush1.msra.mxu0 %v76
    %124 = vmatprep.subr.mxu0 %v75
    %125 = vmatpush1.msra.mxu0 %v74
    %126 = vmatprep.subr.mxu0 %v73
    %127 = vmatpush1.msra.mxu0 %v72
    %128 = vmatprep.subr.mxu0 %v71
    %129 = vmatpush1.msra.mxu0 %v70
    %130 = vmatprep.subr.mxu0 0.0
    %131 = vmatpush2.msra.mxu0 0.0
    %132 = vmatprep.subr.mxu0 0.0
    %133 = vmatpush2.msra.mxu0 0.0
    %134 = vmatprep.subr.mxu0 0.0
    %135 = vmatpush2.msra.mxu0 0.0
    %136 = vmatprep.subr.mxu0 0.0
    %137 = vmatpush2.msra.mxu0 0.0
    %138 = vmatprep.subr.mxu0 0.0
    %139 = vmatpush2.msra.mxu0 0.0
    %140 = vmatprep.subr.mxu0 0.0
    %141 = vmatpush2.msra.mxu0 0.0
    %142 = vmatprep.subr.mxu0 0.0
    %143 = vmatpush2.msra.mxu0 0.0
    %144 = vmatprep.subr.mxu0 0.0
    %145 = vmatpush2.msra.mxu0 0.0
    %146 = vmatprep.subr.mxu0 0.0
    %147 = vmatpush2.msra.mxu0 0.0
    %148 = vmatprep.subr.mxu0 0.0
    %149 = vmatpush2.msra.mxu0 0.0
    %150 = vmatprep.subr.mxu0 0.0
    %151 = vmatpush2.msra.mxu0 0.0
    %152 = vmatprep.subr.mxu0 0.0
    %153 = vmatpush2.msra.mxu0 0.0
    %154 = vmatprep.subr.mxu0 0.0
    %155 = vmatpush2.msra.mxu0 0.0
    %156 = vmatprep.subr.mxu0 0.0
    %157 = vmatpush2.msra.mxu0 0.0
    %158 = vmatprep.subr.mxu0 0.0
    %159 = vmatpush2.msra.mxu0 0.0
    %160 = vmatprep.subr.mxu0 0.0
    %161 = vmatpush2.msra.mxu0 0.0
    %162 = vmatprep.mubr.f32.mxu0 0.0
    %163 = vmatmul.mubr.f32.gmra.mxu0 %v96
    %v164 = vpop.f32.mrf.mxu0
    %v165 = vadd.f32 %v87, %v164
    %v166 = vpop.f32.mrf.mxu0
    %v167 = vadd.f32 %v91, %v166
    %168 = vdwg.mxu0
    %v169 = vsel %vm44, %v165, %v167
    %v170 = vtanh.pop %v169
    %v171 = vxor.u32 %v169, 2147483648
    %v172 = vmul.f32 %v171, 1.442695
    %v173 = vpow.pop %v172
    %v174 = vadd.f32 %v173, 1.0
    %v175 = vrcp.pop %v174
    %v176 = vmul.f32 1.0, %v175
    %v177 = vsel %vm41, %v170, %v176
    %v178 = vld [vmem:[#allocation5] sm:$0xf]
    %180 = vrot.lane.b32.xlu0 %v178, 32
    %v181 = vpop.permute.xlu0 %180
    %v183 = vmul.f32 %v177, %v181
    %185 = vrot.lane.b32.xlu0 %v177, 64
    %v186 = vpop.permute.xlu0 %185
    %v188 = vmul.f32 %v177, %v186
    %190 = vrot.lane.b32.xlu0 %v188, 32
    %v191 = vpop.permute.xlu0 %190
    %v193 = vadd.f32 %v183, %v191
    %v194 = vtanh.pop %v193
    %196 = vrot.lane.b32.xlu0 %v194, 64
    %v197 = vpop.permute.xlu0 %196
    %v199 = vmul.f32 %v177, %v197
    %201 = vrot.lane.b32.xlu0 %v199, 32
    %v202 = vpop.permute.xlu0 %201
    %vm204 = vcmask 257024
    %205 = vst.msk [vmem:[#allocation4] sm:$0xf] %vm204, %v202
    %207 = vrot.lane.b32.xlu0 %v193, 96
    %v208 = vpop.permute.xlu0 %207
    %210 = vst.msk [vmem:[#allocation5] sm:$0xf] %vm204, %v208
    %211 = vst.msk [vmem:[#allocation2] sm:$0x3] %vm46, %v202
    %212 = vrot.lane.b32.xlu0 %v199, 64
    %v213 = vpop.permute.xlu0 %212
    %s215 = scalar_lea.vmem [#allocation2], 14
    %vm216 = vcmask 519426
    %217 = vst.msk [vmem:[%s215 - $0x2] sm:$0xc] %vm216, %v213
    %s218 = scalar_lea.vmem %s0, 2
    %v219 = vld [vmem:[%s218] sm:$0x3]
    %220 = vst.msk [vmem:[#allocation6] sm:$0x3] %vm57, %v219
    %s221 = scalar_lea.vmem %s0, 12
    %v222 = vld [vmem:[%s221] sm:$0x3]
    %223 = vst.msk [vmem:[#allocation6 + $0x2] sm:$0x3] %vm57, %v222
    %v224 = vld [vmem:[#allocation4] sm:$0xf]
    %226 = vrot.lane.b32.xlu0 %v224, 16
    %v227 = vpop.permute.xlu0 %226
    %229 = vst.msk [vmem:[#allocation6] sm:$0xf] %vm67, %v227
    %v230 = vld [vmem:[#allocation6] sm:$0xf]
    %v231 = vld [vmem:[%s1] sm:$0xff]
    %v232 = vld [vmem:[%s1 + $0x8] sm:$0xff]
    %v233 = vld [vmem:[%s1 + $0x10] sm:$0xff]
    %v234 = vld [vmem:[%s1 + $0x18] sm:$0xff]
    %v235 = vld [vmem:[%s1 + $0x20] sm:$0xff]
    %v236 = vld [vmem:[%s1 + $0x28] sm:$0xff]
    %v237 = vld [vmem:[%s1 + $0x30] sm:$0xff]
    %v238 = vld [vmem:[%s1 + $0x38] sm:$0xff]
    %v239 = vld [vmem:[%s1 + $0x40] sm:$0xff]
    %v240 = vld [vmem:[%s1 + $0x48] sm:$0xff]
    %v241 = vld [vmem:[%s1 + $0x50] sm:$0xff]
    %v242 = vld [vmem:[%s1 + $0x58] sm:$0xff]
    %v243 = vld [vmem:[%s2] sm:$0x3]
    %v245 = vlaneseq
    %v246 = vshrl.u32 %v245, 7
    %v247 = vsub.s32 0, %v246
    %v248 = vrot.slane %v243, %v247
    %v249 = vlaneseq
    %v250 = vshrl.u32 %v249, 7
    %v251 = vsub.s32 1, %v250
    %v252 = vrot.slane %v243, %v251
    %v256 = vsel %vm94, %v230, 0
    %258 = vmatprep.subr.mxu0 0.0
    %259 = vmatpush1.msra.mxu0 0.0
    %260 = vmatprep.subr.mxu0 0.0
    %261 = vmatpush1.msra.mxu0 0.0
    %262 = vmatprep.subr.mxu0 0.0
    %263 = vmatpush1.msra.mxu0 0.0
    %264 = vmatprep.subr.mxu0 0.0
    %265 = vmatpush1.msra.mxu0 0.0
    %266 = vmatprep.subr.mxu0 0.0
    %267 = vmatpush1.msra.mxu0 0.0
    %268 = vmatprep.subr.mxu0 0.0
    %269 = vmatpush1.msra.mxu0 0.0
    %270 = vmatprep.subr.mxu0 0.0
    %271 = vmatpush1.msra.mxu0 0.0
    %272 = vmatprep.subr.mxu0 0.0
    %273 = vmatpush1.msra.mxu0 0.0
    %274 = vmatprep.subr.mxu0 0.0
    %275 = vmatpush1.msra.mxu0 0.0
    %276 = vmatprep.subr.mxu0 0.0
    %277 = vmatpush1.msra.mxu0 0.0
    %278 = vmatprep.subr.mxu0 %v242
    %279 = vmatpush1.msra.mxu0 %v241
    %280 = vmatprep.subr.mxu0 %v240
    %281 = vmatpush1.msra.mxu0 %v239
    %282 = vmatprep.subr.mxu0 %v238
    %283 = vmatpush1.msra.mxu0 %v237
    %284 = vmatprep.subr.mxu0 %v236
    %285 = vmatpush1.msra.mxu0 %v235
    %286 = vmatprep.subr.mxu0 %v234
    %287 = vmatpush1.msra.mxu0 %v233
    %288 = vmatprep.subr.mxu0 %v232
    %289 = vmatpush1.msra.mxu0 %v231
    %290 = vmatprep.subr.mxu0 0.0
    %291 = vmatpush2.msra.mxu0 0.0
    %292 = vmatprep.subr.mxu0 0.0
    %293 = vmatpush2.msra.mxu0 0.0
    %294 = vmatprep.subr.mxu0 0.0
    %295 = vmatpush2.msra.mxu0 0.0
    %296 = vmatprep.subr.mxu0 0.0
    %297 = vmatpush2.msra.mxu0 0.0
    %298 = vmatprep.subr.mxu0 0.0
    %299 = vmatpush2.msra.mxu0 0.0
    %300 = vmatprep.subr.mxu0 0.0
    %301 = vmatpush2.msra.mxu0 0.0
    %302 = vmatprep.subr.mxu0 0.0
    %303 = vmatpush2.msra.mxu0 0.0
    %304 = vmatprep.subr.mxu0 0.0
    %305 = vmatpush2.msra.mxu0 0.0
    %306 = vmatprep.subr.mxu0 0.0
    %307 = vmatpush2.msra.mxu0 0.0
    %308 = vmatprep.subr.mxu0 0.0
    %309 = vmatpush2.msra.mxu0 0.0
    %310 = vmatprep.subr.mxu0 0.0
    %311 = vmatpush2.msra.mxu0 0.0
    %312 = vmatprep.subr.mxu0 0.0
    %313 = vmatpush2.msra.mxu0 0.0
    %314 = vmatprep.subr.mxu0 0.0
    %315 = vmatpush2.msra.mxu0 0.0
    %316 = vmatprep.subr.mxu0 0.0
    %317 = vmatpush2.msra.mxu0 0.0
    %318 = vmatprep.subr.mxu0 0.0
    %319 = vmatpush2.msra.mxu0 0.0
    %320 = vmatprep.subr.mxu0 0.0
    %321 = vmatpush2.msra.mxu0 0.0
    %322 = vmatprep.mubr.f32.mxu0 0.0
    %323 = vmatmul.mubr.f32.gmra.mxu0 %v256
    %v324 = vpop.f32.mrf.mxu0
    %v325 = vadd.f32 %v248, %v324
    %v326 = vpop.f32.mrf.mxu0
    %v327 = vadd.f32 %v252, %v326
    %328 = vdwg.mxu0
    %v329 = vsel %vm44, %v325, %v327
    %v330 = vtanh.pop %v329
    %v331 = vxor.u32 %v329, 2147483648
    %v332 = vmul.f32 %v331, 1.442695
    %v333 = vpow.pop %v332
    %v334 = vadd.f32 %v333, 1.0
    %v335 = vrcp.pop %v334
    %v336 = vmul.f32 1.0, %v335
    %v337 = vsel %vm41, %v330, %v336
    %v338 = vld [vmem:[#allocation5] sm:$0xf]
    %340 = vrot.lane.b32.xlu0 %v338, 32
    %v341 = vpop.permute.xlu0 %340
    %v343 = vmul.f32 %v337, %v341
    %345 = vrot.lane.b32.xlu0 %v337, 64
    %v346 = vpop.permute.xlu0 %345
    %v348 = vmul.f32 %v337, %v346
    %350 = vrot.lane.b32.xlu0 %v348, 32
    %v351 = vpop.permute.xlu0 %350
    %v353 = vadd.f32 %v343, %v351
    %v354 = vtanh.pop %v353
    %356 = vrot.lane.b32.xlu0 %v354, 64
    %v357 = vpop.permute.xlu0 %356
    %v359 = vmul.f32 %v337, %v357
    %361 = vrot.lane.b32.xlu0 %v359, 32
    %v362 = vpop.permute.xlu0 %361
    %364 = vst.msk [vmem:[#allocation4] sm:$0xf] %vm204, %v362
    %366 = vrot.lane.b32.xlu0 %v353, 96
    %v367 = vpop.permute.xlu0 %366
    %369 = vst.msk [vmem:[#allocation5] sm:$0xf] %vm204, %v367
    %s370 = scalar_lea.vmem [#allocation2], 2
    %371 = vst.msk [vmem:[%s370] sm:$0x3] %vm46, %v362
    %372 = vrot.lane.b32.xlu0 %v359, 64
    %v373 = vpop.permute.xlu0 %372
    %s375 = scalar_lea.vmem [#allocation2], 12
    %376 = vst.msk [vmem:[%s375 - $0x2] sm:$0xc] %vm216, %v373
    %s377 = scalar_lea.vmem %s0, 4
    %v378 = vld [vmem:[%s377] sm:$0x3]
    %379 = vst.msk [vmem:[#allocation6] sm:$0x3] %vm57, %v378
    %s380 = scalar_lea.vmem %s0, 10
    %v381 = vld [vmem:[%s380] sm:$0x3]
    %382 = vst.msk [vmem:[#allocation6 + $0x2] sm:$0x3] %vm57, %v381
    %v383 = vld [vmem:[#allocation4] sm:$0xf]
    %385 = vrot.lane.b32.xlu0 %v383, 16
    %v386 = vpop.permute.xlu0 %385
    %388 = vst.msk [vmem:[#allocation6] sm:$0xf] %vm67, %v386
    %v389 = vld [vmem:[#allocation6] sm:$0xf]
    %v390 = vld [vmem:[%s1] sm:$0xff]
    %v391 = vld [vmem:[%s1 + $0x8] sm:$0xff]
    %v392 = vld [vmem:[%s1 + $0x10] sm:$0xff]
    %v393 = vld [vmem:[%s1 + $0x18] sm:$0xff]
    %v394 = vld [vmem:[%s1 + $0x20] sm:$0xff]
    %v395 = vld [vmem:[%s1 + $0x28] sm:$0xff]
    %v396 = vld [vmem:[%s1 + $0x30] sm:$0xff]
    %v397 = vld [vmem:[%s1 + $0x38] sm:$0xff]
    %v398 = vld [vmem:[%s1 + $0x40] sm:$0xff]
    %v399 = vld [vmem:[%s1 + $0x48] sm:$0xff]
    %v400 = vld [vmem:[%s1 + $0x50] sm:$0xff]
    %v401 = vld [vmem:[%s1 + $0x58] sm:$0xff]
    %v402 = vld [vmem:[%s2] sm:$0x3]
    %v404 = vlaneseq
    %v405 = vshrl.u32 %v404, 7
    %v406 = vsub.s32 0, %v405
    %v407 = vrot.slane %v402, %v406
    %v408 = vlaneseq
    %v409 = vshrl.u32 %v408, 7
    %v410 = vsub.s32 1, %v409
    %v411 = vrot.slane %v402, %v410
    %v415 = vsel %vm94, %v389, 0
    %417 = vmatprep.subr.mxu0 0.0
    %418 = vmatpush1.msra.mxu0 0.0
    %419 = vmatprep.subr.mxu0 0.0
    %420 = vmatpush1.msra.mxu0 0.0
    %421 = vmatprep.subr.mxu0 0.0
    %422 = vmatpush1.msra.mxu0 0.0
    %423 = vmatprep.subr.mxu0 0.0
    %424 = vmatpush1.msra.mxu0 0.0
    %425 = vmatprep.subr.mxu0 0.0
    %426 = vmatpush1.msra.mxu0 0.0
    %427 = vmatprep.subr.mxu0 0.0
    %428 = vmatpush1.msra.mxu0 0.0
    %429 = vmatprep.subr.mxu0 0.0
    %430 = vmatpush1.msra.mxu0 0.0
    %431 = vmatprep.subr.mxu0 0.0
    %432 = vmatpush1.msra.mxu0 0.0
    %433 = vmatprep.subr.mxu0 0.0
    %434 = vmatpush1.msra.mxu0 0.0
    %435 = vmatprep.subr.mxu0 0.0
    %436 = vmatpush1.msra.mxu0 0.0
    %437 = vmatprep.subr.mxu0 %v401
    %438 = vmatpush1.msra.mxu0 %v400
    %439 = vmatprep.subr.mxu0 %v399
    %440 = vmatpush1.msra.mxu0 %v398
    %441 = vmatprep.subr.mxu0 %v397
    %442 = vmatpush1.msra.mxu0 %v396
    %443 = vmatprep.subr.mxu0 %v395
    %444 = vmatpush1.msra.mxu0 %v394
    %445 = vmatprep.subr.mxu0 %v393
    %446 = vmatpush1.msra.mxu0 %v392
    %447 = vmatprep.subr.mxu0 %v391
    %448 = vmatpush1.msra.mxu0 %v390
    %449 = vmatprep.subr.mxu0 0.0
    %450 = vmatpush2.msra.mxu0 0.0
    %451 = vmatprep.subr.mxu0 0.0
    %452 = vmatpush2.msra.mxu0 0.0
    %453 = vmatprep.subr.mxu0 0.0
    %454 = vmatpush2.msra.mxu0 0.0
    %455 = vmatprep.subr.mxu0 0.0
    %456 = vmatpush2.msra.mxu0 0.0
    %457 = vmatprep.subr.mxu0 0.0
    %458 = vmatpush2.msra.mxu0 0.0
    %459 = vmatprep.subr.mxu0 0.0
    %460 = vmatpush2.msra.mxu0 0.0
    %461 = vmatprep.subr.mxu0 0.0
    %462 = vmatpush2.msra.mxu0 0.0
    %463 = vmatprep.subr.mxu0 0.0
    %464 = vmatpush2.msra.mxu0 0.0
    %465 = vmatprep.subr.mxu0 0.0
    %466 = vmatpush2.msra.mxu0 0.0
    %467 = vmatprep.subr.mxu0 0.0
    %468 = vmatpush2.msra.mxu0 0.0
    %469 = vmatprep.subr.mxu0 0.0
    %470 = vmatpush2.msra.mxu0 0.0
    %471 = vmatprep.subr.mxu0 0.0
    %472 = vmatpush2.msra.mxu0 0.0
    %473 = vmatprep.subr.mxu0 0.0
    %474 = vmatpush2.msra.mxu0 0.0
    %475 = vmatprep.subr.mxu0 0.0
    %476 = vmatpush2.msra.mxu0 0.0
    %477 = vmatprep.subr.mxu0 0.0
    %478 = vmatpush2.msra.mxu0 0.0
    %479 = vmatprep.subr.mxu0 0.0
    %480 = vmatpush2.msra.mxu0 0.0
    %481 = vmatprep.mubr.f32.mxu0 0.0
    %482 = vmatmul.mubr.f32.gmra.mxu0 %v415
    %v483 = vpop.f32.mrf.mxu0
    %v484 = vadd.f32 %v407, %v483
    %v485 = vpop.f32.mrf.mxu0
    %v486 = vadd.f32 %v411, %v485
    %487 = vdwg.mxu0
    %v488 = vsel %vm44, %v484, %v486
    %v489 = vtanh.pop %v488
    %v490 = vxor.u32 %v488, 2147483648
    %v491 = vmul.f32 %v490, 1.442695
    %v492 = vpow.pop %v491
    %v493 = vadd.f32 %v492, 1.0
    %v494 = vrcp.pop %v493
    %v495 = vmul.f32 1.0, %v494
    %v496 = vsel %vm41, %v489, %v495
    %v497 = vld [vmem:[#allocation5] sm:$0xf]
    %499 = vrot.lane.b32.xlu0 %v497, 32
    %v500 = vpop.permute.xlu0 %499
    %v502 = vmul.f32 %v496, %v500
    %504 = vrot.lane.b32.xlu0 %v496, 64
    %v505 = vpop.permute.xlu0 %504
    %v507 = vmul.f32 %v496, %v505
    %509 = vrot.lane.b32.xlu0 %v507, 32
    %v510 = vpop.permute.xlu0 %509
    %v512 = vadd.f32 %v502, %v510
    %v513 = vtanh.pop %v512
    %515 = vrot.lane.b32.xlu0 %v513, 64
    %v516 = vpop.permute.xlu0 %515
    %v518 = vmul.f32 %v496, %v516
    %520 = vrot.lane.b32.xlu0 %v518, 32
    %v521 = vpop.permute.xlu0 %520
    %523 = vst.msk [vmem:[#allocation4] sm:$0xf] %vm204, %v521
    %525 = vrot.lane.b32.xlu0 %v512, 96
    %v526 = vpop.permute.xlu0 %525
    %528 = vst.msk [vmem:[#allocation5] sm:$0xf] %vm204, %v526
    %s529 = scalar_lea.vmem [#allocation2], 4
    %530 = vst.msk [vmem:[%s529] sm:$0x3] %vm46, %v521
    %531 = vrot.lane.b32.xlu0 %v518, 64
    %v532 = vpop.permute.xlu0 %531
    %s534 = scalar_lea.vmem [#allocation2], 10
    %535 = vst.msk [vmem:[%s534 - $0x2] sm:$0xc] %vm216, %v532
    %s536 = scalar_lea.vmem %s0, 6
    %v537 = vld [vmem:[%s536] sm:$0x3]
    %538 = vst.msk [vmem:[#allocation6] sm:$0x3] %vm57, %v537
    %s539 = scalar_lea.vmem %s0, 8
    %v540 = vld [vmem:[%s539] sm:$0x3]
    %541 = vst.msk [vmem:[#allocation6 + $0x2] sm:$0x3] %vm57, %v540
    %v542 = vld [vmem:[#allocation4] sm:$0xf]
    %544 = vrot.lane.b32.xlu0 %v542, 16
    %v545 = vpop.permute.xlu0 %544
    %547 = vst.msk [vmem:[#allocation6] sm:$0xf] %vm67, %v545
    %v548 = vld [vmem:[#allocation6] sm:$0xf]
    %v549 = vld [vmem:[%s1] sm:$0xff]
    %v550 = vld [vmem:[%s1 + $0x8] sm:$0xff]
    %v551 = vld [vmem:[%s1 + $0x10] sm:$0xff]
    %v552 = vld [vmem:[%s1 + $0x18] sm:$0xff]
    %v553 = vld [vmem:[%s1 + $0x20] sm:$0xff]
    %v554 = vld [vmem:[%s1 + $0x28] sm:$0xff]
    %v555 = vld [vmem:[%s1 + $0x30] sm:$0xff]
    %v556 = vld [vmem:[%s1 + $0x38] sm:$0xff]
    %v557 = vld [vmem:[%s1 + $0x40] sm:$0xff]
    %v558 = vld [vmem:[%s1 + $0x48] sm:$0xff]
    %v559 = vld [vmem:[%s1 + $0x50] sm:$0xff]
    %v560 = vld [vmem:[%s1 + $0x58] sm:$0xff]
    %v561 = vld [vmem:[%s2] sm:$0x3]
    %v563 = vlaneseq
    %v564 = vshrl.u32 %v563, 7
    %v565 = vsub.s32 0, %v564
    %v566 = vrot.slane %v561, %v565
    %v567 = vlaneseq
    %v568 = vshrl.u32 %v567, 7
    %v569 = vsub.s32 1, %v568
    %v570 = vrot.slane %v561, %v569
    %v574 = vsel %vm94, %v548, 0
    %576 = vmatprep.subr.mxu0 0.0
    %577 = vmatpush1.msra.mxu0 0.0
    %578 = vmatprep.subr.mxu0 0.0
    %579 = vmatpush1.msra.mxu0 0.0
    %580 = vmatprep.subr.mxu0 0.0
    %581 = vmatpush1.msra.mxu0 0.0
    %582 = vmatprep.subr.mxu0 0.0
    %583 = vmatpush1.msra.mxu0 0.0
    %584 = vmatprep.subr.mxu0 0.0
    %585 = vmatpush1.msra.mxu0 0.0
    %586 = vmatprep.subr.mxu0 0.0
    %587 = vmatpush1.msra.mxu0 0.0
    %588 = vmatprep.subr.mxu0 0.0
    %589 = vmatpush1.msra.mxu0 0.0
    %590 = vmatprep.subr.mxu0 0.0
    %591 = vmatpush1.msra.mxu0 0.0
    %592 = vmatprep.subr.mxu0 0.0
    %593 = vmatpush1.msra.mxu0 0.0
    %594 = vmatprep.subr.mxu0 0.0
    %595 = vmatpush1.msra.mxu0 0.0
    %596 = vmatprep.subr.mxu0 %v560
    %597 = vmatpush1.msra.mxu0 %v559
    %598 = vmatprep.subr.mxu0 %v558
    %599 = vmatpush1.msra.mxu0 %v557
    %600 = vmatprep.subr.mxu0 %v556
    %601 = vmatpush1.msra.mxu0 %v555
    %602 = vmatprep.subr.mxu0 %v554
    %603 = vmatpush1.msra.mxu0 %v553
    %604 = vmatprep.subr.mxu0 %v552
    %605 = vmatpush1.msra.mxu0 %v551
    %606 = vmatprep.subr.mxu0 %v550
    %607 = vmatpush1.msra.mxu0 %v549
    %608 = vmatprep.subr.mxu0 0.0
    %609 = vmatpush2.msra.mxu0 0.0
    %610 = vmatprep.subr.mxu0 0.0
    %611 = vmatpush2.msra.mxu0 0.0
    %612 = vmatprep.subr.mxu0 0.0
    %613 = vmatpush2.msra.mxu0 0.0
    %614 = vmatprep.subr.mxu0 0.0
    %615 = vmatpush2.msra.mxu0 0.0
    %616 = vmatprep.subr.mxu0 0.0
    %617 = vmatpush2.msra.mxu0 0.0
    %618 = vmatprep.subr.mxu0 0.0
    %619 = vmatpush2.msra.mxu0 0.0
    %620 = vmatprep.subr.mxu0 0.0
    %621 = vmatpush2.msra.mxu0 0.0
    %622 = vmatprep.subr.mxu0 0.0
    %623 = vmatpush2.msra.mxu0 0.0
    %624 = vmatprep.subr.mxu0 0.0
    %625 = vmatpush2.msra.mxu0 0.0
    %626 = vmatprep.subr.mxu0 0.0
    %627 = vmatpush2.msra.mxu0 0.0
    %628 = vmatprep.subr.mxu0 0.0
    %629 = vmatpush2.msra.mxu0 0.0
    %630 = vmatprep.subr.mxu0 0.0
    %631 = vmatpush2.msra.mxu0 0.0
    %632 = vmatprep.subr.mxu0 0.0
    %633 = vmatpush2.msra.mxu0 0.0
    %634 = vmatprep.subr.mxu0 0.0
    %635 = vmatpush2.msra.mxu0 0.0
    %636 = vmatprep.subr.mxu0 0.0
    %637 = vmatpush2.msra.mxu0 0.0
    %638 = vmatprep.subr.mxu0 0.0
    %639 = vmatpush2.msra.mxu0 0.0
    %640 = vmatprep.mubr.f32.mxu0 0.0
    %641 = vmatmul.mubr.f32.gmra.mxu0 %v574
    %v642 = vpop.f32.mrf.mxu0
    %v643 = vadd.f32 %v566, %v642
    %v644 = vpop.f32.mrf.mxu0
    %v645 = vadd.f32 %v570, %v644
    %646 = vdwg.mxu0
    %v647 = vsel %vm44, %v643, %v645
    %v648 = vtanh.pop %v647
    %v649 = vxor.u32 %v647, 2147483648
    %v650 = vmul.f32 %v649, 1.442695
    %v651 = vpow.pop %v650
    %v652 = vadd.f32 %v651, 1.0
    %v653 = vrcp.pop %v652
    %v654 = vmul.f32 1.0, %v653
    %v655 = vsel %vm41, %v648, %v654
    %v656 = vld [vmem:[#allocation5] sm:$0xf]
    %658 = vrot.lane.b32.xlu0 %v656, 32
    %v659 = vpop.permute.xlu0 %658
    %v661 = vmul.f32 %v655, %v659
    %663 = vrot.lane.b32.xlu0 %v655, 64
    %v664 = vpop.permute.xlu0 %663
    %v666 = vmul.f32 %v655, %v664
    %668 = vrot.lane.b32.xlu0 %v666, 32
    %v669 = vpop.permute.xlu0 %668
    %v671 = vadd.f32 %v661, %v669
    %v672 = vtanh.pop %v671
    %674 = vrot.lane.b32.xlu0 %v672, 64
    %v675 = vpop.permute.xlu0 %674
    %v677 = vmul.f32 %v655, %v675
    %679 = vrot.lane.b32.xlu0 %v677, 32
    %v680 = vpop.permute.xlu0 %679
    %682 = vst.msk [vmem:[#allocation4] sm:$0xf] %vm204, %v680
    %684 = vrot.lane.b32.xlu0 %v671, 96
    %v685 = vpop.permute.xlu0 %684
    %687 = vst.msk [vmem:[#allocation5] sm:$0xf] %vm204, %v685
    %s688 = scalar_lea.vmem [#allocation2], 6
    %689 = vst.msk [vmem:[%s688] sm:$0x3] %vm46, %v680
    %690 = vrot.lane.b32.xlu0 %v677, 64
    %v691 = vpop.permute.xlu0 %690
    %s693 = scalar_lea.vmem [#allocation2], 8
    %694 = vst.msk [vmem:[%s693 - $0x2] sm:$0xc] %vm216, %v691
    %v695 = vld [vmem:[%s539] sm:$0x3]
    %696 = vst.msk [vmem:[#allocation6] sm:$0x3] %vm57, %v695
    %v697 = vld [vmem:[%s536] sm:$0x3]
    %698 = vst.msk [vmem:[#allocation6 + $0x2] sm:$0x3] %vm57, %v697
    %v699 = vld [vmem:[#allocation4] sm:$0xf]
    %701 = vrot.lane.b32.xlu0 %v699, 16
    %v702 = vpop.permute.xlu0 %701
    %704 = vst.msk [vmem:[#allocation6] sm:$0xf] %vm67, %v702
    %v705 = vld [vmem:[#allocation6] sm:$0xf]
    %v706 = vld [vmem:[%s1] sm:$0xff]
    %v707 = vld [vmem:[%s1 + $0x8] sm:$0xff]
    %v708 = vld [vmem:[%s1 + $0x10] sm:$0xff]
    %v709 = vld [vmem:[%s1 + $0x18] sm:$0xff]
    %v710 = vld [vmem:[%s1 + $0x20] sm:$0xff]
    %v711 = vld [vmem:[%s1 + $0x28] sm:$0xff]
    %v712 = vld [vmem:[%s1 + $0x30] sm:$0xff]
    %v713 = vld [vmem:[%s1 + $0x38] sm:$0xff]
    %v714 = vld [vmem:[%s1 + $0x40] sm:$0xff]
    %v715 = vld [vmem:[%s1 + $0x48] sm:$0xff]
    %v716 = vld [vmem:[%s1 + $0x50] sm:$0xff]
    %v717 = vld [vmem:[%s1 + $0x58] sm:$0xff]
    %v718 = vld [vmem:[%s2] sm:$0x3]
    %v720 = vlaneseq
    %v721 = vshrl.u32 %v720, 7
    %v722 = vsub.s32 0, %v721
    %v723 = vrot.slane %v718, %v722
    %v724 = vlaneseq
    %v725 = vshrl.u32 %v724, 7
    %v726 = vsub.s32 1, %v725
    %v727 = vrot.slane %v718, %v726
    %v731 = vsel %vm94, %v705, 0
    %733 = vmatprep.subr.mxu0 0.0
    %734 = vmatpush1.msra.mxu0 0.0
    %735 = vmatprep.subr.mxu0 0.0
    %736 = vmatpush1.msra.mxu0 0.0
    %737 = vmatprep.subr.mxu0 0.0
    %738 = vmatpush1.msra.mxu0 0.0
    %739 = vmatprep.subr.mxu0 0.0
    %740 = vmatpush1.msra.mxu0 0.0
    %741 = vmatprep.subr.mxu0 0.0
    %742 = vmatpush1.msra.mxu0 0.0
    %743 = vmatprep.subr.mxu0 0.0
    %744 = vmatpush1.msra.mxu0 0.0
    %745 = vmatprep.subr.mxu0 0.0
    %746 = vmatpush1.msra.mxu0 0.0
    %747 = vmatprep.subr.mxu0 0.0
    %748 = vmatpush1.msra.mxu0 0.0
    %749 = vmatprep.subr.mxu0 0.0
    %750 = vmatpush1.msra.mxu0 0.0
    %751 = vmatprep.subr.mxu0 0.0
    %752 = vmatpush1.msra.mxu0 0.0
    %753 = vmatprep.subr.mxu0 %v717
    %754 = vmatpush1.msra.mxu0 %v716
    %755 = vmatprep.subr.mxu0 %v715
    %756 = vmatpush1.msra.mxu0 %v714
    %757 = vmatprep.subr.mxu0 %v713
    %758 = vmatpush1.msra.mxu0 %v712
    %759 = vmatprep.subr.mxu0 %v711
    %760 = vmatpush1.msra.mxu0 %v710
    %761 = vmatprep.subr.mxu0 %v709
    %762 = vmatpush1.msra.mxu0 %v708
    %763 = vmatprep.subr.mxu0 %v707
    %764 = vmatpush1.msra.mxu0 %v706
    %765 = vmatprep.subr.mxu0 0.0
    %766 = vmatpush2.msra.mxu0 0.0
    %767 = vmatprep.subr.mxu0 0.0
    %768 = vmatpush2.msra.mxu0 0.0
    %769 = vmatprep.subr.mxu0 0.0
    %770 = vmatpush2.msra.mxu0 0.0
    %771 = vmatprep.subr.mxu0 0.0
    %772 = vmatpush2.msra.mxu0 0.0
    %773 = vmatprep.subr.mxu0 0.0
    %774 = vmatpush2.msra.mxu0 0.0
    %775 = vmatprep.subr.mxu0 0.0
    %776 = vmatpush2.msra.mxu0 0.0
    %777 = vmatprep.subr.mxu0 0.0
    %778 = vmatpush2.msra.mxu0 0.0
    %779 = vmatprep.subr.mxu0 0.0
    %780 = vmatpush2.msra.mxu0 0.0
    %781 = vmatprep.subr.mxu0 0.0
    %782 = vmatpush2.msra.mxu0 0.0
    %783 = vmatprep.subr.mxu0 0.0
    %784 = vmatpush2.msra.mxu0 0.0
    %785 = vmatprep.subr.mxu0 0.0
    %786 = vmatpush2.msra.mxu0 0.0
    %787 = vmatprep.subr.mxu0 0.0
    %788 = vmatpush2.msra.mxu0 0.0
    %789 = vmatprep.subr.mxu0 0.0
    %790 = vmatpush2.msra.mxu0 0.0
    %791 = vmatprep.subr.mxu0 0.0
    %792 = vmatpush2.msra.mxu0 0.0
    %793 = vmatprep.subr.mxu0 0.0
    %794 = vmatpush2.msra.mxu0 0.0
    %795 = vmatprep.subr.mxu0 0.0
    %796 = vmatpush2.msra.mxu0 0.0
    %797 = vmatprep.mubr.f32.mxu0 0.0
    %798 = vmatmul.mubr.f32.gmra.mxu0 %v731
    %v799 = vpop.f32.mrf.mxu0
    %v800 = vadd.f32 %v723, %v799
    %v801 = vpop.f32.mrf.mxu0
    %v802 = vadd.f32 %v727, %v801
    %803 = vdwg.mxu0
    %v804 = vsel %vm44, %v800, %v802
    %v805 = vtanh.pop %v804
    %v806 = vxor.u32 %v804, 2147483648
    %v807 = vmul.f32 %v806, 1.442695
    %v808 = vpow.pop %v807
    %v809 = vadd.f32 %v808, 1.0
    %v810 = vrcp.pop %v809
    %v811 = vmul.f32 1.0, %v810
    %v812 = vsel %vm41, %v805, %v811
    %v813 = vld [vmem:[#allocation5] sm:$0xf]
    %815 = vrot.lane.b32.xlu0 %v813, 32
    %v816 = vpop.permute.xlu0 %815
    %v818 = vmul.f32 %v812, %v816
    %820 = vrot.lane.b32.xlu0 %v812, 64
    %v821 = vpop.permute.xlu0 %820
    %v823 = vmul.f32 %v812, %v821
    %825 = vrot.lane.b32.xlu0 %v823, 32
    %v826 = vpop.permute.xlu0 %825
    %v828 = vadd.f32 %v818, %v826
    %v829 = vtanh.pop %v828
    %831 = vrot.lane.b32.xlu0 %v829, 64
    %v832 = vpop.permute.xlu0 %831
    %v834 = vmul.f32 %v812, %v832
    %836 = vrot.lane.b32.xlu0 %v834, 32
    %v837 = vpop.permute.xlu0 %836
    %839 = vst.msk [vmem:[#allocation4] sm:$0xf] %vm204, %v837
    %841 = vrot.lane.b32.xlu0 %v828, 96
    %v842 = vpop.permute.xlu0 %841
    %844 = vst.msk [vmem:[#allocation5] sm:$0xf] %vm204, %v842
    %845 = vst.msk [vmem:[%s693] sm:$0x3] %vm46, %v837
    %846 = vrot.lane.b32.xlu0 %v834, 64
    %v847 = vpop.permute.xlu0 %846
    %849 = vst.msk [vmem:[%s688 - $0x2] sm:$0xc] %vm216, %v847
    %v850 = vld [vmem:[%s380] sm:$0x3]
    %851 = vst.msk [vmem:[#allocation6] sm:$0x3] %vm57, %v850
    %v852 = vld [vmem:[%s377] sm:$0x3]
    %853 = vst.msk [vmem:[#allocation6 + $0x2] sm:$0x3] %vm57, %v852
    %v854 = vld [vmem:[#allocation4] sm:$0xf]
    %856 = vrot.lane.b32.xlu0 %v854, 16
    %v857 = vpop.permute.xlu0 %856
    %859 = vst.msk [vmem:[#allocation6] sm:$0xf] %vm67, %v857
    %v860 = vld [vmem:[#allocation6] sm:$0xf]
    %v861 = vld [vmem:[%s1] sm:$0xff]
    %v862 = vld [vmem:[%s1 + $0x8] sm:$0xff]
    %v863 = vld [vmem:[%s1 + $0x10] sm:$0xff]
    %v864 = vld [vmem:[%s1 + $0x18] sm:$0xff]
    %v865 = vld [vmem:[%s1 + $0x20] sm:$0xff]
    %v866 = vld [vmem:[%s1 + $0x28] sm:$0xff]
    %v867 = vld [vmem:[%s1 + $0x30] sm:$0xff]
    %v868 = vld [vmem:[%s1 + $0x38] sm:$0xff]
    %v869 = vld [vmem:[%s1 + $0x40] sm:$0xff]
    %v870 = vld [vmem:[%s1 + $0x48] sm:$0xff]
    %v871 = vld [vmem:[%s1 + $0x50] sm:$0xff]
    %v872 = vld [vmem:[%s1 + $0x58] sm:$0xff]
    %v873 = vld [vmem:[%s2] sm:$0x3]
    %v875 = vlaneseq
    %v876 = vshrl.u32 %v875, 7
    %v877 = vsub.s32 0, %v876
    %v878 = vrot.slane %v873, %v877
    %v879 = vlaneseq
    %v880 = vshrl.u32 %v879, 7
    %v881 = vsub.s32 1, %v880
    %v882 = vrot.slane %v873, %v881
    %v886 = vsel %vm94, %v860, 0
    %888 = vmatprep.subr.mxu0 0.0
    %889 = vmatpush1.msra.mxu0 0.0
    %890 = vmatprep.subr.mxu0 0.0
    %891 = vmatpush1.msra.mxu0 0.0
    %892 = vmatprep.subr.mxu0 0.0
    %893 = vmatpush1.msra.mxu0 0.0
    %894 = vmatprep.subr.mxu0 0.0
    %895 = vmatpush1.msra.mxu0 0.0
    %896 = vmatprep.subr.mxu0 0.0
    %897 = vmatpush1.msra.mxu0 0.0
    %898 = vmatprep.subr.mxu0 0.0
    %899 = vmatpush1.msra.mxu0 0.0
    %900 = vmatprep.subr.mxu0 0.0
    %901 = vmatpush1.msra.mxu0 0.0
    %902 = vmatprep.subr.mxu0 0.0
    %903 = vmatpush1.msra.mxu0 0.0
    %904 = vmatprep.subr.mxu0 0.0
    %905 = vmatpush1.msra.mxu0 0.0
    %906 = vmatprep.subr.mxu0 0.0
    %907 = vmatpush1.msra.mxu0 0.0
    %908 = vmatprep.subr.mxu0 %v872
    %909 = vmatpush1.msra.mxu0 %v871
    %910 = vmatprep.subr.mxu0 %v870
    %911 = vmatpush1.msra.mxu0 %v869
    %912 = vmatprep.subr.mxu0 %v868
    %913 = vmatpush1.msra.mxu0 %v867
    %914 = vmatprep.subr.mxu0 %v866
    %915 = vmatpush1.msra.mxu0 %v865
    %916 = vmatprep.subr.mxu0 %v864
    %917 = vmatpush1.msra.mxu0 %v863
    %918 = vmatprep.subr.mxu0 %v862
    %919 = vmatpush1.msra.mxu0 %v861
    %920 = vmatprep.subr.mxu0 0.0
    %921 = vmatpush2.msra.mxu0 0.0
    %922 = vmatprep.subr.mxu0 0.0
    %923 = vmatpush2.msra.mxu0 0.0
    %924 = vmatprep.subr.mxu0 0.0
    %925 = vmatpush2.msra.mxu0 0.0
    %926 = vmatprep.subr.mxu0 0.0
    %927 = vmatpush2.msra.mxu0 0.0
    %928 = vmatprep.subr.mxu0 0.0
    %929 = vmatpush2.msra.mxu0 0.0
    %930 = vmatprep.subr.mxu0 0.0
    %931 = vmatpush2.msra.mxu0 0.0
    %932 = vmatprep.subr.mxu0 0.0
    %933 = vmatpush2.msra.mxu0 0.0
    %934 = vmatprep.subr.mxu0 0.0
    %935 = vmatpush2.msra.mxu0 0.0
    %936 = vmatprep.subr.mxu0 0.0
    %937 = vmatpush2.msra.mxu0 0.0
    %938 = vmatprep.subr.mxu0 0.0
    %939 = vmatpush2.msra.mxu0 0.0
    %940 = vmatprep.subr.mxu0 0.0
    %941 = vmatpush2.msra.mxu0 0.0
    %942 = vmatprep.subr.mxu0 0.0
    %943 = vmatpush2.msra.mxu0 0.0
    %944 = vmatprep.subr.mxu0 0.0
    %945 = vmatpush2.msra.mxu0 0.0
    %946 = vmatprep.subr.mxu0 0.0
    %947 = vmatpush2.msra.mxu0 0.0
    %948 = vmatprep.subr.mxu0 0.0
    %949 = vmatpush2.msra.mxu0 0.0
    %950 = vmatprep.subr.mxu0 0.0
    %951 = vmatpush2.msra.mxu0 0.0
    %952 = vmatprep.mubr.f32.mxu0 0.0
    %953 = vmatmul.mubr.f32.gmra.mxu0 %v886
    %v954 = vpop.f32.mrf.mxu0
    %v955 = vadd.f32 %v878, %v954
    %v956 = vpop.f32.mrf.mxu0
    %v957 = vadd.f32 %v882, %v956
    %958 = vdwg.mxu0
    %v959 = vsel %vm44, %v955, %v957
    %v960 = vtanh.pop %v959
    %v961 = vxor.u32 %v959, 2147483648
    %v962 = vmul.f32 %v961, 1.442695
    %v963 = vpow.pop %v962
    %v964 = vadd.f32 %v963, 1.0
    %v965 = vrcp.pop %v964
    %v966 = vmul.f32 1.0, %v965
    %v967 = vsel %vm41, %v960, %v966
    %v968 = vld [vmem:[#allocation5] sm:$0xf]
    %970 = vrot.lane.b32.xlu0 %v968, 32
    %v971 = vpop.permute.xlu0 %970
    %v973 = vmul.f32 %v967, %v971
    %975 = vrot.lane.b32.xlu0 %v967, 64
    %v976 = vpop.permute.xlu0 %975
    %v978 = vmul.f32 %v967, %v976
    %980 = vrot.lane.b32.xlu0 %v978, 32
    %v981 = vpop.permute.xlu0 %980
    %v983 = vadd.f32 %v973, %v981
    %v984 = vtanh.pop %v983
    %986 = vrot.lane.b32.xlu0 %v984, 64
    %v987 = vpop.permute.xlu0 %986
    %v989 = vmul.f32 %v967, %v987
    %991 = vrot.lane.b32.xlu0 %v989, 32
    %v992 = vpop.permute.xlu0 %991
    %994 = vst.msk [vmem:[#allocation4] sm:$0xf] %vm204, %v992
    %996 = vrot.lane.b32.xlu0 %v983, 96
    %v997 = vpop.permute.xlu0 %996
    %999 = vst.msk [vmem:[#allocation5] sm:$0xf] %vm204, %v997
    %1000 = vst.msk [vmem:[%s534] sm:$0x3] %vm46, %v992
    %1001 = vrot.lane.b32.xlu0 %v989, 64
    %v1002 = vpop.permute.xlu0 %1001
    %1004 = vst.msk [vmem:[%s529 - $0x2] sm:$0xc] %vm216, %v1002
    %v1005 = vld [vmem:[%s221] sm:$0x3]
    %1006 = vst.msk [vmem:[#allocation6] sm:$0x3] %vm57, %v1005
    %v1007 = vld [vmem:[%s218] sm:$0x3]
    %1008 = vst.msk [vmem:[#allocation6 + $0x2] sm:$0x3] %vm57, %v1007
    %v1009 = vld [vmem:[#allocation4] sm:$0xf]
    %1011 = vrot.lane.b32.xlu0 %v1009, 16
    %v1012 = vpop.permute.xlu0 %1011
    %1014 = vst.msk [vmem:[#allocation6] sm:$0xf] %vm67, %v1012
    %v1015 = vld [vmem:[#allocation6] sm:$0xf]
    %v1016 = vld [vmem:[%s1] sm:$0xff]
    %v1017 = vld [vmem:[%s1 + $0x8] sm:$0xff]
    %v1018 = vld [vmem:[%s1 + $0x10] sm:$0xff]
    %v1019 = vld [vmem:[%s1 + $0x18] sm:$0xff]
    %v1020 = vld [vmem:[%s1 + $0x20] sm:$0xff]
    %v1021 = vld [vmem:[%s1 + $0x28] sm:$0xff]
    %v1022 = vld [vmem:[%s1 + $0x30] sm:$0xff]
    %v1023 = vld [vmem:[%s1 + $0x38] sm:$0xff]
    %v1024 = vld [vmem:[%s1 + $0x40] sm:$0xff]
    %v1025 = vld [vmem:[%s1 + $0x48] sm:$0xff]
    %v1026 = vld [vmem:[%s1 + $0x50] sm:$0xff]
    %v1027 = vld [vmem:[%s1 + $0x58] sm:$0xff]
    %v1028 = vld [vmem:[%s2] sm:$0x3]
    %v1030 = vlaneseq
    %v1031 = vshrl.u32 %v1030, 7
    %v1032 = vsub.s32 0, %v1031
    %v1033 = vrot.slane %v1028, %v1032
    %v1034 = vlaneseq
    %v1035 = vshrl.u32 %v1034, 7
    %v1036 = vsub.s32 1, %v1035
    %v1037 = vrot.slane %v1028, %v1036
    %v1041 = vsel %vm94, %v1015, 0
    %1043 = vmatprep.subr.mxu0 0.0
    %1044 = vmatpush1.msra.mxu0 0.0
    %1045 = vmatprep.subr.mxu0 0.0
    %1046 = vmatpush1.msra.mxu0 0.0
    %1047 = vmatprep.subr.mxu0 0.0
    %1048 = vmatpush1.msra.mxu0 0.0
    %1049 = vmatprep.subr.mxu0 0.0
    %1050 = vmatpush1.msra.mxu0 0.0
    %1051 = vmatprep.subr.mxu0 0.0
    %1052 = vmatpush1.msra.mxu0 0.0
    %1053 = vmatprep.subr.mxu0 0.0
    %1054 = vmatpush1.msra.mxu0 0.0
    %1055 = vmatprep.subr.mxu0 0.0
    %1056 = vmatpush1.msra.mxu0 0.0
    %1057 = vmatprep.subr.mxu0 0.0
    %1058 = vmatpush1.msra.mxu0 0.0
    %1059 = vmatprep.subr.mxu0 0.0
    %1060 = vmatpush1.msra.mxu0 0.0
    %1061 = vmatprep.subr.mxu0 0.0
    %1062 = vmatpush1.msra.mxu0 0.0
    %1063 = vmatprep.subr.mxu0 %v1027
    %1064 = vmatpush1.msra.mxu0 %v1026
    %1065 = vmatprep.subr.mxu0 %v1025
    %1066 = vmatpush1.msra.mxu0 %v1024
    %1067 = vmatprep.subr.mxu0 %v1023
    %1068 = vmatpush1.msra.mxu0 %v1022
    %1069 = vmatprep.subr.mxu0 %v1021
    %1070 = vmatpush1.msra.mxu0 %v1020
    %1071 = vmatprep.subr.mxu0 %v1019
    %1072 = vmatpush1.msra.mxu0 %v1018
    %1073 = vmatprep.subr.mxu0 %v1017
    %1074 = vmatpush1.msra.mxu0 %v1016
    %1075 = vmatprep.subr.mxu0 0.0
    %1076 = vmatpush2.msra.mxu0 0.0
    %1077 = vmatprep.subr.mxu0 0.0
    %1078 = vmatpush2.msra.mxu0 0.0
    %1079 = vmatprep.subr.mxu0 0.0
    %1080 = vmatpush2.msra.mxu0 0.0
    %1081 = vmatprep.subr.mxu0 0.0
    %1082 = vmatpush2.msra.mxu0 0.0
    %1083 = vmatprep.subr.mxu0 0.0
    %1084 = vmatpush2.msra.mxu0 0.0
    %1085 = vmatprep.subr.mxu0 0.0
    %1086 = vmatpush2.msra.mxu0 0.0
    %1087 = vmatprep.subr.mxu0 0.0
    %1088 = vmatpush2.msra.mxu0 0.0
    %1089 = vmatprep.subr.mxu0 0.0
    %1090 = vmatpush2.msra.mxu0 0.0
    %1091 = vmatprep.subr.mxu0 0.0
    %1092 = vmatpush2.msra.mxu0 0.0
    %1093 = vmatprep.subr.mxu0 0.0
    %1094 = vmatpush2.msra.mxu0 0.0
    %1095 = vmatprep.subr.mxu0 0.0
    %1096 = vmatpush2.msra.mxu0 0.0
    %1097 = vmatprep.subr.mxu0 0.0
    %1098 = vmatpush2.msra.mxu0 0.0
    %1099 = vmatprep.subr.mxu0 0.0
    %1100 = vmatpush2.msra.mxu0 0.0
    %1101 = vmatprep.subr.mxu0 0.0
    %1102 = vmatpush2.msra.mxu0 0.0
    %1103 = vmatprep.subr.mxu0 0.0
    %1104 = vmatpush2.msra.mxu0 0.0
    %1105 = vmatprep.subr.mxu0 0.0
    %1106 = vmatpush2.msra.mxu0 0.0
    %1107 = vmatprep.mubr.f32.mxu0 0.0
    %1108 = vmatmul.mubr.f32.gmra.mxu0 %v1041
    %v1109 = vpop.f32.mrf.mxu0
    %v1110 = vadd.f32 %v1033, %v1109
    %v1111 = vpop.f32.mrf.mxu0
    %v1112 = vadd.f32 %v1037, %v1111
    %1113 = vdwg.mxu0
    %v1114 = vsel %vm44, %v1110, %v1112
    %v1115 = vtanh.pop %v1114
    %v1116 = vxor.u32 %v1114, 2147483648
    %v1117 = vmul.f32 %v1116, 1.442695
    %v1118 = vpow.pop %v1117
    %v1119 = vadd.f32 %v1118, 1.0
    %v1120 = vrcp.pop %v1119
    %v1121 = vmul.f32 1.0, %v1120
    %v1122 = vsel %vm41, %v1115, %v1121
    %v1123 = vld [vmem:[#allocation5] sm:$0xf]
    %1125 = vrot.lane.b32.xlu0 %v1123, 32
    %v1126 = vpop.permute.xlu0 %1125
    %v1128 = vmul.f32 %v1122, %v1126
    %1130 = vrot.lane.b32.xlu0 %v1122, 64
    %v1131 = vpop.permute.xlu0 %1130
    %v1133 = vmul.f32 %v1122, %v1131
    %1135 = vrot.lane.b32.xlu0 %v1133, 32
    %v1136 = vpop.permute.xlu0 %1135
    %v1138 = vadd.f32 %v1128, %v1136
    %v1139 = vtanh.pop %v1138
    %1141 = vrot.lane.b32.xlu0 %v1139, 64
    %v1142 = vpop.permute.xlu0 %1141
    %v1144 = vmul.f32 %v1122, %v1142
    %1146 = vrot.lane.b32.xlu0 %v1144, 32
    %v1147 = vpop.permute.xlu0 %1146
    %1149 = vst.msk [vmem:[#allocation4] sm:$0xf] %vm204, %v1147
    %1151 = vrot.lane.b32.xlu0 %v1138, 96
    %v1152 = vpop.permute.xlu0 %1151
    %1154 = vst.msk [vmem:[#allocation5] sm:$0xf] %vm204, %v1152
    %1155 = vst.msk [vmem:[%s375] sm:$0x3] %vm46, %v1147
    %1156 = vrot.lane.b32.xlu0 %v1144, 64
    %v1157 = vpop.permute.xlu0 %1156
    %1159 = vst.msk [vmem:[%s370 - $0x2] sm:$0xc] %vm216, %v1157
    %v1160 = vld [vmem:[%s59] sm:$0x3]
    %1161 = vst.msk [vmem:[#allocation6] sm:$0x3] %vm57, %v1160
    %v1162 = vld [vmem:[%s0] sm:$0x3]
    %1163 = vst.msk [vmem:[#allocation6 + $0x2] sm:$0x3] %vm57, %v1162
    %v1164 = vld [vmem:[#allocation4] sm:$0xf]
    %1166 = vrot.lane.b32.xlu0 %v1164, 16
    %v1167 = vpop.permute.xlu0 %1166
    %1169 = vst.msk [vmem:[#allocation6] sm:$0xf] %vm67, %v1167
    %v1170 = vld [vmem:[#allocation6] sm:$0xf]
    %v1171 = vld [vmem:[%s1] sm:$0xff]
    %v1172 = vld [vmem:[%s1 + $0x8] sm:$0xff]
    %v1173 = vld [vmem:[%s1 + $0x10] sm:$0xff]
    %v1174 = vld [vmem:[%s1 + $0x18] sm:$0xff]
    %v1175 = vld [vmem:[%s1 + $0x20] sm:$0xff]
    %v1176 = vld [vmem:[%s1 + $0x28] sm:$0xff]
    %v1177 = vld [vmem:[%s1 + $0x30] sm:$0xff]
    %v1178 = vld [vmem:[%s1 + $0x38] sm:$0xff]
    %v1179 = vld [vmem:[%s1 + $0x40] sm:$0xff]
    %v1180 = vld [vmem:[%s1 + $0x48] sm:$0xff]
    %v1181 = vld [vmem:[%s1 + $0x50] sm:$0xff]
    %v1182 = vld [vmem:[%s1 + $0x58] sm:$0xff]
    %v1183 = vld [vmem:[%s2] sm:$0x3]
    %v1185 = vlaneseq
    %v1186 = vshrl.u32 %v1185, 7
    %v1187 = vsub.s32 0, %v1186
    %v1188 = vrot.slane %v1183, %v1187
    %v1189 = vlaneseq
    %v1190 = vshrl.u32 %v1189, 7
    %v1191 = vsub.s32 1, %v1190
    %v1192 = vrot.slane %v1183, %v1191
    %v1196 = vsel %vm94, %v1170, 0
    %1198 = vmatprep.subr.mxu0 0.0
    %1199 = vmatpush1.msra.mxu0 0.0
    %1200 = vmatprep.subr.mxu0 0.0
    %1201 = vmatpush1.msra.mxu0 0.0
    %1202 = vmatprep.subr.mxu0 0.0
    %1203 = vmatpush1.msra.mxu0 0.0
    %1204 = vmatprep.subr.mxu0 0.0
    %1205 = vmatpush1.msra.mxu0 0.0
    %1206 = vmatprep.subr.mxu0 0.0
    %1207 = vmatpush1.msra.mxu0 0.0
    %1208 = vmatprep.subr.mxu0 0.0
    %1209 = vmatpush1.msra.mxu0 0.0
    %1210 = vmatprep.subr.mxu0 0.0
    %1211 = vmatpush1.msra.mxu0 0.0
    %1212 = vmatprep.subr.mxu0 0.0
    %1213 = vmatpush1.msra.mxu0 0.0
    %1214 = vmatprep.subr.mxu0 0.0
    %1215 = vmatpush1.msra.mxu0 0.0
    %1216 = vmatprep.subr.mxu0 0.0
    %1217 = vmatpush1.msra.mxu0 0.0
    %1218 = vmatprep.subr.mxu0 %v1182
    %1219 = vmatpush1.msra.mxu0 %v1181
    %1220 = vmatprep.subr.mxu0 %v1180
    %1221 = vmatpush1.msra.mxu0 %v1179
    %1222 = vmatprep.subr.mxu0 %v1178
    %1223 = vmatpush1.msra.mxu0 %v1177
    %1224 = vmatprep.subr.mxu0 %v1176
    %1225 = vmatpush1.msra.mxu0 %v1175
    %1226 = vmatprep.subr.mxu0 %v1174
    %1227 = vmatpush1.msra.mxu0 %v1173
    %1228 = vmatprep.subr.mxu0 %v1172
    %1229 = vmatpush1.msra.mxu0 %v1171
    %1230 = vmatprep.subr.mxu0 0.0
    %1231 = vmatpush2.msra.mxu0 0.0
    %1232 = vmatprep.subr.mxu0 0.0
    %1233 = vmatpush2.msra.mxu0 0.0
    %1234 = vmatprep.subr.mxu0 0.0
    %1235 = vmatpush2.msra.mxu0 0.0
    %1236 = vmatprep.subr.mxu0 0.0
    %1237 = vmatpush2.msra.mxu0 0.0
    %1238 = vmatprep.subr.mxu0 0.0
    %1239 = vmatpush2.msra.mxu0 0.0
    %1240 = vmatprep.subr.mxu0 0.0
    %1241 = vmatpush2.msra.mxu0 0.0
    %1242 = vmatprep.subr.mxu0 0.0
    %1243 = vmatpush2.msra.mxu0 0.0
    %1244 = vmatprep.subr.mxu0 0.0
    %1245 = vmatpush2.msra.mxu0 0.0
    %1246 = vmatprep.subr.mxu0 0.0
    %1247 = vmatpush2.msra.mxu0 0.0
    %1248 = vmatprep.subr.mxu0 0.0
    %1249 = vmatpush2.msra.mxu0 0.0
    %1250 = vmatprep.subr.mxu0 0.0
    %1251 = vmatpush2.msra.mxu0 0.0
    %1252 = vmatprep.subr.mxu0 0.0
    %1253 = vmatpush2.msra.mxu0 0.0
    %1254 = vmatprep.subr.mxu0 0.0
    %1255 = vmatpush2.msra.mxu0 0.0
    %1256 = vmatprep.subr.mxu0 0.0
    %1257 = vmatpush2.msra.mxu0 0.0
    %1258 = vmatprep.subr.mxu0 0.0
    %1259 = vmatpush2.msra.mxu0 0.0
    %1260 = vmatprep.subr.mxu0 0.0
    %1261 = vmatpush2.msra.mxu0 0.0
    %1262 = vmatprep.mubr.f32.mxu0 0.0
    %1263 = vmatmul.mubr.f32.gmra.mxu0 %v1196
    %v1264 = vpop.f32.mrf.mxu0
    %v1265 = vadd.f32 %v1188, %v1264
    %v1266 = vpop.f32.mrf.mxu0
    %v1267 = vadd.f32 %v1192, %v1266
    %1268 = vdwg.mxu0
    %v1269 = vsel %vm44, %v1265, %v1267
    %v1270 = vtanh.pop %v1269
    %v1271 = vxor.u32 %v1269, 2147483648
    %v1272 = vmul.f32 %v1271, 1.442695
    %v1273 = vpow.pop %v1272
    %v1274 = vadd.f32 %v1273, 1.0
    %v1275 = vrcp.pop %v1274
    %v1276 = vmul.f32 1.0, %v1275
    %v1277 = vsel %vm41, %v1270, %v1276
    %v1278 = vld [vmem:[#allocation5] sm:$0xf]
    %1280 = vrot.lane.b32.xlu0 %v1278, 32
    %v1281 = vpop.permute.xlu0 %1280
    %v1283 = vmul.f32 %v1277, %v1281
    %1285 = vrot.lane.b32.xlu0 %v1277, 64
    %v1286 = vpop.permute.xlu0 %1285
    %v1288 = vmul.f32 %v1277, %v1286
    %1290 = vrot.lane.b32.xlu0 %v1288, 32
    %v1291 = vpop.permute.xlu0 %1290
    %v1293 = vadd.f32 %v1283, %v1291
    %v1294 = vtanh.pop %v1293
    %1296 = vrot.lane.b32.xlu0 %v1294, 64
    %v1297 = vpop.permute.xlu0 %1296
    %v1299 = vmul.f32 %v1277, %v1297
    %1301 = vrot.lane.b32.xlu0 %v1299, 32
    %v1302 = vpop.permute.xlu0 %1301
    %1304 = vst.msk [vmem:[#allocation4] sm:$0xf] %vm204, %v1302
    %1306 = vrot.lane.b32.xlu0 %v1293, 96
    %v1307 = vpop.permute.xlu0 %1306
    %1309 = vst.msk [vmem:[#allocation5] sm:$0xf] %vm204, %v1307
    %1310 = vst.msk [vmem:[%s215] sm:$0x3] %vm46, %v1302
    %1311 = vrot.lane.b32.xlu0 %v1299, 64
    %v1312 = vpop.permute.xlu0 %1311
    %1314 = vst.msk [vmem:[#allocation2 - $0x2] sm:$0xc] %vm216, %v1312
    %v1315 = vld [vmem:[#allocation4] sm:$0x3]
    %1316 = vst.msk [vmem:[#allocation7] sm:$0x3] %vm46, %v1315
    %v1317 = vld [vmem:[#allocation4 + $0x2] sm:$0x3]
    %s1318 = scalar_lea.vmem [#allocation7], 2
    %1319 = vst.msk [vmem:[%s1318] sm:$0x3] %vm46, %v1317
    %v1320 = vld [vmem:[#allocation5] sm:$0x3]
    %1321 = vst.msk [vmem:[#allocation9] sm:$0x3] %vm46, %v1320
    %v1322 = vld [vmem:[#allocation5 + $0x2] sm:$0x3]
    %s1323 = scalar_lea.vmem [#allocation9], 2
    %1324 = vst.msk [vmem:[%s1323] sm:$0x3] %vm46, %v1322
    %s1325 = scalar_lea.vmem %s5, 4
    %v1326 = vld [vmem:[%s1325] sm:$0x3]
    %1327 = vst.msk [vmem:[#allocation4] sm:$0x3] %vm46, %v1326
    %s1328 = scalar_lea.vmem %s5, 6
    %v1329 = vld [vmem:[%s1328] sm:$0x3]
    %1330 = vst.msk [vmem:[#allocation4 + $0x2] sm:$0x3] %vm46, %v1329
    %s1331 = scalar_lea.vmem %s6, 4
    %v1332 = vld [vmem:[%s1331] sm:$0x3]
    %1333 = vst.msk [vmem:[#allocation5] sm:$0x3] %vm46, %v1332
    %s1334 = scalar_lea.vmem %s6, 6
    %v1335 = vld [vmem:[%s1334] sm:$0x3]
    %1336 = vst.msk [vmem:[#allocation5 + $0x2] sm:$0x3] %vm46, %v1335
    %v1337 = vld [vmem:[#allocation2] sm:$0x3]
    %vm1338 = vcmask 517120
    %1339 = vst.msk [vmem:[#allocation6] sm:$0x3] %vm1338, %v1337
    %v1340 = vld [vmem:[%s215] sm:$0x3]
    %1341 = vst.msk [vmem:[#allocation6 + $0x2] sm:$0x3] %vm1338, %v1340
    %v1342 = vld [vmem:[#allocation4] sm:$0xf]
    %1344 = vrot.lane.b32.xlu0 %v1342, 64
    %v1345 = vpop.permute.xlu0 %1344
    %vm1347 = vcmask 781824
    %1348 = vst.msk [vmem:[#allocation6] sm:$0xf] %vm1347, %v1345
    %v1349 = vld [vmem:[#allocation6] sm:$0xf]
    %v1350 = vld [vmem:[%s3] sm:$0xff]
    %v1351 = vld [vmem:[%s3 + $0x8] sm:$0xff]
    %v1352 = vld [vmem:[%s3 + $0x10] sm:$0xff]
    %v1353 = vld [vmem:[%s3 + $0x18] sm:$0xff]
    %v1354 = vld [vmem:[%s3 + $0x20] sm:$0xff]
    %v1355 = vld [vmem:[%s3 + $0x28] sm:$0xff]
    %v1356 = vld [vmem:[%s3 + $0x30] sm:$0xff]
    %v1357 = vld [vmem:[%s3 + $0x38] sm:$0xff]
    %v1358 = vld [vmem:[%s3 + $0x40] sm:$0xff]
    %v1359 = vld [vmem:[%s3 + $0x48] sm:$0xff]
    %v1360 = vld [vmem:[%s3 + $0x50] sm:$0xff]
    %v1361 = vld [vmem:[%s3 + $0x58] sm:$0xff]
    %v1362 = vld [vmem:[%s3 + $0x60] sm:$0xff]
    %v1363 = vld [vmem:[%s3 + $0x68] sm:$0xff]
    %v1364 = vld [vmem:[%s3 + $0x70] sm:$0xff]
    %v1365 = vld [vmem:[%s3 + $0x78] sm:$0xff]
    %v1366 = vld [vmem:[%s3 + $0x80] sm:$0xff]
    %v1367 = vld [vmem:[%s3 + $0x88] sm:$0xff]
    %v1368 = vld [vmem:[%s3 + $0x90] sm:$0xff]
    %v1369 = vld [vmem:[%s3 + $0x98] sm:$0xff]
    %v1370 = vld [vmem:[%s3 + $0xa0] sm:$0xff]
    %v1371 = vld [vmem:[%s3 + $0xa8] sm:$0xff]
    %v1372 = vld [vmem:[%s3 + $0xb0] sm:$0xff]
    %v1373 = vld [vmem:[%s3 + $0xb8] sm:$0xff]
    %v1374 = vld [vmem:[%s4] sm:$0x3]
    %v1376 = vlaneseq
    %v1377 = vshrl.u32 %v1376, 7
    %v1378 = vsub.s32 0, %v1377
    %v1379 = vrot.slane %v1374, %v1378
    %v1380 = vlaneseq
    %v1381 = vshrl.u32 %v1380, 7
    %v1382 = vsub.s32 1, %v1381
    %v1383 = vrot.slane %v1374, %v1382
    %vm1386 = vcmask 785408
    %v1388 = vsel %vm1386, %v1349, 0
    %1390 = vmatprep.subr.mxu0 0.0
    %1391 = vmatpush1.msra.mxu0 0.0
    %1392 = vmatprep.subr.mxu0 0.0
    %1393 = vmatpush1.msra.mxu0 0.0
    %1394 = vmatprep.subr.mxu0 0.0
    %1395 = vmatpush1.msra.mxu0 0.0
    %1396 = vmatprep.subr.mxu0 0.0
    %1397 = vmatpush1.msra.mxu0 0.0
    %1398 = vmatprep.subr.mxu0 %v1373
    %1399 = vmatpush1.msra.mxu0 %v1372
    %1400 = vmatprep.subr.mxu0 %v1371
    %1401 = vmatpush1.msra.mxu0 %v1370
    %1402 = vmatprep.subr.mxu0 %v1369
    %1403 = vmatpush1.msra.mxu0 %v1368
    %1404 = vmatprep.subr.mxu0 %v1367
    %1405 = vmatpush1.msra.mxu0 %v1366
    %1406 = vmatprep.subr.mxu0 %v1365
    %1407 = vmatpush1.msra.mxu0 %v1364
    %1408 = vmatprep.subr.mxu0 %v1363
    %1409 = vmatpush1.msra.mxu0 %v1362
    %1410 = vmatprep.subr.mxu0 %v1361
    %1411 = vmatpush1.msra.mxu0 %v1360
    %1412 = vmatprep.subr.mxu0 %v1359
    %1413 = vmatpush1.msra.mxu0 %v1358
    %1414 = vmatprep.subr.mxu0 %v1357
    %1415 = vmatpush1.msra.mxu0 %v1356
    %1416 = vmatprep.subr.mxu0 %v1355
    %1417 = vmatpush1.msra.mxu0 %v1354
    %1418 = vmatprep.subr.mxu0 %v1353
    %1419 = vmatpush1.msra.mxu0 %v1352
    %1420 = vmatprep.subr.mxu0 %v1351
    %1421 = vmatpush1.msra.mxu0 %v1350
    %1422 = vmatprep.subr.mxu0 0.0
    %1423 = vmatpush2.msra.mxu0 0.0
    %1424 = vmatprep.subr.mxu0 0.0
    %1425 = vmatpush2.msra.mxu0 0.0
    %1426 = vmatprep.subr.mxu0 0.0
    %1427 = vmatpush2.msra.mxu0 0.0
    %1428 = vmatprep.subr.mxu0 0.0
    %1429 = vmatpush2.msra.mxu0 0.0
    %1430 = vmatprep.subr.mxu0 0.0
    %1431 = vmatpush2.msra.mxu0 0.0
    %1432 = vmatprep.subr.mxu0 0.0
    %1433 = vmatpush2.msra.mxu0 0.0
    %1434 = vmatprep.subr.mxu0 0.0
    %1435 = vmatpush2.msra.mxu0 0.0
    %1436 = vmatprep.subr.mxu0 0.0
    %1437 = vmatpush2.msra.mxu0 0.0
    %1438 = vmatprep.subr.mxu0 0.0
    %1439 = vmatpush2.msra.mxu0 0.0
    %1440 = vmatprep.subr.mxu0 0.0
    %1441 = vmatpush2.msra.mxu0 0.0
    %1442 = vmatprep.subr.mxu0 0.0
    %1443 = vmatpush2.msra.mxu0 0.0
    %1444 = vmatprep.subr.mxu0 0.0
    %1445 = vmatpush2.msra.mxu0 0.0
    %1446 = vmatprep.subr.mxu0 0.0
    %1447 = vmatpush2.msra.mxu0 0.0
    %1448 = vmatprep.subr.mxu0 0.0
    %1449 = vmatpush2.msra.mxu0 0.0
    %1450 = vmatprep.subr.mxu0 0.0
    %1451 = vmatpush2.msra.mxu0 0.0
    %1452 = vmatprep.subr.mxu0 0.0
    %1453 = vmatpush2.msra.mxu0 0.0
    %1454 = vmatprep.mubr.f32.mxu0 0.0
    %1455 = vmatmul.mubr.f32.gmra.mxu0 %v1388
    %v1456 = vpop.f32.mrf.mxu0
    %v1457 = vadd.f32 %v1379, %v1456
    %v1458 = vpop.f32.mrf.mxu0
    %v1459 = vadd.f32 %v1383, %v1458
    %1460 = vdwg.mxu0
    %v1461 = vsel %vm44, %v1457, %v1459
    %v1462 = vtanh.pop %v1461
    %v1463 = vxor.u32 %v1461, 2147483648
    %v1464 = vmul.f32 %v1463, 1.442695
    %v1465 = vpow.pop %v1464
    %v1466 = vadd.f32 %v1465, 1.0
    %v1467 = vrcp.pop %v1466
    %v1468 = vmul.f32 1.0, %v1467
    %v1469 = vsel %vm41, %v1462, %v1468
    %v1470 = vld [vmem:[#allocation5] sm:$0xf]
    %1472 = vrot.lane.b32.xlu0 %v1470, 32
    %v1473 = vpop.permute.xlu0 %1472
    %v1475 = vmul.f32 %v1469, %v1473
    %1477 = vrot.lane.b32.xlu0 %v1469, 64
    %v1478 = vpop.permute.xlu0 %1477
    %v1480 = vmul.f32 %v1469, %v1478
    %1482 = vrot.lane.b32.xlu0 %v1480, 32
    %v1483 = vpop.permute.xlu0 %1482
    %v1485 = vadd.f32 %v1475, %v1483
    %v1486 = vtanh.pop %v1485
    %1488 = vrot.lane.b32.xlu0 %v1486, 64
    %v1489 = vpop.permute.xlu0 %1488
    %v1491 = vmul.f32 %v1469, %v1489
    %1493 = vrot.lane.b32.xlu0 %v1491, 32
    %v1494 = vpop.permute.xlu0 %1493
    %1496 = vst.msk [vmem:[#allocation4] sm:$0xf] %vm204, %v1494
    %1498 = vrot.lane.b32.xlu0 %v1485, 96
    %v1499 = vpop.permute.xlu0 %1498
    %1501 = vst.msk [vmem:[#allocation5] sm:$0xf] %vm204, %v1499
    %1502 = vst.msk [vmem:[#allocation3] sm:$0x3] %vm46, %v1494
    %1503 = vrot.lane.b32.xlu0 %v1491, 64
    %v1504 = vpop.permute.xlu0 %1503
    %s1506 = scalar_lea.vmem [#allocation3], 14
    %1507 = vst.msk [vmem:[%s1506 - $0x2] sm:$0xc] %vm216, %v1504
    %v1508 = vld [vmem:[%s370] sm:$0x3]
    %1509 = vst.msk [vmem:[#allocation6] sm:$0x3] %vm1338, %v1508
    %v1510 = vld [vmem:[%s375] sm:$0x3]
    %1511 = vst.msk [vmem:[#allocation6 + $0x2] sm:$0x3] %vm1338, %v1510
    %v1512 = vld [vmem:[#allocation4] sm:$0xf]
    %1514 = vrot.lane.b32.xlu0 %v1512, 64
    %v1515 = vpop.permute.xlu0 %1514
    %1517 = vst.msk [vmem:[#allocation6] sm:$0xf] %vm1347, %v1515
    %v1518 = vld [vmem:[#allocation6] sm:$0xf]
    %v1519 = vld [vmem:[%s3] sm:$0xff]
    %v1520 = vld [vmem:[%s3 + $0x8] sm:$0xff]
    %v1521 = vld [vmem:[%s3 + $0x10] sm:$0xff]
    %v1522 = vld [vmem:[%s3 + $0x18] sm:$0xff]
    %v1523 = vld [vmem:[%s3 + $0x20] sm:$0xff]
    %v1524 = vld [vmem:[%s3 + $0x28] sm:$0xff]
    %v1525 = vld [vmem:[%s3 + $0x30] sm:$0xff]
    %v1526 = vld [vmem:[%s3 + $0x38] sm:$0xff]
    %v1527 = vld [vmem:[%s3 + $0x40] sm:$0xff]
    %v1528 = vld [vmem:[%s3 + $0x48] sm:$0xff]
    %v1529 = vld [vmem:[%s3 + $0x50] sm:$0xff]
    %v1530 = vld [vmem:[%s3 + $0x58] sm:$0xff]
    %v1531 = vld [vmem:[%s3 + $0x60] sm:$0xff]
    %v1532 = vld [vmem:[%s3 + $0x68] sm:$0xff]
    %v1533 = vld [vmem:[%s3 + $0x70] sm:$0xff]
    %v1534 = vld [vmem:[%s3 + $0x78] sm:$0xff]
    %v1535 = vld [vmem:[%s3 + $0x80] sm:$0xff]
    %v1536 = vld [vmem:[%s3 + $0x88] sm:$0xff]
    %v1537 = vld [vmem:[%s3 + $0x90] sm:$0xff]
    %v1538 = vld [vmem:[%s3 + $0x98] sm:$0xff]
    %v1539 = vld [vmem:[%s3 + $0xa0] sm:$0xff]
    %v1540 = vld [vmem:[%s3 + $0xa8] sm:$0xff]
    %v1541 = vld [vmem:[%s3 + $0xb0] sm:$0xff]
    %v1542 = vld [vmem:[%s3 + $0xb8] sm:$0xff]
    %v1543 = vld [vmem:[%s4] sm:$0x3]
    %v1545 = vlaneseq
    %v1546 = vshrl.u32 %v1545, 7
    %v1547 = vsub.s32 0, %v1546
    %v1548 = vrot.slane %v1543, %v1547
    %v1549 = vlaneseq
    %v1550 = vshrl.u32 %v1549, 7
    %v1551 = vsub.s32 1, %v1550
    %v1552 = vrot.slane %v1543, %v1551
    %v1556 = vsel %vm1386, %v1518, 0
    %1558 = vmatprep.subr.mxu0 0.0
    %1559 = vmatpush1.msra.mxu0 0.0
    %1560 = vmatprep.subr.mxu0 0.0
    %1561 = vmatpush1.msra.mxu0 0.0
    %1562 = vmatprep.subr.mxu0 0.0
    %1563 = vmatpush1.msra.mxu0 0.0
    %1564 = vmatprep.subr.mxu0 0.0
    %1565 = vmatpush1.msra.mxu0 0.0
    %1566 = vmatprep.subr.mxu0 %v1542
    %1567 = vmatpush1.msra.mxu0 %v1541
    %1568 = vmatprep.subr.mxu0 %v1540
    %1569 = vmatpush1.msra.mxu0 %v1539
    %1570 = vmatprep.subr.mxu0 %v1538
    %1571 = vmatpush1.msra.mxu0 %v1537
    %1572 = vmatprep.subr.mxu0 %v1536
    %1573 = vmatpush1.msra.mxu0 %v1535
    %1574 = vmatprep.subr.mxu0 %v1534
    %1575 = vmatpush1.msra.mxu0 %v1533
    %1576 = vmatprep.subr.mxu0 %v1532
    %1577 = vmatpush1.msra.mxu0 %v1531
    %1578 = vmatprep.subr.mxu0 %v1530
    %1579 = vmatpush1.msra.mxu0 %v1529
    %1580 = vmatprep.subr.mxu0 %v1528
    %1581 = vmatpush1.msra.mxu0 %v1527
    %1582 = vmatprep.subr.mxu0 %v1526
    %1583 = vmatpush1.msra.mxu0 %v1525
    %1584 = vmatprep.subr.mxu0 %v1524
    %1585 = vmatpush1.msra.mxu0 %v1523
    %1586 = vmatprep.subr.mxu0 %v1522
    %1587 = vmatpush1.msra.mxu0 %v1521
    %1588 = vmatprep.subr.mxu0 %v1520
    %1589 = vmatpush1.msra.mxu0 %v1519
    %1590 = vmatprep.subr.mxu0 0.0
    %1591 = vmatpush2.msra.mxu0 0.0
    %1592 = vmatprep.subr.mxu0 0.0
    %1593 = vmatpush2.msra.mxu0 0.0
    %1594 = vmatprep.subr.mxu0 0.0
    %1595 = vmatpush2.msra.mxu0 0.0
    %1596 = vmatprep.subr.mxu0 0.0
    %1597 = vmatpush2.msra.mxu0 0.0
    %1598 = vmatprep.subr.mxu0 0.0
    %1599 = vmatpush2.msra.mxu0 0.0
    %1600 = vmatprep.subr.mxu0 0.0
    %1601 = vmatpush2.msra.mxu0 0.0
    %1602 = vmatprep.subr.mxu0 0.0
    %1603 = vmatpush2.msra.mxu0 0.0
    %1604 = vmatprep.subr.mxu0 0.0
    %1605 = vmatpush2.msra.mxu0 0.0
    %1606 = vmatprep.subr.mxu0 0.0
    %1607 = vmatpush2.msra.mxu0 0.0
    %1608 = vmatprep.subr.mxu0 0.0
    %1609 = vmatpush2.msra.mxu0 0.0
    %1610 = vmatprep.subr.mxu0 0.0
    %1611 = vmatpush2.msra.mxu0 0.0
    %1612 = vmatprep.subr.mxu0 0.0
    %1613 = vmatpush2.msra.mxu0 0.0
    %1614 = vmatprep.subr.mxu0 0.0
    %1615 = vmatpush2.msra.mxu0 0.0
    %1616 = vmatprep.subr.mxu0 0.0
    %1617 = vmatpush2.msra.mxu0 0.0
    %1618 = vmatprep.subr.mxu0 0.0
    %1619 = vmatpush2.msra.mxu0 0.0
    %1620 = vmatprep.subr.mxu0 0.0
    %1621 = vmatpush2.msra.mxu0 0.0
    %1622 = vmatprep.mubr.f32.mxu0 0.0
    %1623 = vmatmul.mubr.f32.gmra.mxu0 %v1556
    %v1624 = vpop.f32.mrf.mxu0
    %v1625 = vadd.f32 %v1548, %v1624
    %v1626 = vpop.f32.mrf.mxu0
    %v1627 = vadd.f32 %v1552, %v1626
    %1628 = vdwg.mxu0
    %v1629 = vsel %vm44, %v1625, %v1627
    %v1630 = vtanh.pop %v1629
    %v1631 = vxor.u32 %v1629, 2147483648
    %v1632 = vmul.f32 %v1631, 1.442695
    %v1633 = vpow.pop %v1632
    %v1634 = vadd.f32 %v1633, 1.0
    %v1635 = vrcp.pop %v1634
    %v1636 = vmul.f32 1.0, %v1635
    %v1637 = vsel %vm41, %v1630, %v1636
    %v1638 = vld [vmem:[#allocation5] sm:$0xf]
    %1640 = vrot.lane.b32.xlu0 %v1638, 32
    %v1641 = vpop.permute.xlu0 %1640
    %v1643 = vmul.f32 %v1637, %v1641
    %1645 = vrot.lane.b32.xlu0 %v1637, 64
    %v1646 = vpop.permute.xlu0 %1645
    %v1648 = vmul.f32 %v1637, %v1646
    %1650 = vrot.lane.b32.xlu0 %v1648, 32
    %v1651 = vpop.permute.xlu0 %1650
    %v1653 = vadd.f32 %v1643, %v1651
    %v1654 = vtanh.pop %v1653
    %1656 = vrot.lane.b32.xlu0 %v1654, 64
    %v1657 = vpop.permute.xlu0 %1656
    %v1659 = vmul.f32 %v1637, %v1657
    %1661 = vrot.lane.b32.xlu0 %v1659, 32
    %v1662 = vpop.permute.xlu0 %1661
    %1664 = vst.msk [vmem:[#allocation4] sm:$0xf] %vm204, %v1662
    %1666 = vrot.lane.b32.xlu0 %v1653, 96
    %v1667 = vpop.permute.xlu0 %1666
    %1669 = vst.msk [vmem:[#allocation5] sm:$0xf] %vm204, %v1667
    %s1670 = scalar_lea.vmem [#allocation3], 2
    %1671 = vst.msk [vmem:[%s1670] sm:$0x3] %vm46, %v1662
    %1672 = vrot.lane.b32.xlu0 %v1659, 64
    %v1673 = vpop.permute.xlu0 %1672
    %s1675 = scalar_lea.vmem [#allocation3], 12
    %1676 = vst.msk [vmem:[%s1675 - $0x2] sm:$0xc] %vm216, %v1673
    %v1677 = vld [vmem:[%s529] sm:$0x3]
    %1678 = vst.msk [vmem:[#allocation6] sm:$0x3] %vm1338, %v1677
    %v1679 = vld [vmem:[%s534] sm:$0x3]
    %1680 = vst.msk [vmem:[#allocation6 + $0x2] sm:$0x3] %vm1338, %v1679
    %v1681 = vld [vmem:[#allocation4] sm:$0xf]
    %1683 = vrot.lane.b32.xlu0 %v1681, 64
    %v1684 = vpop.permute.xlu0 %1683
    %1686 = vst.msk [vmem:[#allocation6] sm:$0xf] %vm1347, %v1684
    %v1687 = vld [vmem:[#allocation6] sm:$0xf]
    %v1688 = vld [vmem:[%s3] sm:$0xff]
    %v1689 = vld [vmem:[%s3 + $0x8] sm:$0xff]
    %v1690 = vld [vmem:[%s3 + $0x10] sm:$0xff]
    %v1691 = vld [vmem:[%s3 + $0x18] sm:$0xff]
    %v1692 = vld [vmem:[%s3 + $0x20] sm:$0xff]
    %v1693 = vld [vmem:[%s3 + $0x28] sm:$0xff]
    %v1694 = vld [vmem:[%s3 + $0x30] sm:$0xff]
    %v1695 = vld [vmem:[%s3 + $0x38] sm:$0xff]
    %v1696 = vld [vmem:[%s3 + $0x40] sm:$0xff]
    %v1697 = vld [vmem:[%s3 + $0x48] sm:$0xff]
    %v1698 = vld [vmem:[%s3 + $0x50] sm:$0xff]
    %v1699 = vld [vmem:[%s3 + $0x58] sm:$0xff]
    %v1700 = vld [vmem:[%s3 + $0x60] sm:$0xff]
    %v1701 = vld [vmem:[%s3 + $0x68] sm:$0xff]
    %v1702 = vld [vmem:[%s3 + $0x70] sm:$0xff]
    %v1703 = vld [vmem:[%s3 + $0x78] sm:$0xff]
    %v1704 = vld [vmem:[%s3 + $0x80] sm:$0xff]
    %v1705 = vld [vmem:[%s3 + $0x88] sm:$0xff]
    %v1706 = vld [vmem:[%s3 + $0x90] sm:$0xff]
    %v1707 = vld [vmem:[%s3 + $0x98] sm:$0xff]
    %v1708 = vld [vmem:[%s3 + $0xa0] sm:$0xff]
    %v1709 = vld [vmem:[%s3 + $0xa8] sm:$0xff]
    %v1710 = vld [vmem:[%s3 + $0xb0] sm:$0xff]
    %v1711 = vld [vmem:[%s3 + $0xb8] sm:$0xff]
    %v1712 = vld [vmem:[%s4] sm:$0x3]
    %v1714 = vlaneseq
    %v1715 = vshrl.u32 %v1714, 7
    %v1716 = vsub.s32 0, %v1715
    %v1717 = vrot.slane %v1712, %v1716
    %v1718 = vlaneseq
    %v1719 = vshrl.u32 %v1718, 7
    %v1720 = vsub.s32 1, %v1719
    %v1721 = vrot.slane %v1712, %v1720
    %v1725 = vsel %vm1386, %v1687, 0
    %1727 = vmatprep.subr.mxu0 0.0
    %1728 = vmatpush1.msra.mxu0 0.0
    %1729 = vmatprep.subr.mxu0 0.0
    %1730 = vmatpush1.msra.mxu0 0.0
    %1731 = vmatprep.subr.mxu0 0.0
    %1732 = vmatpush1.msra.mxu0 0.0
    %1733 = vmatprep.subr.mxu0 0.0
    %1734 = vmatpush1.msra.mxu0 0.0
    %1735 = vmatprep.subr.mxu0 %v1711
    %1736 = vmatpush1.msra.mxu0 %v1710
    %1737 = vmatprep.subr.mxu0 %v1709
    %1738 = vmatpush1.msra.mxu0 %v1708
    %1739 = vmatprep.subr.mxu0 %v1707
    %1740 = vmatpush1.msra.mxu0 %v1706
    %1741 = vmatprep.subr.mxu0 %v1705
    %1742 = vmatpush1.msra.mxu0 %v1704
    %1743 = vmatprep.subr.mxu0 %v1703
    %1744 = vmatpush1.msra.mxu0 %v1702
    %1745 = vmatprep.subr.mxu0 %v1701
    %1746 = vmatpush1.msra.mxu0 %v1700
    %1747 = vmatprep.subr.mxu0 %v1699
    %1748 = vmatpush1.msra.mxu0 %v1698
    %1749 = vmatprep.subr.mxu0 %v1697
    %1750 = vmatpush1.msra.mxu0 %v1696
    %1751 = vmatprep.subr.mxu0 %v1695
    %1752 = vmatpush1.msra.mxu0 %v1694
    %1753 = vmatprep.subr.mxu0 %v1693
    %1754 = vmatpush1.msra.mxu0 %v1692
    %1755 = vmatprep.subr.mxu0 %v1691
    %1756 = vmatpush1.msra.mxu0 %v1690
    %1757 = vmatprep.subr.mxu0 %v1689
    %1758 = vmatpush1.msra.mxu0 %v1688
    %1759 = vmatprep.subr.mxu0 0.0
    %1760 = vmatpush2.msra.mxu0 0.0
    %1761 = vmatprep.subr.mxu0 0.0
    %1762 = vmatpush2.msra.mxu0 0.0
    %1763 = vmatprep.subr.mxu0 0.0
    %1764 = vmatpush2.msra.mxu0 0.0
    %1765 = vmatprep.subr.mxu0 0.0
    %1766 = vmatpush2.msra.mxu0 0.0
    %1767 = vmatprep.subr.mxu0 0.0
    %1768 = vmatpush2.msra.mxu0 0.0
    %1769 = vmatprep.subr.mxu0 0.0
    %1770 = vmatpush2.msra.mxu0 0.0
    %1771 = vmatprep.subr.mxu0 0.0
    %1772 = vmatpush2.msra.mxu0 0.0
    %1773 = vmatprep.subr.mxu0 0.0
    %1774 = vmatpush2.msra.mxu0 0.0
    %1775 = vmatprep.subr.mxu0 0.0
    %1776 = vmatpush2.msra.mxu0 0.0
    %1777 = vmatprep.subr.mxu0 0.0
    %1778 = vmatpush2.msra.mxu0 0.0
    %1779 = vmatprep.subr.mxu0 0.0
    %1780 = vmatpush2.msra.mxu0 0.0
    %1781 = vmatprep.subr.mxu0 0.0
    %1782 = vmatpush2.msra.mxu0 0.0
    %1783 = vmatprep.subr.mxu0 0.0
    %1784 = vmatpush2.msra.mxu0 0.0
    %1785 = vmatprep.subr.mxu0 0.0
    %1786 = vmatpush2.msra.mxu0 0.0
    %1787 = vmatprep.subr.mxu0 0.0
    %1788 = vmatpush2.msra.mxu0 0.0
    %1789 = vmatprep.subr.mxu0 0.0
    %1790 = vmatpush2.msra.mxu0 0.0
    %1791 = vmatprep.mubr.f32.mxu0 0.0
    %1792 = vmatmul.mubr.f32.gmra.mxu0 %v1725
    %v1793 = vpop.f32.mrf.mxu0
    %v1794 = vadd.f32 %v1717, %v1793
    %v1795 = vpop.f32.mrf.mxu0
    %v1796 = vadd.f32 %v1721, %v1795
    %1797 = vdwg.mxu0
    %v1798 = vsel %vm44, %v1794, %v1796
    %v1799 = vtanh.pop %v1798
    %v1800 = vxor.u32 %v1798, 2147483648
    %v1801 = vmul.f32 %v1800, 1.442695
    %v1802 = vpow.pop %v1801
    %v1803 = vadd.f32 %v1802, 1.0
    %v1804 = vrcp.pop %v1803
    %v1805 = vmul.f32 1.0, %v1804
    %v1806 = vsel %vm41, %v1799, %v1805
    %v1807 = vld [vmem:[#allocation5] sm:$0xf]
    %1809 = vrot.lane.b32.xlu0 %v1807, 32
    %v1810 = vpop.permute.xlu0 %1809
    %v1812 = vmul.f32 %v1806, %v1810
    %1814 = vrot.lane.b32.xlu0 %v1806, 64
    %v1815 = vpop.permute.xlu0 %1814
    %v1817 = vmul.f32 %v1806, %v1815
    %1819 = vrot.lane.b32.xlu0 %v1817, 32
    %v1820 = vpop.permute.xlu0 %1819
    %v1822 = vadd.f32 %v1812, %v1820
    %v1823 = vtanh.pop %v1822
    %1825 = vrot.lane.b32.xlu0 %v1823, 64
    %v1826 = vpop.permute.xlu0 %1825
    %v1828 = vmul.f32 %v1806, %v1826
    %1830 = vrot.lane.b32.xlu0 %v1828, 32
    %v1831 = vpop.permute.xlu0 %1830
    %1833 = vst.msk [vmem:[#allocation4] sm:$0xf] %vm204, %v1831
    %1835 = vrot.lane.b32.xlu0 %v1822, 96
    %v1836 = vpop.permute.xlu0 %1835
    %1838 = vst.msk [vmem:[#allocation5] sm:$0xf] %vm204, %v1836
    %s1839 = scalar_lea.vmem [#allocation3], 4
    %1840 = vst.msk [vmem:[%s1839] sm:$0x3] %vm46, %v1831
    %1841 = vrot.lane.b32.xlu0 %v1828, 64
    %v1842 = vpop.permute.xlu0 %1841
    %s1844 = scalar_lea.vmem [#allocation3], 10
    %1845 = vst.msk [vmem:[%s1844 - $0x2] sm:$0xc] %vm216, %v1842
    %v1846 = vld [vmem:[%s688] sm:$0x3]
    %1847 = vst.msk [vmem:[#allocation6] sm:$0x3] %vm1338, %v1846
    %v1848 = vld [vmem:[%s693] sm:$0x3]
    %1849 = vst.msk [vmem:[#allocation6 + $0x2] sm:$0x3] %vm1338, %v1848
    %v1850 = vld [vmem:[#allocation4] sm:$0xf]
    %1852 = vrot.lane.b32.xlu0 %v1850, 64
    %v1853 = vpop.permute.xlu0 %1852
    %1855 = vst.msk [vmem:[#allocation6] sm:$0xf] %vm1347, %v1853
    %v1856 = vld [vmem:[#allocation6] sm:$0xf]
    %v1857 = vld [vmem:[%s3] sm:$0xff]
    %v1858 = vld [vmem:[%s3 + $0x8] sm:$0xff]
    %v1859 = vld [vmem:[%s3 + $0x10] sm:$0xff]
    %v1860 = vld [vmem:[%s3 + $0x18] sm:$0xff]
    %v1861 = vld [vmem:[%s3 + $0x20] sm:$0xff]
    %v1862 = vld [vmem:[%s3 + $0x28] sm:$0xff]
    %v1863 = vld [vmem:[%s3 + $0x30] sm:$0xff]
    %v1864 = vld [vmem:[%s3 + $0x38] sm:$0xff]
    %v1865 = vld [vmem:[%s3 + $0x40] sm:$0xff]
    %v1866 = vld [vmem:[%s3 + $0x48] sm:$0xff]
    %v1867 = vld [vmem:[%s3 + $0x50] sm:$0xff]
    %v1868 = vld [vmem:[%s3 + $0x58] sm:$0xff]
    %v1869 = vld [vmem:[%s3 + $0x60] sm:$0xff]
    %v1870 = vld [vmem:[%s3 + $0x68] sm:$0xff]
    %v1871 = vld [vmem:[%s3 + $0x70] sm:$0xff]
    %v1872 = vld [vmem:[%s3 + $0x78] sm:$0xff]
    %v1873 = vld [vmem:[%s3 + $0x80] sm:$0xff]
    %v1874 = vld [vmem:[%s3 + $0x88] sm:$0xff]
    %v1875 = vld [vmem:[%s3 + $0x90] sm:$0xff]
    %v1876 = vld [vmem:[%s3 + $0x98] sm:$0xff]
    %v1877 = vld [vmem:[%s3 + $0xa0] sm:$0xff]
    %v1878 = vld [vmem:[%s3 + $0xa8] sm:$0xff]
    %v1879 = vld [vmem:[%s3 + $0xb0] sm:$0xff]
    %v1880 = vld [vmem:[%s3 + $0xb8] sm:$0xff]
    %v1881 = vld [vmem:[%s4] sm:$0x3]
    %v1883 = vlaneseq
    %v1884 = vshrl.u32 %v1883, 7
    %v1885 = vsub.s32 0, %v1884
    %v1886 = vrot.slane %v1881, %v1885
    %v1887 = vlaneseq
    %v1888 = vshrl.u32 %v1887, 7
    %v1889 = vsub.s32 1, %v1888
    %v1890 = vrot.slane %v1881, %v1889
    %v1894 = vsel %vm1386, %v1856, 0
    %1896 = vmatprep.subr.mxu0 0.0
    %1897 = vmatpush1.msra.mxu0 0.0
    %1898 = vmatprep.subr.mxu0 0.0
    %1899 = vmatpush1.msra.mxu0 0.0
    %1900 = vmatprep.subr.mxu0 0.0
    %1901 = vmatpush1.msra.mxu0 0.0
    %1902 = vmatprep.subr.mxu0 0.0
    %1903 = vmatpush1.msra.mxu0 0.0
    %1904 = vmatprep.subr.mxu0 %v1880
    %1905 = vmatpush1.msra.mxu0 %v1879
    %1906 = vmatprep.subr.mxu0 %v1878
    %1907 = vmatpush1.msra.mxu0 %v1877
    %1908 = vmatprep.subr.mxu0 %v1876
    %1909 = vmatpush1.msra.mxu0 %v1875
    %1910 = vmatprep.subr.mxu0 %v1874
    %1911 = vmatpush1.msra.mxu0 %v1873
    %1912 = vmatprep.subr.mxu0 %v1872
    %1913 = vmatpush1.msra.mxu0 %v1871
    %1914 = vmatprep.subr.mxu0 %v1870
    %1915 = vmatpush1.msra.mxu0 %v1869
    %1916 = vmatprep.subr.mxu0 %v1868
    %1917 = vmatpush1.msra.mxu0 %v1867
    %1918 = vmatprep.subr.mxu0 %v1866
    %1919 = vmatpush1.msra.mxu0 %v1865
    %1920 = vmatprep.subr.mxu0 %v1864
    %1921 = vmatpush1.msra.mxu0 %v1863
    %1922 = vmatprep.subr.mxu0 %v1862
    %1923 = vmatpush1.msra.mxu0 %v1861
    %1924 = vmatprep.subr.mxu0 %v1860
    %1925 = vmatpush1.msra.mxu0 %v1859
    %1926 = vmatprep.subr.mxu0 %v1858
    %1927 = vmatpush1.msra.mxu0 %v1857
    %1928 = vmatprep.subr.mxu0 0.0
    %1929 = vmatpush2.msra.mxu0 0.0
    %1930 = vmatprep.subr.mxu0 0.0
    %1931 = vmatpush2.msra.mxu0 0.0
    %1932 = vmatprep.subr.mxu0 0.0
    %1933 = vmatpush2.msra.mxu0 0.0
    %1934 = vmatprep.subr.mxu0 0.0
    %1935 = vmatpush2.msra.mxu0 0.0
    %1936 = vmatprep.subr.mxu0 0.0
    %1937 = vmatpush2.msra.mxu0 0.0
    %1938 = vmatprep.subr.mxu0 0.0
    %1939 = vmatpush2.msra.mxu0 0.0
    %1940 = vmatprep.subr.mxu0 0.0
    %1941 = vmatpush2.msra.mxu0 0.0
    %1942 = vmatprep.subr.mxu0 0.0
    %1943 = vmatpush2.msra.mxu0 0.0
    %1944 = vmatprep.subr.mxu0 0.0
    %1945 = vmatpush2.msra.mxu0 0.0
    %1946 = vmatprep.subr.mxu0 0.0
    %1947 = vmatpush2.msra.mxu0 0.0
    %1948 = vmatprep.subr.mxu0 0.0
    %1949 = vmatpush2.msra.mxu0 0.0
    %1950 = vmatprep.subr.mxu0 0.0
    %1951 = vmatpush2.msra.mxu0 0.0
    %1952 = vmatprep.subr.mxu0 0.0
    %1953 = vmatpush2.msra.mxu0 0.0
    %1954 = vmatprep.subr.mxu0 0.0
    %1955 = vmatpush2.msra.mxu0 0.0
    %1956 = vmatprep.subr.mxu0 0.0
    %1957 = vmatpush2.msra.mxu0 0.0
    %1958 = vmatprep.subr.mxu0 0.0
    %1959 = vmatpush2.msra.mxu0 0.0
    %1960 = vmatprep.mubr.f32.mxu0 0.0
    %1961 = vmatmul.mubr.f32.gmra.mxu0 %v1894
    %v1962 = vpop.f32.mrf.mxu0
    %v1963 = vadd.f32 %v1886, %v1962
    %v1964 = vpop.f32.mrf.mxu0
    %v1965 = vadd.f32 %v1890, %v1964
    %1966 = vdwg.mxu0
    %v1967 = vsel %vm44, %v1963, %v1965
    %v1968 = vtanh.pop %v1967
    %v1969 = vxor.u32 %v1967, 2147483648
    %v1970 = vmul.f32 %v1969, 1.442695
    %v1971 = vpow.pop %v1970
    %v1972 = vadd.f32 %v1971, 1.0
    %v1973 = vrcp.pop %v1972
    %v1974 = vmul.f32 1.0, %v1973
    %v1975 = vsel %vm41, %v1968, %v1974
    %v1976 = vld [vmem:[#allocation5] sm:$0xf]
    %1978 = vrot.lane.b32.xlu0 %v1976, 32
    %v1979 = vpop.permute.xlu0 %1978
    %v1981 = vmul.f32 %v1975, %v1979
    %1983 = vrot.lane.b32.xlu0 %v1975, 64
    %v1984 = vpop.permute.xlu0 %1983
    %v1986 = vmul.f32 %v1975, %v1984
    %1988 = vrot.lane.b32.xlu0 %v1986, 32
    %v1989 = vpop.permute.xlu0 %1988
    %v1991 = vadd.f32 %v1981, %v1989
    %v1992 = vtanh.pop %v1991
    %1994 = vrot.lane.b32.xlu0 %v1992, 64
    %v1995 = vpop.permute.xlu0 %1994
    %v1997 = vmul.f32 %v1975, %v1995
    %1999 = vrot.lane.b32.xlu0 %v1997, 32
    %v2000 = vpop.permute.xlu0 %1999
    %2002 = vst.msk [vmem:[#allocation4] sm:$0xf] %vm204, %v2000
    %2004 = vrot.lane.b32.xlu0 %v1991, 96
    %v2005 = vpop.permute.xlu0 %2004
    %2007 = vst.msk [vmem:[#allocation5] sm:$0xf] %vm204, %v2005
    %s2008 = scalar_lea.vmem [#allocation3], 6
    %2009 = vst.msk [vmem:[%s2008] sm:$0x3] %vm46, %v2000
    %2010 = vrot.lane.b32.xlu0 %v1997, 64
    %v2011 = vpop.permute.xlu0 %2010
    %s2013 = scalar_lea.vmem [#allocation3], 8
    %2014 = vst.msk [vmem:[%s2013 - $0x2] sm:$0xc] %vm216, %v2011
    %v2015 = vld [vmem:[%s693] sm:$0x3]
    %2016 = vst.msk [vmem:[#allocation6] sm:$0x3] %vm1338, %v2015
    %v2017 = vld [vmem:[%s688] sm:$0x3]
    %2018 = vst.msk [vmem:[#allocation6 + $0x2] sm:$0x3] %vm1338, %v2017
    %v2019 = vld [vmem:[#allocation4] sm:$0xf]
    %2021 = vrot.lane.b32.xlu0 %v2019, 64
    %v2022 = vpop.permute.xlu0 %2021
    %2024 = vst.msk [vmem:[#allocation6] sm:$0xf] %vm1347, %v2022
    %v2025 = vld [vmem:[#allocation6] sm:$0xf]
    %v2026 = vld [vmem:[%s3] sm:$0xff]
    %v2027 = vld [vmem:[%s3 + $0x8] sm:$0xff]
    %v2028 = vld [vmem:[%s3 + $0x10] sm:$0xff]
    %v2029 = vld [vmem:[%s3 + $0x18] sm:$0xff]
    %v2030 = vld [vmem:[%s3 + $0x20] sm:$0xff]
    %v2031 = vld [vmem:[%s3 + $0x28] sm:$0xff]
    %v2032 = vld [vmem:[%s3 + $0x30] sm:$0xff]
    %v2033 = vld [vmem:[%s3 + $0x38] sm:$0xff]
    %v2034 = vld [vmem:[%s3 + $0x40] sm:$0xff]
    %v2035 = vld [vmem:[%s3 + $0x48] sm:$0xff]
    %v2036 = vld [vmem:[%s3 + $0x50] sm:$0xff]
    %v2037 = vld [vmem:[%s3 + $0x58] sm:$0xff]
    %v2038 = vld [vmem:[%s3 + $0x60] sm:$0xff]
    %v2039 = vld [vmem:[%s3 + $0x68] sm:$0xff]
    %v2040 = vld [vmem:[%s3 + $0x70] sm:$0xff]
    %v2041 = vld [vmem:[%s3 + $0x78] sm:$0xff]
    %v2042 = vld [vmem:[%s3 + $0x80] sm:$0xff]
    %v2043 = vld [vmem:[%s3 + $0x88] sm:$0xff]
    %v2044 = vld [vmem:[%s3 + $0x90] sm:$0xff]
    %v2045 = vld [vmem:[%s3 + $0x98] sm:$0xff]
    %v2046 = vld [vmem:[%s3 + $0xa0] sm:$0xff]
    %v2047 = vld [vmem:[%s3 + $0xa8] sm:$0xff]
    %v2048 = vld [vmem:[%s3 + $0xb0] sm:$0xff]
    %v2049 = vld [vmem:[%s3 + $0xb8] sm:$0xff]
    %v2050 = vld [vmem:[%s4] sm:$0x3]
    %v2052 = vlaneseq
    %v2053 = vshrl.u32 %v2052, 7
    %v2054 = vsub.s32 0, %v2053
    %v2055 = vrot.slane %v2050, %v2054
    %v2056 = vlaneseq
    %v2057 = vshrl.u32 %v2056, 7
    %v2058 = vsub.s32 1, %v2057
    %v2059 = vrot.slane %v2050, %v2058
    %v2063 = vsel %vm1386, %v2025, 0
    %2065 = vmatprep.subr.mxu0 0.0
    %2066 = vmatpush1.msra.mxu0 0.0
    %2067 = vmatprep.subr.mxu0 0.0
    %2068 = vmatpush1.msra.mxu0 0.0
    %2069 = vmatprep.subr.mxu0 0.0
    %2070 = vmatpush1.msra.mxu0 0.0
    %2071 = vmatprep.subr.mxu0 0.0
    %2072 = vmatpush1.msra.mxu0 0.0
    %2073 = vmatprep.subr.mxu0 %v2049
    %2074 = vmatpush1.msra.mxu0 %v2048
    %2075 = vmatprep.subr.mxu0 %v2047
    %2076 = vmatpush1.msra.mxu0 %v2046
    %2077 = vmatprep.subr.mxu0 %v2045
    %2078 = vmatpush1.msra.mxu0 %v2044
    %2079 = vmatprep.subr.mxu0 %v2043
    %2080 = vmatpush1.msra.mxu0 %v2042
    %2081 = vmatprep.subr.mxu0 %v2041
    %2082 = vmatpush1.msra.mxu0 %v2040
    %2083 = vmatprep.subr.mxu0 %v2039
    %2084 = vmatpush1.msra.mxu0 %v2038
    %2085 = vmatprep.subr.mxu0 %v2037
    %2086 = vmatpush1.msra.mxu0 %v2036
    %2087 = vmatprep.subr.mxu0 %v2035
    %2088 = vmatpush1.msra.mxu0 %v2034
    %2089 = vmatprep.subr.mxu0 %v2033
    %2090 = vmatpush1.msra.mxu0 %v2032
    %2091 = vmatprep.subr.mxu0 %v2031
    %2092 = vmatpush1.msra.mxu0 %v2030
    %2093 = vmatprep.subr.mxu0 %v2029
    %2094 = vmatpush1.msra.mxu0 %v2028
    %2095 = vmatprep.subr.mxu0 %v2027
    %2096 = vmatpush1.msra.mxu0 %v2026
    %2097 = vmatprep.subr.mxu0 0.0
    %2098 = vmatpush2.msra.mxu0 0.0
    %2099 = vmatprep.subr.mxu0 0.0
    %2100 = vmatpush2.msra.mxu0 0.0
    %2101 = vmatprep.subr.mxu0 0.0
    %2102 = vmatpush2.msra.mxu0 0.0
    %2103 = vmatprep.subr.mxu0 0.0
    %2104 = vmatpush2.msra.mxu0 0.0
    %2105 = vmatprep.subr.mxu0 0.0
    %2106 = vmatpush2.msra.mxu0 0.0
    %2107 = vmatprep.subr.mxu0 0.0
    %2108 = vmatpush2.msra.mxu0 0.0
    %2109 = vmatprep.subr.mxu0 0.0
    %2110 = vmatpush2.msra.mxu0 0.0
    %2111 = vmatprep.subr.mxu0 0.0
    %2112 = vmatpush2.msra.mxu0 0.0
    %2113 = vmatprep.subr.mxu0 0.0
    %2114 = vmatpush2.msra.mxu0 0.0
    %2115 = vmatprep.subr.mxu0 0.0
    %2116 = vmatpush2.msra.mxu0 0.0
    %2117 = vmatprep.subr.mxu0 0.0
    %2118 = vmatpush2.msra.mxu0 0.0
    %2119 = vmatprep.subr.mxu0 0.0
    %2120 = vmatpush2.msra.mxu0 0.0
    %2121 = vmatprep.subr.mxu0 0.0
    %2122 = vmatpush2.msra.mxu0 0.0
    %2123 = vmatprep.subr.mxu0 0.0
    %2124 = vmatpush2.msra.mxu0 0.0
    %2125 = vmatprep.subr.mxu0 0.0
    %2126 = vmatpush2.msra.mxu0 0.0
    %2127 = vmatprep.subr.mxu0 0.0
    %2128 = vmatpush2.msra.mxu0 0.0
    %2129 = vmatprep.mubr.f32.mxu0 0.0
    %2130 = vmatmul.mubr.f32.gmra.mxu0 %v2063
    %v2131 = vpop.f32.mrf.mxu0
    %v2132 = vadd.f32 %v2055, %v2131
    %v2133 = vpop.f32.mrf.mxu0
    %v2134 = vadd.f32 %v2059, %v2133
    %2135 = vdwg.mxu0
    %v2136 = vsel %vm44, %v2132, %v2134
    %v2137 = vtanh.pop %v2136
    %v2138 = vxor.u32 %v2136, 2147483648
    %v2139 = vmul.f32 %v2138, 1.442695
    %v2140 = vpow.pop %v2139
    %v2141 = vadd.f32 %v2140, 1.0
    %v2142 = vrcp.pop %v2141
    %v2143 = vmul.f32 1.0, %v2142
    %v2144 = vsel %vm41, %v2137, %v2143
    %v2145 = vld [vmem:[#allocation5] sm:$0xf]
    %2147 = vrot.lane.b32.xlu0 %v2145, 32
    %v2148 = vpop.permute.xlu0 %2147
    %v2150 = vmul.f32 %v2144, %v2148
    %2152 = vrot.lane.b32.xlu0 %v2144, 64
    %v2153 = vpop.permute.xlu0 %2152
    %v2155 = vmul.f32 %v2144, %v2153
    %2157 = vrot.lane.b32.xlu0 %v2155, 32
    %v2158 = vpop.permute.xlu0 %2157
    %v2160 = vadd.f32 %v2150, %v2158
    %v2161 = vtanh.pop %v2160
    %2163 = vrot.lane.b32.xlu0 %v2161, 64
    %v2164 = vpop.permute.xlu0 %2163
    %v2166 = vmul.f32 %v2144, %v2164
    %2168 = vrot.lane.b32.xlu0 %v2166, 32
    %v2169 = vpop.permute.xlu0 %2168
    %2171 = vst.msk [vmem:[#allocation4] sm:$0xf] %vm204, %v2169
    %2173 = vrot.lane.b32.xlu0 %v2160, 96
    %v2174 = vpop.permute.xlu0 %2173
    %2176 = vst.msk [vmem:[#allocation5] sm:$0xf] %vm204, %v2174
    %2177 = vst.msk [vmem:[%s2013] sm:$0x3] %vm46, %v2169
    %2178 = vrot.lane.b32.xlu0 %v2166, 64
    %v2179 = vpop.permute.xlu0 %2178
    %2181 = vst.msk [vmem:[%s2008 - $0x2] sm:$0xc] %vm216, %v2179
    %v2182 = vld [vmem:[%s534] sm:$0x3]
    %2183 = vst.msk [vmem:[#allocation6] sm:$0x3] %vm1338, %v2182
    %v2184 = vld [vmem:[%s529] sm:$0x3]
    %2185 = vst.msk [vmem:[#allocation6 + $0x2] sm:$0x3] %vm1338, %v2184
    %v2186 = vld [vmem:[#allocation4] sm:$0xf]
    %2188 = vrot.lane.b32.xlu0 %v2186, 64
    %v2189 = vpop.permute.xlu0 %2188
    %2191 = vst.msk [vmem:[#allocation6] sm:$0xf] %vm1347, %v2189
    %v2192 = vld [vmem:[#allocation6] sm:$0xf]
    %v2193 = vld [vmem:[%s3] sm:$0xff]
    %v2194 = vld [vmem:[%s3 + $0x8] sm:$0xff]
    %v2195 = vld [vmem:[%s3 + $0x10] sm:$0xff]
    %v2196 = vld [vmem:[%s3 + $0x18] sm:$0xff]
    %v2197 = vld [vmem:[%s3 + $0x20] sm:$0xff]
    %v2198 = vld [vmem:[%s3 + $0x28] sm:$0xff]
    %v2199 = vld [vmem:[%s3 + $0x30] sm:$0xff]
    %v2200 = vld [vmem:[%s3 + $0x38] sm:$0xff]
    %v2201 = vld [vmem:[%s3 + $0x40] sm:$0xff]
    %v2202 = vld [vmem:[%s3 + $0x48] sm:$0xff]
    %v2203 = vld [vmem:[%s3 + $0x50] sm:$0xff]
    %v2204 = vld [vmem:[%s3 + $0x58] sm:$0xff]
    %v2205 = vld [vmem:[%s3 + $0x60] sm:$0xff]
    %v2206 = vld [vmem:[%s3 + $0x68] sm:$0xff]
    %v2207 = vld [vmem:[%s3 + $0x70] sm:$0xff]
    %v2208 = vld [vmem:[%s3 + $0x78] sm:$0xff]
    %v2209 = vld [vmem:[%s3 + $0x80] sm:$0xff]
    %v2210 = vld [vmem:[%s3 + $0x88] sm:$0xff]
    %v2211 = vld [vmem:[%s3 + $0x90] sm:$0xff]
    %v2212 = vld [vmem:[%s3 + $0x98] sm:$0xff]
    %v2213 = vld [vmem:[%s3 + $0xa0] sm:$0xff]
    %v2214 = vld [vmem:[%s3 + $0xa8] sm:$0xff]
    %v2215 = vld [vmem:[%s3 + $0xb0] sm:$0xff]
    %v2216 = vld [vmem:[%s3 + $0xb8] sm:$0xff]
    %v2217 = vld [vmem:[%s4] sm:$0x3]
    %v2219 = vlaneseq
    %v2220 = vshrl.u32 %v2219, 7
    %v2221 = vsub.s32 0, %v2220
    %v2222 = vrot.slane %v2217, %v2221
    %v2223 = vlaneseq
    %v2224 = vshrl.u32 %v2223, 7
    %v2225 = vsub.s32 1, %v2224
    %v2226 = vrot.slane %v2217, %v2225
    %v2230 = vsel %vm1386, %v2192, 0
    %2232 = vmatprep.subr.mxu0 0.0
    %2233 = vmatpush1.msra.mxu0 0.0
    %2234 = vmatprep.subr.mxu0 0.0
    %2235 = vmatpush1.msra.mxu0 0.0
    %2236 = vmatprep.subr.mxu0 0.0
    %2237 = vmatpush1.msra.mxu0 0.0
    %2238 = vmatprep.subr.mxu0 0.0
    %2239 = vmatpush1.msra.mxu0 0.0
    %2240 = vmatprep.subr.mxu0 %v2216
    %2241 = vmatpush1.msra.mxu0 %v2215
    %2242 = vmatprep.subr.mxu0 %v2214
    %2243 = vmatpush1.msra.mxu0 %v2213
    %2244 = vmatprep.subr.mxu0 %v2212
    %2245 = vmatpush1.msra.mxu0 %v2211
    %2246 = vmatprep.subr.mxu0 %v2210
    %2247 = vmatpush1.msra.mxu0 %v2209
    %2248 = vmatprep.subr.mxu0 %v2208
    %2249 = vmatpush1.msra.mxu0 %v2207
    %2250 = vmatprep.subr.mxu0 %v2206
    %2251 = vmatpush1.msra.mxu0 %v2205
    %2252 = vmatprep.subr.mxu0 %v2204
    %2253 = vmatpush1.msra.mxu0 %v2203
    %2254 = vmatprep.subr.mxu0 %v2202
    %2255 = vmatpush1.msra.mxu0 %v2201
    %2256 = vmatprep.subr.mxu0 %v2200
    %2257 = vmatpush1.msra.mxu0 %v2199
    %2258 = vmatprep.subr.mxu0 %v2198
    %2259 = vmatpush1.msra.mxu0 %v2197
    %2260 = vmatprep.subr.mxu0 %v2196
    %2261 = vmatpush1.msra.mxu0 %v2195
    %2262 = vmatprep.subr.mxu0 %v2194
    %2263 = vmatpush1.msra.mxu0 %v2193
    %2264 = vmatprep.subr.mxu0 0.0
    %2265 = vmatpush2.msra.mxu0 0.0
    %2266 = vmatprep.subr.mxu0 0.0
    %2267 = vmatpush2.msra.mxu0 0.0
    %2268 = vmatprep.subr.mxu0 0.0
    %2269 = vmatpush2.msra.mxu0 0.0
    %2270 = vmatprep.subr.mxu0 0.0
    %2271 = vmatpush2.msra.mxu0 0.0
    %2272 = vmatprep.subr.mxu0 0.0
    %2273 = vmatpush2.msra.mxu0 0.0
    %2274 = vmatprep.subr.mxu0 0.0
    %2275 = vmatpush2.msra.mxu0 0.0
    %2276 = vmatprep.subr.mxu0 0.0
    %2277 = vmatpush2.msra.mxu0 0.0
    %2278 = vmatprep.subr.mxu0 0.0
    %2279 = vmatpush2.msra.mxu0 0.0
    %2280 = vmatprep.subr.mxu0 0.0
    %2281 = vmatpush2.msra.mxu0 0.0
    %2282 = vmatprep.subr.mxu0 0.0
    %2283 = vmatpush2.msra.mxu0 0.0
    %2284 = vmatprep.subr.mxu0 0.0
    %2285 = vmatpush2.msra.mxu0 0.0
    %2286 = vmatprep.subr.mxu0 0.0
    %2287 = vmatpush2.msra.mxu0 0.0
    %2288 = vmatprep.subr.mxu0 0.0
    %2289 = vmatpush2.msra.mxu0 0.0
    %2290 = vmatprep.subr.mxu0 0.0
    %2291 = vmatpush2.msra.mxu0 0.0
    %2292 = vmatprep.subr.mxu0 0.0
    %2293 = vmatpush2.msra.mxu0 0.0
    %2294 = vmatprep.subr.mxu0 0.0
    %2295 = vmatpush2.msra.mxu0 0.0
    %2296 = vmatprep.mubr.f32.mxu0 0.0
    %2297 = vmatmul.mubr.f32.gmra.mxu0 %v2230
    %v2298 = vpop.f32.mrf.mxu0
    %v2299 = vadd.f32 %v2222, %v2298
    %v2300 = vpop.f32.mrf.mxu0
    %v2301 = vadd.f32 %v2226, %v2300
    %2302 = vdwg.mxu0
    %v2303 = vsel %vm44, %v2299, %v2301
    %v2304 = vtanh.pop %v2303
    %v2305 = vxor.u32 %v2303, 2147483648
    %v2306 = vmul.f32 %v2305, 1.442695
    %v2307 = vpow.pop %v2306
    %v2308 = vadd.f32 %v2307, 1.0
    %v2309 = vrcp.pop %v2308
    %v2310 = vmul.f32 1.0, %v2309
    %v2311 = vsel %vm41, %v2304, %v2310
    %v2312 = vld [vmem:[#allocation5] sm:$0xf]
    %2314 = vrot.lane.b32.xlu0 %v2312, 32
    %v2315 = vpop.permute.xlu0 %2314
    %v2317 = vmul.f32 %v2311, %v2315
    %2319 = vrot.lane.b32.xlu0 %v2311, 64
    %v2320 = vpop.permute.xlu0 %2319
    %v2322 = vmul.f32 %v2311, %v2320
    %2324 = vrot.lane.b32.xlu0 %v2322, 32
    %v2325 = vpop.permute.xlu0 %2324
    %v2327 = vadd.f32 %v2317, %v2325
    %v2328 = vtanh.pop %v2327
    %2330 = vrot.lane.b32.xlu0 %v2328, 64
    %v2331 = vpop.permute.xlu0 %2330
    %v2333 = vmul.f32 %v2311, %v2331
    %2335 = vrot.lane.b32.xlu0 %v2333, 32
    %v2336 = vpop.permute.xlu0 %2335
    %2338 = vst.msk [vmem:[#allocation4] sm:$0xf] %vm204, %v2336
    %2340 = vrot.lane.b32.xlu0 %v2327, 96
    %v2341 = vpop.permute.xlu0 %2340
    %2343 = vst.msk [vmem:[#allocation5] sm:$0xf] %vm204, %v2341
    %2344 = vst.msk [vmem:[%s1844] sm:$0x3] %vm46, %v2336
    %2345 = vrot.lane.b32.xlu0 %v2333, 64
    %v2346 = vpop.permute.xlu0 %2345
    %2348 = vst.msk [vmem:[%s1839 - $0x2] sm:$0xc] %vm216, %v2346
    %v2349 = vld [vmem:[%s375] sm:$0x3]
    %2350 = vst.msk [vmem:[#allocation6] sm:$0x3] %vm1338, %v2349
    %v2351 = vld [vmem:[%s370] sm:$0x3]
    %2352 = vst.msk [vmem:[#allocation6 + $0x2] sm:$0x3] %vm1338, %v2351
    %v2353 = vld [vmem:[#allocation4] sm:$0xf]
    %2355 = vrot.lane.b32.xlu0 %v2353, 64
    %v2356 = vpop.permute.xlu0 %2355
    %2358 = vst.msk [vmem:[#allocation6] sm:$0xf] %vm1347, %v2356
    %v2359 = vld [vmem:[#allocation6] sm:$0xf]
    %v2360 = vld [vmem:[%s3] sm:$0xff]
    %v2361 = vld [vmem:[%s3 + $0x8] sm:$0xff]
    %v2362 = vld [vmem:[%s3 + $0x10] sm:$0xff]
    %v2363 = vld [vmem:[%s3 + $0x18] sm:$0xff]
    %v2364 = vld [vmem:[%s3 + $0x20] sm:$0xff]
    %v2365 = vld [vmem:[%s3 + $0x28] sm:$0xff]
    %v2366 = vld [vmem:[%s3 + $0x30] sm:$0xff]
    %v2367 = vld [vmem:[%s3 + $0x38] sm:$0xff]
    %v2368 = vld [vmem:[%s3 + $0x40] sm:$0xff]
    %v2369 = vld [vmem:[%s3 + $0x48] sm:$0xff]
    %v2370 = vld [vmem:[%s3 + $0x50] sm:$0xff]
    %v2371 = vld [vmem:[%s3 + $0x58] sm:$0xff]
    %v2372 = vld [vmem:[%s3 + $0x60] sm:$0xff]
    %v2373 = vld [vmem:[%s3 + $0x68] sm:$0xff]
    %v2374 = vld [vmem:[%s3 + $0x70] sm:$0xff]
    %v2375 = vld [vmem:[%s3 + $0x78] sm:$0xff]
    %v2376 = vld [vmem:[%s3 + $0x80] sm:$0xff]
    %v2377 = vld [vmem:[%s3 + $0x88] sm:$0xff]
    %v2378 = vld [vmem:[%s3 + $0x90] sm:$0xff]
    %v2379 = vld [vmem:[%s3 + $0x98] sm:$0xff]
    %v2380 = vld [vmem:[%s3 + $0xa0] sm:$0xff]
    %v2381 = vld [vmem:[%s3 + $0xa8] sm:$0xff]
    %v2382 = vld [vmem:[%s3 + $0xb0] sm:$0xff]
    %v2383 = vld [vmem:[%s3 + $0xb8] sm:$0xff]
    %v2384 = vld [vmem:[%s4] sm:$0x3]
    %v2386 = vlaneseq
    %v2387 = vshrl.u32 %v2386, 7
    %v2388 = vsub.s32 0, %v2387
    %v2389 = vrot.slane %v2384, %v2388
    %v2390 = vlaneseq
    %v2391 = vshrl.u32 %v2390, 7
    %v2392 = vsub.s32 1, %v2391
    %v2393 = vrot.slane %v2384, %v2392
    %v2397 = vsel %vm1386, %v2359, 0
    %2399 = vmatprep.subr.mxu0 0.0
    %2400 = vmatpush1.msra.mxu0 0.0
    %2401 = vmatprep.subr.mxu0 0.0
    %2402 = vmatpush1.msra.mxu0 0.0
    %2403 = vmatprep.subr.mxu0 0.0
    %2404 = vmatpush1.msra.mxu0 0.0
    %2405 = vmatprep.subr.mxu0 0.0
    %2406 = vmatpush1.msra.mxu0 0.0
    %2407 = vmatprep.subr.mxu0 %v2383
    %2408 = vmatpush1.msra.mxu0 %v2382
    %2409 = vmatprep.subr.mxu0 %v2381
    %2410 = vmatpush1.msra.mxu0 %v2380
    %2411 = vmatprep.subr.mxu0 %v2379
    %2412 = vmatpush1.msra.mxu0 %v2378
    %2413 = vmatprep.subr.mxu0 %v2377
    %2414 = vmatpush1.msra.mxu0 %v2376
    %2415 = vmatprep.subr.mxu0 %v2375
    %2416 = vmatpush1.msra.mxu0 %v2374
    %2417 = vmatprep.subr.mxu0 %v2373
    %2418 = vmatpush1.msra.mxu0 %v2372
    %2419 = vmatprep.subr.mxu0 %v2371
    %2420 = vmatpush1.msra.mxu0 %v2370
    %2421 = vmatprep.subr.mxu0 %v2369
    %2422 = vmatpush1.msra.mxu0 %v2368
    %2423 = vmatprep.subr.mxu0 %v2367
    %2424 = vmatpush1.msra.mxu0 %v2366
    %2425 = vmatprep.subr.mxu0 %v2365
    %2426 = vmatpush1.msra.mxu0 %v2364
    %2427 = vmatprep.subr.mxu0 %v2363
    %2428 = vmatpush1.msra.mxu0 %v2362
    %2429 = vmatprep.subr.mxu0 %v2361
    %2430 = vmatpush1.msra.mxu0 %v2360
    %2431 = vmatprep.subr.mxu0 0.0
    %2432 = vmatpush2.msra.mxu0 0.0
    %2433 = vmatprep.subr.mxu0 0.0
    %2434 = vmatpush2.msra.mxu0 0.0
    %2435 = vmatprep.subr.mxu0 0.0
    %2436 = vmatpush2.msra.mxu0 0.0
    %2437 = vmatprep.subr.mxu0 0.0
    %2438 = vmatpush2.msra.mxu0 0.0
    %2439 = vmatprep.subr.mxu0 0.0
    %2440 = vmatpush2.msra.mxu0 0.0
    %2441 = vmatprep.subr.mxu0 0.0
    %2442 = vmatpush2.msra.mxu0 0.0
    %2443 = vmatprep.subr.mxu0 0.0
    %2444 = vmatpush2.msra.mxu0 0.0
    %2445 = vmatprep.subr.mxu0 0.0
    %2446 = vmatpush2.msra.mxu0 0.0
    %2447 = vmatprep.subr.mxu0 0.0
    %2448 = vmatpush2.msra.mxu0 0.0
    %2449 = vmatprep.subr.mxu0 0.0
    %2450 = vmatpush2.msra.mxu0 0.0
    %2451 = vmatprep.subr.mxu0 0.0
    %2452 = vmatpush2.msra.mxu0 0.0
    %2453 = vmatprep.subr.mxu0 0.0
    %2454 = vmatpush2.msra.mxu0 0.0
    %2455 = vmatprep.subr.mxu0 0.0
    %2456 = vmatpush2.msra.mxu0 0.0
    %2457 = vmatprep.subr.mxu0 0.0
    %2458 = vmatpush2.msra.mxu0 0.0
    %2459 = vmatprep.subr.mxu0 0.0
    %2460 = vmatpush2.msra.mxu0 0.0
    %2461 = vmatprep.subr.mxu0 0.0
    %2462 = vmatpush2.msra.mxu0 0.0
    %2463 = vmatprep.mubr.f32.mxu0 0.0
    %2464 = vmatmul.mubr.f32.gmra.mxu0 %v2397
    %v2465 = vpop.f32.mrf.mxu0
    %v2466 = vadd.f32 %v2389, %v2465
    %v2467 = vpop.f32.mrf.mxu0
    %v2468 = vadd.f32 %v2393, %v2467
    %2469 = vdwg.mxu0
    %v2470 = vsel %vm44, %v2466, %v2468
    %v2471 = vtanh.pop %v2470
    %v2472 = vxor.u32 %v2470, 2147483648
    %v2473 = vmul.f32 %v2472, 1.442695
    %v2474 = vpow.pop %v2473
    %v2475 = vadd.f32 %v2474, 1.0
    %v2476 = vrcp.pop %v2475
    %v2477 = vmul.f32 1.0, %v2476
    %v2478 = vsel %vm41, %v2471, %v2477
    %v2479 = vld [vmem:[#allocation5] sm:$0xf]
    %2481 = vrot.lane.b32.xlu0 %v2479, 32
    %v2482 = vpop.permute.xlu0 %2481
    %v2484 = vmul.f32 %v2478, %v2482
    %2486 = vrot.lane.b32.xlu0 %v2478, 64
    %v2487 = vpop.permute.xlu0 %2486
    %v2489 = vmul.f32 %v2478, %v2487
    %2491 = vrot.lane.b32.xlu0 %v2489, 32
    %v2492 = vpop.permute.xlu0 %2491
    %v2494 = vadd.f32 %v2484, %v2492
    %v2495 = vtanh.pop %v2494
    %2497 = vrot.lane.b32.xlu0 %v2495, 64
    %v2498 = vpop.permute.xlu0 %2497
    %v2500 = vmul.f32 %v2478, %v2498
    %2502 = vrot.lane.b32.xlu0 %v2500, 32
    %v2503 = vpop.permute.xlu0 %2502
    %2505 = vst.msk [vmem:[#allocation4] sm:$0xf] %vm204, %v2503
    %2507 = vrot.lane.b32.xlu0 %v2494, 96
    %v2508 = vpop.permute.xlu0 %2507
    %2510 = vst.msk [vmem:[#allocation5] sm:$0xf] %vm204, %v2508
    %2511 = vst.msk [vmem:[%s1675] sm:$0x3] %vm46, %v2503
    %2512 = vrot.lane.b32.xlu0 %v2500, 64
    %v2513 = vpop.permute.xlu0 %2512
    %2515 = vst.msk [vmem:[%s1670 - $0x2] sm:$0xc] %vm216, %v2513
    %v2516 = vld [vmem:[%s215] sm:$0x3]
    %2517 = vst.msk [vmem:[#allocation6] sm:$0x3] %vm1338, %v2516
    %v2518 = vld [vmem:[#allocation2] sm:$0x3]
    %2519 = vst.msk [vmem:[#allocation6 + $0x2] sm:$0x3] %vm1338, %v2518
    %v2520 = vld [vmem:[#allocation4] sm:$0xf]
    %2522 = vrot.lane.b32.xlu0 %v2520, 64
    %v2523 = vpop.permute.xlu0 %2522
    %2525 = vst.msk [vmem:[#allocation6] sm:$0xf] %vm1347, %v2523
    %v2526 = vld [vmem:[#allocation6] sm:$0xf]
    %v2527 = vld [vmem:[%s3] sm:$0xff]
    %v2528 = vld [vmem:[%s3 + $0x8] sm:$0xff]
    %v2529 = vld [vmem:[%s3 + $0x10] sm:$0xff]
    %v2530 = vld [vmem:[%s3 + $0x18] sm:$0xff]
    %v2531 = vld [vmem:[%s3 + $0x20] sm:$0xff]
    %v2532 = vld [vmem:[%s3 + $0x28] sm:$0xff]
    %v2533 = vld [vmem:[%s3 + $0x30] sm:$0xff]
    %v2534 = vld [vmem:[%s3 + $0x38] sm:$0xff]
    %v2535 = vld [vmem:[%s3 + $0x40] sm:$0xff]
    %v2536 = vld [vmem:[%s3 + $0x48] sm:$0xff]
    %v2537 = vld [vmem:[%s3 + $0x50] sm:$0xff]
    %v2538 = vld [vmem:[%s3 + $0x58] sm:$0xff]
    %v2539 = vld [vmem:[%s3 + $0x60] sm:$0xff]
    %v2540 = vld [vmem:[%s3 + $0x68] sm:$0xff]
    %v2541 = vld [vmem:[%s3 + $0x70] sm:$0xff]
    %v2542 = vld [vmem:[%s3 + $0x78] sm:$0xff]
    %v2543 = vld [vmem:[%s3 + $0x80] sm:$0xff]
    %v2544 = vld [vmem:[%s3 + $0x88] sm:$0xff]
    %v2545 = vld [vmem:[%s3 + $0x90] sm:$0xff]
    %v2546 = vld [vmem:[%s3 + $0x98] sm:$0xff]
    %v2547 = vld [vmem:[%s3 + $0xa0] sm:$0xff]
    %v2548 = vld [vmem:[%s3 + $0xa8] sm:$0xff]
    %v2549 = vld [vmem:[%s3 + $0xb0] sm:$0xff]
    %v2550 = vld [vmem:[%s3 + $0xb8] sm:$0xff]
    %v2551 = vld [vmem:[%s4] sm:$0x3]
    %v2553 = vlaneseq
    %v2554 = vshrl.u32 %v2553, 7
    %v2555 = vsub.s32 0, %v2554
    %v2556 = vrot.slane %v2551, %v2555
    %v2557 = vlaneseq
    %v2558 = vshrl.u32 %v2557, 7
    %v2559 = vsub.s32 1, %v2558
    %v2560 = vrot.slane %v2551, %v2559
    %v2564 = vsel %vm1386, %v2526, 0
    %2566 = vmatprep.subr.mxu0 0.0
    %2567 = vmatpush1.msra.mxu0 0.0
    %2568 = vmatprep.subr.mxu0 0.0
    %2569 = vmatpush1.msra.mxu0 0.0
    %2570 = vmatprep.subr.mxu0 0.0
    %2571 = vmatpush1.msra.mxu0 0.0
    %2572 = vmatprep.subr.mxu0 0.0
    %2573 = vmatpush1.msra.mxu0 0.0
    %2574 = vmatprep.subr.mxu0 %v2550
    %2575 = vmatpush1.msra.mxu0 %v2549
    %2576 = vmatprep.subr.mxu0 %v2548
    %2577 = vmatpush1.msra.mxu0 %v2547
    %2578 = vmatprep.subr.mxu0 %v2546
    %2579 = vmatpush1.msra.mxu0 %v2545
    %2580 = vmatprep.subr.mxu0 %v2544
    %2581 = vmatpush1.msra.mxu0 %v2543
    %2582 = vmatprep.subr.mxu0 %v2542
    %2583 = vmatpush1.msra.mxu0 %v2541
    %2584 = vmatprep.subr.mxu0 %v2540
    %2585 = vmatpush1.msra.mxu0 %v2539
    %2586 = vmatprep.subr.mxu0 %v2538
    %2587 = vmatpush1.msra.mxu0 %v2537
    %2588 = vmatprep.subr.mxu0 %v2536
    %2589 = vmatpush1.msra.mxu0 %v2535
    %2590 = vmatprep.subr.mxu0 %v2534
    %2591 = vmatpush1.msra.mxu0 %v2533
    %2592 = vmatprep.subr.mxu0 %v2532
    %2593 = vmatpush1.msra.mxu0 %v2531
    %2594 = vmatprep.subr.mxu0 %v2530
    %2595 = vmatpush1.msra.mxu0 %v2529
    %2596 = vmatprep.subr.mxu0 %v2528
    %2597 = vmatpush1.msra.mxu0 %v2527
    %2598 = vmatprep.subr.mxu0 0.0
    %2599 = vmatpush2.msra.mxu0 0.0
    %2600 = vmatprep.subr.mxu0 0.0
    %2601 = vmatpush2.msra.mxu0 0.0
    %2602 = vmatprep.subr.mxu0 0.0
    %2603 = vmatpush2.msra.mxu0 0.0
    %2604 = vmatprep.subr.mxu0 0.0
    %2605 = vmatpush2.msra.mxu0 0.0
    %2606 = vmatprep.subr.mxu0 0.0
    %2607 = vmatpush2.msra.mxu0 0.0
    %2608 = vmatprep.subr.mxu0 0.0
    %2609 = vmatpush2.msra.mxu0 0.0
    %2610 = vmatprep.subr.mxu0 0.0
    %2611 = vmatpush2.msra.mxu0 0.0
    %2612 = vmatprep.subr.mxu0 0.0
    %2613 = vmatpush2.msra.mxu0 0.0
    %2614 = vmatprep.subr.mxu0 0.0
    %2615 = vmatpush2.msra.mxu0 0.0
    %2616 = vmatprep.subr.mxu0 0.0
    %2617 = vmatpush2.msra.mxu0 0.0
    %2618 = vmatprep.subr.mxu0 0.0
    %2619 = vmatpush2.msra.mxu0 0.0
    %2620 = vmatprep.subr.mxu0 0.0
    %2621 = vmatpush2.msra.mxu0 0.0
    %2622 = vmatprep.subr.mxu0 0.0
    %2623 = vmatpush2.msra.mxu0 0.0
    %2624 = vmatprep.subr.mxu0 0.0
    %2625 = vmatpush2.msra.mxu0 0.0
    %2626 = vmatprep.subr.mxu0 0.0
    %2627 = vmatpush2.msra.mxu0 0.0
    %2628 = vmatprep.subr.mxu0 0.0
    %2629 = vmatpush2.msra.mxu0 0.0
    %2630 = vmatprep.mubr.f32.mxu0 0.0
    %2631 = vmatmul.mubr.f32.gmra.mxu0 %v2564
    %v2632 = vpop.f32.mrf.mxu0
    %v2633 = vadd.f32 %v2556, %v2632
    %v2634 = vpop.f32.mrf.mxu0
    %v2635 = vadd.f32 %v2560, %v2634
    %2636 = vdwg.mxu0
    %v2637 = vsel %vm44, %v2633, %v2635
    %v2638 = vtanh.pop %v2637
    %v2639 = vxor.u32 %v2637, 2147483648
    %v2640 = vmul.f32 %v2639, 1.442695
    %v2641 = vpow.pop %v2640
    %v2642 = vadd.f32 %v2641, 1.0
    %v2643 = vrcp.pop %v2642
    %v2644 = vmul.f32 1.0, %v2643
    %v2645 = vsel %vm41, %v2638, %v2644
    %v2646 = vld [vmem:[#allocation5] sm:$0xf]
    %2648 = vrot.lane.b32.xlu0 %v2646, 32
    %v2649 = vpop.permute.xlu0 %2648
    %v2651 = vmul.f32 %v2645, %v2649
    %2653 = vrot.lane.b32.xlu0 %v2645, 64
    %v2654 = vpop.permute.xlu0 %2653
    %v2656 = vmul.f32 %v2645, %v2654
    %2658 = vrot.lane.b32.xlu0 %v2656, 32
    %v2659 = vpop.permute.xlu0 %2658
    %v2661 = vadd.f32 %v2651, %v2659
    %v2662 = vtanh.pop %v2661
    %2664 = vrot.lane.b32.xlu0 %v2662, 64
    %v2665 = vpop.permute.xlu0 %2664
    %v2667 = vmul.f32 %v2645, %v2665
    %2669 = vrot.lane.b32.xlu0 %v2667, 32
    %v2670 = vpop.permute.xlu0 %2669
    %2672 = vst.msk [vmem:[#allocation4] sm:$0xf] %vm204, %v2670
    %2674 = vrot.lane.b32.xlu0 %v2661, 96
    %v2675 = vpop.permute.xlu0 %2674
    %2677 = vst.msk [vmem:[#allocation5] sm:$0xf] %vm204, %v2675
    %2678 = vst.msk [vmem:[%s1506] sm:$0x3] %vm46, %v2670
    %2679 = vrot.lane.b32.xlu0 %v2667, 64
    %v2680 = vpop.permute.xlu0 %2679
    %2682 = vst.msk [vmem:[#allocation3 - $0x2] sm:$0xc] %vm216, %v2680
    %v2683 = vld [vmem:[#allocation4] sm:$0x3]
    %s2684 = scalar_lea.vmem [#allocation7], 4
    %2685 = vst.msk [vmem:[%s2684] sm:$0x3] %vm46, %v2683
    %v2686 = vld [vmem:[#allocation4 + $0x2] sm:$0x3]
    %s2687 = scalar_lea.vmem [#allocation7], 6
    %2688 = vst.msk [vmem:[%s2687] sm:$0x3] %vm46, %v2686
    %v2689 = vld [vmem:[#allocation5] sm:$0x3]
    %s2690 = scalar_lea.vmem [#allocation9], 4
    %2691 = vst.msk [vmem:[%s2690] sm:$0x3] %vm46, %v2689
    %v2692 = vld [vmem:[#allocation5 + $0x2] sm:$0x3]
    %s2693 = scalar_lea.vmem [#allocation9], 6
    %2694 = vst.msk [vmem:[%s2693] sm:$0x3] %vm46, %v2692
    %v2695 = vld [vmem:[#allocation3] sm:$0x3]
    %v2696 = vld [vmem:[%s7] sm:$0xff]
    %v2697 = vld [vmem:[%s7 + $0x8] sm:$0xff]
    %v2698 = vld [vmem:[%s7 + $0x10] sm:$0xff]
    %v2699 = vld [vmem:[%s7 + $0x18] sm:$0xff]
    %v2700 = vld [vmem:[%s7 + $0x20] sm:$0xff]
    %v2701 = vld [vmem:[%s7 + $0x28] sm:$0xff]
    %v2702 = vld [vmem:[%s7 + $0x30] sm:$0xff]
    %v2703 = vld [vmem:[%s7 + $0x38] sm:$0xff]
    %v2704 = vld [vmem:[%s8] sm:$0x1]
    %v2706 = vlaneseq
    %v2707 = vshrl.u32 %v2706, 7
    %v2708 = vsub.s32 0, %v2707
    %v2709 = vrot.slane %v2704, %v2708
    %vm2711 = vcmask 523264
    %v2713 = vsel %vm2711, %v2695, 0
    %2715 = vmatprep.subr.mxu0 0.0
    %2716 = vmatpush1.msra.mxu0 0.0
    %2717 = vmatprep.subr.mxu0 0.0
    %2718 = vmatpush1.msra.mxu0 0.0
    %2719 = vmatprep.subr.mxu0 0.0
    %2720 = vmatpush1.msra.mxu0 0.0
    %2721 = vmatprep.subr.mxu0 0.0
    %2722 = vmatpush1.msra.mxu0 0.0
    %2723 = vmatprep.subr.mxu0 0.0
    %2724 = vmatpush1.msra.mxu0 0.0
    %2725 = vmatprep.subr.mxu0 0.0
    %2726 = vmatpush1.msra.mxu0 0.0
    %2727 = vmatprep.subr.mxu0 0.0
    %2728 = vmatpush1.msra.mxu0 0.0
    %2729 = vmatprep.subr.mxu0 0.0
    %2730 = vmatpush1.msra.mxu0 0.0
    %2731 = vmatprep.subr.mxu0 0.0
    %2732 = vmatpush1.msra.mxu0 %v2703
    %2733 = vmatprep.subr.mxu0 0.0
    %2734 = vmatpush1.msra.mxu0 %v2702
    %2735 = vmatprep.subr.mxu0 0.0
    %2736 = vmatpush1.msra.mxu0 %v2701
    %2737 = vmatprep.subr.mxu0 0.0
    %2738 = vmatpush1.msra.mxu0 %v2700
    %2739 = vmatprep.subr.mxu0 0.0
    %2740 = vmatpush1.msra.mxu0 %v2699
    %2741 = vmatprep.subr.mxu0 0.0
    %2742 = vmatpush1.msra.mxu0 %v2698
    %2743 = vmatprep.subr.mxu0 0.0
    %2744 = vmatpush1.msra.mxu0 %v2697
    %2745 = vmatprep.subr.mxu0 0.0
    %2746 = vmatpush1.msra.mxu0 %v2696
    %2747 = vmatprep.subr.mxu0 0.0
    %2748 = vmatpush2.msra.mxu0 0.0
    %2749 = vmatprep.subr.mxu0 0.0
    %2750 = vmatpush2.msra.mxu0 0.0
    %2751 = vmatprep.subr.mxu0 0.0
    %2752 = vmatpush2.msra.mxu0 0.0
    %2753 = vmatprep.subr.mxu0 0.0
    %2754 = vmatpush2.msra.mxu0 0.0
    %2755 = vmatprep.subr.mxu0 0.0
    %2756 = vmatpush2.msra.mxu0 0.0
    %2757 = vmatprep.subr.mxu0 0.0
    %2758 = vmatpush2.msra.mxu0 0.0
    %2759 = vmatprep.subr.mxu0 0.0
    %2760 = vmatpush2.msra.mxu0 0.0
    %2761 = vmatprep.subr.mxu0 0.0
    %2762 = vmatpush2.msra.mxu0 0.0
    %2763 = vmatprep.subr.mxu0 0.0
    %2764 = vmatpush2.msra.mxu0 0.0
    %2765 = vmatprep.subr.mxu0 0.0
    %2766 = vmatpush2.msra.mxu0 0.0
    %2767 = vmatprep.subr.mxu0 0.0
    %2768 = vmatpush2.msra.mxu0 0.0
    %2769 = vmatprep.subr.mxu0 0.0
    %2770 = vmatpush2.msra.mxu0 0.0
    %2771 = vmatprep.subr.mxu0 0.0
    %2772 = vmatpush2.msra.mxu0 0.0
    %2773 = vmatprep.subr.mxu0 0.0
    %2774 = vmatpush2.msra.mxu0 0.0
    %2775 = vmatprep.subr.mxu0 0.0
    %2776 = vmatpush2.msra.mxu0 0.0
    %2777 = vmatprep.subr.mxu0 0.0
    %2778 = vmatpush2.msra.mxu0 0.0
    %2779 = vmatprep.mubr.f32.mxu0 0.0
    %2780 = vmatmul.mubr.f32.gmra.mxu0 %v2713
    %v2781 = vpop.f32.mrf.mxu0
    %v2782 = vadd.f32 %v2709, %v2781
    %v2783 = vpop.f32.mrf.mxu0
    %2784 = vdwg.mxu0
    %2785 = vst [vmem:[%s9] sm:$0x3] %v2782
    %v2786 = vld [vmem:[%s1670] sm:$0x3]
    %v2787 = vld [vmem:[%s7] sm:$0xff]
    %v2788 = vld [vmem:[%s7 + $0x8] sm:$0xff]
    %v2789 = vld [vmem:[%s7 + $0x10] sm:$0xff]
    %v2790 = vld [vmem:[%s7 + $0x18] sm:$0xff]
    %v2791 = vld [vmem:[%s7 + $0x20] sm:$0xff]
    %v2792 = vld [vmem:[%s7 + $0x28] sm:$0xff]
    %v2793 = vld [vmem:[%s7 + $0x30] sm:$0xff]
    %v2794 = vld [vmem:[%s7 + $0x38] sm:$0xff]
    %v2795 = vld [vmem:[%s8] sm:$0x1]
    %v2797 = vlaneseq
    %v2798 = vshrl.u32 %v2797, 7
    %v2799 = vsub.s32 0, %v2798
    %v2800 = vrot.slane %v2795, %v2799
    %v2803 = vsel %vm2711, %v2786, 0
    %2805 = vmatprep.subr.mxu0 0.0
    %2806 = vmatpush1.msra.mxu0 0.0
    %2807 = vmatprep.subr.mxu0 0.0
    %2808 = vmatpush1.msra.mxu0 0.0
    %2809 = vmatprep.subr.mxu0 0.0
    %2810 = vmatpush1.msra.mxu0 0.0
    %2811 = vmatprep.subr.mxu0 0.0
    %2812 = vmatpush1.msra.mxu0 0.0
    %2813 = vmatprep.subr.mxu0 0.0
    %2814 = vmatpush1.msra.mxu0 0.0
    %2815 = vmatprep.subr.mxu0 0.0
    %2816 = vmatpush1.msra.mxu0 0.0
    %2817 = vmatprep.subr.mxu0 0.0
    %2818 = vmatpush1.msra.mxu0 0.0
    %2819 = vmatprep.subr.mxu0 0.0
    %2820 = vmatpush1.msra.mxu0 0.0
    %2821 = vmatprep.subr.mxu0 0.0
    %2822 = vmatpush1.msra.mxu0 %v2794
    %2823 = vmatprep.subr.mxu0 0.0
    %2824 = vmatpush1.msra.mxu0 %v2793
    %2825 = vmatprep.subr.mxu0 0.0
    %2826 = vmatpush1.msra.mxu0 %v2792
    %2827 = vmatprep.subr.mxu0 0.0
    %2828 = vmatpush1.msra.mxu0 %v2791
    %2829 = vmatprep.subr.mxu0 0.0
    %2830 = vmatpush1.msra.mxu0 %v2790
    %2831 = vmatprep.subr.mxu0 0.0
    %2832 = vmatpush1.msra.mxu0 %v2789
    %2833 = vmatprep.subr.mxu0 0.0
    %2834 = vmatpush1.msra.mxu0 %v2788
    %2835 = vmatprep.subr.mxu0 0.0
    %2836 = vmatpush1.msra.mxu0 %v2787
    %2837 = vmatprep.subr.mxu0 0.0
    %2838 = vmatpush2.msra.mxu0 0.0
    %2839 = vmatprep.subr.mxu0 0.0
    %2840 = vmatpush2.msra.mxu0 0.0
    %2841 = vmatprep.subr.mxu0 0.0
    %2842 = vmatpush2.msra.mxu0 0.0
    %2843 = vmatprep.subr.mxu0 0.0
    %2844 = vmatpush2.msra.mxu0 0.0
    %2845 = vmatprep.subr.mxu0 0.0
    %2846 = vmatpush2.msra.mxu0 0.0
    %2847 = vmatprep.subr.mxu0 0.0
    %2848 = vmatpush2.msra.mxu0 0.0
    %2849 = vmatprep.subr.mxu0 0.0
    %2850 = vmatpush2.msra.mxu0 0.0
    %2851 = vmatprep.subr.mxu0 0.0
    %2852 = vmatpush2.msra.mxu0 0.0
    %2853 = vmatprep.subr.mxu0 0.0
    %2854 = vmatpush2.msra.mxu0 0.0
    %2855 = vmatprep.subr.mxu0 0.0
    %2856 = vmatpush2.msra.mxu0 0.0
    %2857 = vmatprep.subr.mxu0 0.0
    %2858 = vmatpush2.msra.mxu0 0.0
    %2859 = vmatprep.subr.mxu0 0.0
    %2860 = vmatpush2.msra.mxu0 0.0
    %2861 = vmatprep.subr.mxu0 0.0
    %2862 = vmatpush2.msra.mxu0 0.0
    %2863 = vmatprep.subr.mxu0 0.0
    %2864 = vmatpush2.msra.mxu0 0.0
    %2865 = vmatprep.subr.mxu0 0.0
    %2866 = vmatpush2.msra.mxu0 0.0
    %2867 = vmatprep.subr.mxu0 0.0
    %2868 = vmatpush2.msra.mxu0 0.0
    %2869 = vmatprep.mubr.f32.mxu0 0.0
    %2870 = vmatmul.mubr.f32.gmra.mxu0 %v2803
    %v2871 = vpop.f32.mrf.mxu0
    %v2872 = vadd.f32 %v2800, %v2871
    %v2873 = vpop.f32.mrf.mxu0
    %2874 = vdwg.mxu0
    %s2875 = scalar_lea.vmem %s9, 2
    %2876 = vst [vmem:[%s2875] sm:$0x3] %v2872
    %v2877 = vld [vmem:[%s1839] sm:$0x3]
    %v2878 = vld [vmem:[%s7] sm:$0xff]
    %v2879 = vld [vmem:[%s7 + $0x8] sm:$0xff]
    %v2880 = vld [vmem:[%s7 + $0x10] sm:$0xff]
    %v2881 = vld [vmem:[%s7 + $0x18] sm:$0xff]
    %v2882 = vld [vmem:[%s7 + $0x20] sm:$0xff]
    %v2883 = vld [vmem:[%s7 + $0x28] sm:$0xff]
    %v2884 = vld [vmem:[%s7 + $0x30] sm:$0xff]
    %v2885 = vld [vmem:[%s7 + $0x38] sm:$0xff]
    %v2886 = vld [vmem:[%s8] sm:$0x1]
    %v2888 = vlaneseq
    %v2889 = vshrl.u32 %v2888, 7
    %v2890 = vsub.s32 0, %v2889
    %v2891 = vrot.slane %v2886, %v2890
    %v2894 = vsel %vm2711, %v2877, 0
    %2896 = vmatprep.subr.mxu0 0.0
    %2897 = vmatpush1.msra.mxu0 0.0
    %2898 = vmatprep.subr.mxu0 0.0
    %2899 = vmatpush1.msra.mxu0 0.0
    %2900 = vmatprep.subr.mxu0 0.0
    %2901 = vmatpush1.msra.mxu0 0.0
    %2902 = vmatprep.subr.mxu0 0.0
    %2903 = vmatpush1.msra.mxu0 0.0
    %2904 = vmatprep.subr.mxu0 0.0
    %2905 = vmatpush1.msra.mxu0 0.0
    %2906 = vmatprep.subr.mxu0 0.0
    %2907 = vmatpush1.msra.mxu0 0.0
    %2908 = vmatprep.subr.mxu0 0.0
    %2909 = vmatpush1.msra.mxu0 0.0
    %2910 = vmatprep.subr.mxu0 0.0
    %2911 = vmatpush1.msra.mxu0 0.0
    %2912 = vmatprep.subr.mxu0 0.0
    %2913 = vmatpush1.msra.mxu0 %v2885
    %2914 = vmatprep.subr.mxu0 0.0
    %2915 = vmatpush1.msra.mxu0 %v2884
    %2916 = vmatprep.subr.mxu0 0.0
    %2917 = vmatpush1.msra.mxu0 %v2883
    %2918 = vmatprep.subr.mxu0 0.0
    %2919 = vmatpush1.msra.mxu0 %v2882
    %2920 = vmatprep.subr.mxu0 0.0
    %2921 = vmatpush1.msra.mxu0 %v2881
    %2922 = vmatprep.subr.mxu0 0.0
    %2923 = vmatpush1.msra.mxu0 %v2880
    %2924 = vmatprep.subr.mxu0 0.0
    %2925 = vmatpush1.msra.mxu0 %v2879
    %2926 = vmatprep.subr.mxu0 0.0
    %2927 = vmatpush1.msra.mxu0 %v2878
    %2928 = vmatprep.subr.mxu0 0.0
    %2929 = vmatpush2.msra.mxu0 0.0
    %2930 = vmatprep.subr.mxu0 0.0
    %2931 = vmatpush2.msra.mxu0 0.0
    %2932 = vmatprep.subr.mxu0 0.0
    %2933 = vmatpush2.msra.mxu0 0.0
    %2934 = vmatprep.subr.mxu0 0.0
    %2935 = vmatpush2.msra.mxu0 0.0
    %2936 = vmatprep.subr.mxu0 0.0
    %2937 = vmatpush2.msra.mxu0 0.0
    %2938 = vmatprep.subr.mxu0 0.0
    %2939 = vmatpush2.msra.mxu0 0.0
    %2940 = vmatprep.subr.mxu0 0.0
    %2941 = vmatpush2.msra.mxu0 0.0
    %2942 = vmatprep.subr.mxu0 0.0
    %2943 = vmatpush2.msra.mxu0 0.0
    %2944 = vmatprep.subr.mxu0 0.0
    %2945 = vmatpush2.msra.mxu0 0.0
    %2946 = vmatprep.subr.mxu0 0.0
    %2947 = vmatpush2.msra.mxu0 0.0
    %2948 = vmatprep.subr.mxu0 0.0
    %2949 = vmatpush2.msra.mxu0 0.0
    %2950 = vmatprep.subr.mxu0 0.0
    %2951 = vmatpush2.msra.mxu0 0.0
    %2952 = vmatprep.subr.mxu0 0.0
    %2953 = vmatpush2.msra.mxu0 0.0
    %2954 = vmatprep.subr.mxu0 0.0
    %2955 = vmatpush2.msra.mxu0 0.0
    %2956 = vmatprep.subr.mxu0 0.0
    %2957 = vmatpush2.msra.mxu0 0.0
    %2958 = vmatprep.subr.mxu0 0.0
    %2959 = vmatpush2.msra.mxu0 0.0
    %2960 = vmatprep.mubr.f32.mxu0 0.0
    %2961 = vmatmul.mubr.f32.gmra.mxu0 %v2894
    %v2962 = vpop.f32.mrf.mxu0
    %v2963 = vadd.f32 %v2891, %v2962
    %v2964 = vpop.f32.mrf.mxu0
    %2965 = vdwg.mxu0
    %s2966 = scalar_lea.vmem %s9, 4
    %2967 = vst [vmem:[%s2966] sm:$0x3] %v2963
    %v2968 = vld [vmem:[%s2008] sm:$0x3]
    %v2969 = vld [vmem:[%s7] sm:$0xff]
    %v2970 = vld [vmem:[%s7 + $0x8] sm:$0xff]
    %v2971 = vld [vmem:[%s7 + $0x10] sm:$0xff]
    %v2972 = vld [vmem:[%s7 + $0x18] sm:$0xff]
    %v2973 = vld [vmem:[%s7 + $0x20] sm:$0xff]
    %v2974 = vld [vmem:[%s7 + $0x28] sm:$0xff]
    %v2975 = vld [vmem:[%s7 + $0x30] sm:$0xff]
    %v2976 = vld [vmem:[%s7 + $0x38] sm:$0xff]
    %v2977 = vld [vmem:[%s8] sm:$0x1]
    %v2979 = vlaneseq
    %v2980 = vshrl.u32 %v2979, 7
    %v2981 = vsub.s32 0, %v2980
    %v2982 = vrot.slane %v2977, %v2981
    %v2985 = vsel %vm2711, %v2968, 0
    %2987 = vmatprep.subr.mxu0 0.0
    %2988 = vmatpush1.msra.mxu0 0.0
    %2989 = vmatprep.subr.mxu0 0.0
    %2990 = vmatpush1.msra.mxu0 0.0
    %2991 = vmatprep.subr.mxu0 0.0
    %2992 = vmatpush1.msra.mxu0 0.0
    %2993 = vmatprep.subr.mxu0 0.0
    %2994 = vmatpush1.msra.mxu0 0.0
    %2995 = vmatprep.subr.mxu0 0.0
    %2996 = vmatpush1.msra.mxu0 0.0
    %2997 = vmatprep.subr.mxu0 0.0
    %2998 = vmatpush1.msra.mxu0 0.0
    %2999 = vmatprep.subr.mxu0 0.0
    %3000 = vmatpush1.msra.mxu0 0.0
    %3001 = vmatprep.subr.mxu0 0.0
    %3002 = vmatpush1.msra.mxu0 0.0
    %3003 = vmatprep.subr.mxu0 0.0
    %3004 = vmatpush1.msra.mxu0 %v2976
    %3005 = vmatprep.subr.mxu0 0.0
    %3006 = vmatpush1.msra.mxu0 %v2975
    %3007 = vmatprep.subr.mxu0 0.0
    %3008 = vmatpush1.msra.mxu0 %v2974
    %3009 = vmatprep.subr.mxu0 0.0
    %3010 = vmatpush1.msra.mxu0 %v2973
    %3011 = vmatprep.subr.mxu0 0.0
    %3012 = vmatpush1.msra.mxu0 %v2972
    %3013 = vmatprep.subr.mxu0 0.0
    %3014 = vmatpush1.msra.mxu0 %v2971
    %3015 = vmatprep.subr.mxu0 0.0
    %3016 = vmatpush1.msra.mxu0 %v2970
    %3017 = vmatprep.subr.mxu0 0.0
    %3018 = vmatpush1.msra.mxu0 %v2969
    %3019 = vmatprep.subr.mxu0 0.0
    %3020 = vmatpush2.msra.mxu0 0.0
    %3021 = vmatprep.subr.mxu0 0.0
    %3022 = vmatpush2.msra.mxu0 0.0
    %3023 = vmatprep.subr.mxu0 0.0
    %3024 = vmatpush2.msra.mxu0 0.0
    %3025 = vmatprep.subr.mxu0 0.0
    %3026 = vmatpush2.msra.mxu0 0.0
    %3027 = vmatprep.subr.mxu0 0.0
    %3028 = vmatpush2.msra.mxu0 0.0
    %3029 = vmatprep.subr.mxu0 0.0
    %3030 = vmatpush2.msra.mxu0 0.0
    %3031 = vmatprep.subr.mxu0 0.0
    %3032 = vmatpush2.msra.mxu0 0.0
    %3033 = vmatprep.subr.mxu0 0.0
    %3034 = vmatpush2.msra.mxu0 0.0
    %3035 = vmatprep.subr.mxu0 0.0
    %3036 = vmatpush2.msra.mxu0 0.0
    %3037 = vmatprep.subr.mxu0 0.0
    %3038 = vmatpush2.msra.mxu0 0.0
    %3039 = vmatprep.subr.mxu0 0.0
    %3040 = vmatpush2.msra.mxu0 0.0
    %3041 = vmatprep.subr.mxu0 0.0
    %3042 = vmatpush2.msra.mxu0 0.0
    %3043 = vmatprep.subr.mxu0 0.0
    %3044 = vmatpush2.msra.mxu0 0.0
    %3045 = vmatprep.subr.mxu0 0.0
    %3046 = vmatpush2.msra.mxu0 0.0
    %3047 = vmatprep.subr.mxu0 0.0
    %3048 = vmatpush2.msra.mxu0 0.0
    %3049 = vmatprep.subr.mxu0 0.0
    %3050 = vmatpush2.msra.mxu0 0.0
    %3051 = vmatprep.mubr.f32.mxu0 0.0
    %3052 = vmatmul.mubr.f32.gmra.mxu0 %v2985
    %v3053 = vpop.f32.mrf.mxu0
    %v3054 = vadd.f32 %v2982, %v3053
    %v3055 = vpop.f32.mrf.mxu0
    %3056 = vdwg.mxu0
    %s3057 = scalar_lea.vmem %s9, 6
    %3058 = vst [vmem:[%s3057] sm:$0x3] %v3054
    %v3059 = vld [vmem:[%s2013] sm:$0x3]
    %v3060 = vld [vmem:[%s7] sm:$0xff]
    %v3061 = vld [vmem:[%s7 + $0x8] sm:$0xff]
    %v3062 = vld [vmem:[%s7 + $0x10] sm:$0xff]
    %v3063 = vld [vmem:[%s7 + $0x18] sm:$0xff]
    %v3064 = vld [vmem:[%s7 + $0x20] sm:$0xff]
    %v3065 = vld [vmem:[%s7 + $0x28] sm:$0xff]
    %v3066 = vld [vmem:[%s7 + $0x30] sm:$0xff]
    %v3067 = vld [vmem:[%s7 + $0x38] sm:$0xff]
    %v3068 = vld [vmem:[%s8] sm:$0x1]
    %v3070 = vlaneseq
    %v3071 = vshrl.u32 %v3070, 7
    %v3072 = vsub.s32 0, %v3071
    %v3073 = vrot.slane %v3068, %v3072
    %v3076 = vsel %vm2711, %v3059, 0
    %3078 = vmatprep.subr.mxu0 0.0
    %3079 = vmatpush1.msra.mxu0 0.0
    %3080 = vmatprep.subr.mxu0 0.0
    %3081 = vmatpush1.msra.mxu0 0.0
    %3082 = vmatprep.subr.mxu0 0.0
    %3083 = vmatpush1.msra.mxu0 0.0
    %3084 = vmatprep.subr.mxu0 0.0
    %3085 = vmatpush1.msra.mxu0 0.0
    %3086 = vmatprep.subr.mxu0 0.0
    %3087 = vmatpush1.msra.mxu0 0.0
    %3088 = vmatprep.subr.mxu0 0.0
    %3089 = vmatpush1.msra.mxu0 0.0
    %3090 = vmatprep.subr.mxu0 0.0
    %3091 = vmatpush1.msra.mxu0 0.0
    %3092 = vmatprep.subr.mxu0 0.0
    %3093 = vmatpush1.msra.mxu0 0.0
    %3094 = vmatprep.subr.mxu0 0.0
    %3095 = vmatpush1.msra.mxu0 %v3067
    %3096 = vmatprep.subr.mxu0 0.0
    %3097 = vmatpush1.msra.mxu0 %v3066
    %3098 = vmatprep.subr.mxu0 0.0
    %3099 = vmatpush1.msra.mxu0 %v3065
    %3100 = vmatprep.subr.mxu0 0.0
    %3101 = vmatpush1.msra.mxu0 %v3064
    %3102 = vmatprep.subr.mxu0 0.0
    %3103 = vmatpush1.msra.mxu0 %v3063
    %3104 = vmatprep.subr.mxu0 0.0
    %3105 = vmatpush1.msra.mxu0 %v3062
    %3106 = vmatprep.subr.mxu0 0.0
    %3107 = vmatpush1.msra.mxu0 %v3061
    %3108 = vmatprep.subr.mxu0 0.0
    %3109 = vmatpush1.msra.mxu0 %v3060
    %3110 = vmatprep.subr.mxu0 0.0
    %3111 = vmatpush2.msra.mxu0 0.0
    %3112 = vmatprep.subr.mxu0 0.0
    %3113 = vmatpush2.msra.mxu0 0.0
    %3114 = vmatprep.subr.mxu0 0.0
    %3115 = vmatpush2.msra.mxu0 0.0
    %3116 = vmatprep.subr.mxu0 0.0
    %3117 = vmatpush2.msra.mxu0 0.0
    %3118 = vmatprep.subr.mxu0 0.0
    %3119 = vmatpush2.msra.mxu0 0.0
    %3120 = vmatprep.subr.mxu0 0.0
    %3121 = vmatpush2.msra.mxu0 0.0
    %3122 = vmatprep.subr.mxu0 0.0
    %3123 = vmatpush2.msra.mxu0 0.0
    %3124 = vmatprep.subr.mxu0 0.0
    %3125 = vmatpush2.msra.mxu0 0.0
    %3126 = vmatprep.subr.mxu0 0.0
    %3127 = vmatpush2.msra.mxu0 0.0
    %3128 = vmatprep.subr.mxu0 0.0
    %3129 = vmatpush2.msra.mxu0 0.0
    %3130 = vmatprep.subr.mxu0 0.0
    %3131 = vmatpush2.msra.mxu0 0.0
    %3132 = vmatprep.subr.mxu0 0.0
    %3133 = vmatpush2.msra.mxu0 0.0
    %3134 = vmatprep.subr.mxu0 0.0
    %3135 = vmatpush2.msra.mxu0 0.0
    %3136 = vmatprep.subr.mxu0 0.0
    %3137 = vmatpush2.msra.mxu0 0.0
    %3138 = vmatprep.subr.mxu0 0.0
    %3139 = vmatpush2.msra.mxu0 0.0
    %3140 = vmatprep.subr.mxu0 0.0
    %3141 = vmatpush2.msra.mxu0 0.0
    %3142 = vmatprep.mubr.f32.mxu0 0.0
    %3143 = vmatmul.mubr.f32.gmra.mxu0 %v3076
    %v3144 = vpop.f32.mrf.mxu0
    %v3145 = vadd.f32 %v3073, %v3144
    %v3146 = vpop.f32.mrf.mxu0
    %3147 = vdwg.mxu0
    %s3148 = scalar_lea.vmem %s9, 8
    %3149 = vst [vmem:[%s3148] sm:$0x3] %v3145
    %v3150 = vld [vmem:[%s1844] sm:$0x3]
    %v3151 = vld [vmem:[%s7] sm:$0xff]
    %v3152 = vld [vmem:[%s7 + $0x8] sm:$0xff]
    %v3153 = vld [vmem:[%s7 + $0x10] sm:$0xff]
    %v3154 = vld [vmem:[%s7 + $0x18] sm:$0xff]
    %v3155 = vld [vmem:[%s7 + $0x20] sm:$0xff]
    %v3156 = vld [vmem:[%s7 + $0x28] sm:$0xff]
    %v3157 = vld [vmem:[%s7 + $0x30] sm:$0xff]
    %v3158 = vld [vmem:[%s7 + $0x38] sm:$0xff]
    %v3159 = vld [vmem:[%s8] sm:$0x1]
    %v3161 = vlaneseq
    %v3162 = vshrl.u32 %v3161, 7
    %v3163 = vsub.s32 0, %v3162
    %v3164 = vrot.slane %v3159, %v3163
    %v3167 = vsel %vm2711, %v3150, 0
    %3169 = vmatprep.subr.mxu0 0.0
    %3170 = vmatpush1.msra.mxu0 0.0
    %3171 = vmatprep.subr.mxu0 0.0
    %3172 = vmatpush1.msra.mxu0 0.0
    %3173 = vmatprep.subr.mxu0 0.0
    %3174 = vmatpush1.msra.mxu0 0.0
    %3175 = vmatprep.subr.mxu0 0.0
    %3176 = vmatpush1.msra.mxu0 0.0
    %3177 = vmatprep.subr.mxu0 0.0
    %3178 = vmatpush1.msra.mxu0 0.0
    %3179 = vmatprep.subr.mxu0 0.0
    %3180 = vmatpush1.msra.mxu0 0.0
    %3181 = vmatprep.subr.mxu0 0.0
    %3182 = vmatpush1.msra.mxu0 0.0
    %3183 = vmatprep.subr.mxu0 0.0
    %3184 = vmatpush1.msra.mxu0 0.0
    %3185 = vmatprep.subr.mxu0 0.0
    %3186 = vmatpush1.msra.mxu0 %v3158
    %3187 = vmatprep.subr.mxu0 0.0
    %3188 = vmatpush1.msra.mxu0 %v3157
    %3189 = vmatprep.subr.mxu0 0.0
    %3190 = vmatpush1.msra.mxu0 %v3156
    %3191 = vmatprep.subr.mxu0 0.0
    %3192 = vmatpush1.msra.mxu0 %v3155
    %3193 = vmatprep.subr.mxu0 0.0
    %3194 = vmatpush1.msra.mxu0 %v3154
    %3195 = vmatprep.subr.mxu0 0.0
    %3196 = vmatpush1.msra.mxu0 %v3153
    %3197 = vmatprep.subr.mxu0 0.0
    %3198 = vmatpush1.msra.mxu0 %v3152
    %3199 = vmatprep.subr.mxu0 0.0
    %3200 = vmatpush1.msra.mxu0 %v3151
    %3201 = vmatprep.subr.mxu0 0.0
    %3202 = vmatpush2.msra.mxu0 0.0
    %3203 = vmatprep.subr.mxu0 0.0
    %3204 = vmatpush2.msra.mxu0 0.0
    %3205 = vmatprep.subr.mxu0 0.0
    %3206 = vmatpush2.msra.mxu0 0.0
    %3207 = vmatprep.subr.mxu0 0.0
    %3208 = vmatpush2.msra.mxu0 0.0
    %3209 = vmatprep.subr.mxu0 0.0
    %3210 = vmatpush2.msra.mxu0 0.0
    %3211 = vmatprep.subr.mxu0 0.0
    %3212 = vmatpush2.msra.mxu0 0.0
    %3213 = vmatprep.subr.mxu0 0.0
    %3214 = vmatpush2.msra.mxu0 0.0
    %3215 = vmatprep.subr.mxu0 0.0
    %3216 = vmatpush2.msra.mxu0 0.0
    %3217 = vmatprep.subr.mxu0 0.0
    %3218 = vmatpush2.msra.mxu0 0.0
    %3219 = vmatprep.subr.mxu0 0.0
    %3220 = vmatpush2.msra.mxu0 0.0
    %3221 = vmatprep.subr.mxu0 0.0
    %3222 = vmatpush2.msra.mxu0 0.0
    %3223 = vmatprep.subr.mxu0 0.0
    %3224 = vmatpush2.msra.mxu0 0.0
    %3225 = vmatprep.subr.mxu0 0.0
    %3226 = vmatpush2.msra.mxu0 0.0
    %3227 = vmatprep.subr.mxu0 0.0
    %3228 = vmatpush2.msra.mxu0 0.0
    %3229 = vmatprep.subr.mxu0 0.0
    %3230 = vmatpush2.msra.mxu0 0.0
    %3231 = vmatprep.subr.mxu0 0.0
    %3232 = vmatpush2.msra.mxu0 0.0
    %3233 = vmatprep.mubr.f32.mxu0 0.0
    %3234 = vmatmul.mubr.f32.gmra.mxu0 %v3167
    %v3235 = vpop.f32.mrf.mxu0
    %v3236 = vadd.f32 %v3164, %v3235
    %v3237 = vpop.f32.mrf.mxu0
    %3238 = vdwg.mxu0
    %s3239 = scalar_lea.vmem %s9, 10
    %3240 = vst [vmem:[%s3239] sm:$0x3] %v3236
    %v3241 = vld [vmem:[%s1675] sm:$0x3]
    %v3242 = vld [vmem:[%s7] sm:$0xff]
    %v3243 = vld [vmem:[%s7 + $0x8] sm:$0xff]
    %v3244 = vld [vmem:[%s7 + $0x10] sm:$0xff]
    %v3245 = vld [vmem:[%s7 + $0x18] sm:$0xff]
    %v3246 = vld [vmem:[%s7 + $0x20] sm:$0xff]
    %v3247 = vld [vmem:[%s7 + $0x28] sm:$0xff]
    %v3248 = vld [vmem:[%s7 + $0x30] sm:$0xff]
    %v3249 = vld [vmem:[%s7 + $0x38] sm:$0xff]
    %v3250 = vld [vmem:[%s8] sm:$0x1]
    %v3252 = vlaneseq
    %v3253 = vshrl.u32 %v3252, 7
    %v3254 = vsub.s32 0, %v3253
    %v3255 = vrot.slane %v3250, %v3254
    %v3258 = vsel %vm2711, %v3241, 0
    %3260 = vmatprep.subr.mxu0 0.0
    %3261 = vmatpush1.msra.mxu0 0.0
    %3262 = vmatprep.subr.mxu0 0.0
    %3263 = vmatpush1.msra.mxu0 0.0
    %3264 = vmatprep.subr.mxu0 0.0
    %3265 = vmatpush1.msra.mxu0 0.0
    %3266 = vmatprep.subr.mxu0 0.0
    %3267 = vmatpush1.msra.mxu0 0.0
    %3268 = vmatprep.subr.mxu0 0.0
    %3269 = vmatpush1.msra.mxu0 0.0
    %3270 = vmatprep.subr.mxu0 0.0
    %3271 = vmatpush1.msra.mxu0 0.0
    %3272 = vmatprep.subr.mxu0 0.0
    %3273 = vmatpush1.msra.mxu0 0.0
    %3274 = vmatprep.subr.mxu0 0.0
    %3275 = vmatpush1.msra.mxu0 0.0
    %3276 = vmatprep.subr.mxu0 0.0
    %3277 = vmatpush1.msra.mxu0 %v3249
    %3278 = vmatprep.subr.mxu0 0.0
    %3279 = vmatpush1.msra.mxu0 %v3248
    %3280 = vmatprep.subr.mxu0 0.0
    %3281 = vmatpush1.msra.mxu0 %v3247
    %3282 = vmatprep.subr.mxu0 0.0
    %3283 = vmatpush1.msra.mxu0 %v3246
    %3284 = vmatprep.subr.mxu0 0.0
    %3285 = vmatpush1.msra.mxu0 %v3245
    %3286 = vmatprep.subr.mxu0 0.0
    %3287 = vmatpush1.msra.mxu0 %v3244
    %3288 = vmatprep.subr.mxu0 0.0
    %3289 = vmatpush1.msra.mxu0 %v3243
    %3290 = vmatprep.subr.mxu0 0.0
    %3291 = vmatpush1.msra.mxu0 %v3242
    %3292 = vmatprep.subr.mxu0 0.0
    %3293 = vmatpush2.msra.mxu0 0.0
    %3294 = vmatprep.subr.mxu0 0.0
    %3295 = vmatpush2.msra.mxu0 0.0
    %3296 = vmatprep.subr.mxu0 0.0
    %3297 = vmatpush2.msra.mxu0 0.0
    %3298 = vmatprep.subr.mxu0 0.0
    %3299 = vmatpush2.msra.mxu0 0.0
    %3300 = vmatprep.subr.mxu0 0.0
    %3301 = vmatpush2.msra.mxu0 0.0
    %3302 = vmatprep.subr.mxu0 0.0
    %3303 = vmatpush2.msra.mxu0 0.0
    %3304 = vmatprep.subr.mxu0 0.0
    %3305 = vmatpush2.msra.mxu0 0.0
    %3306 = vmatprep.subr.mxu0 0.0
    %3307 = vmatpush2.msra.mxu0 0.0
    %3308 = vmatprep.subr.mxu0 0.0
    %3309 = vmatpush2.msra.mxu0 0.0
    %3310 = vmatprep.subr.mxu0 0.0
    %3311 = vmatpush2.msra.mxu0 0.0
    %3312 = vmatprep.subr.mxu0 0.0
    %3313 = vmatpush2.msra.mxu0 0.0
    %3314 = vmatprep.subr.mxu0 0.0
    %3315 = vmatpush2.msra.mxu0 0.0
    %3316 = vmatprep.subr.mxu0 0.0
    %3317 = vmatpush2.msra.mxu0 0.0
    %3318 = vmatprep.subr.mxu0 0.0
    %3319 = vmatpush2.msra.mxu0 0.0
    %3320 = vmatprep.subr.mxu0 0.0
    %3321 = vmatpush2.msra.mxu0 0.0
    %3322 = vmatprep.subr.mxu0 0.0
    %3323 = vmatpush2.msra.mxu0 0.0
    %3324 = vmatprep.mubr.f32.mxu0 0.0
    %3325 = vmatmul.mubr.f32.gmra.mxu0 %v3258
    %v3326 = vpop.f32.mrf.mxu0
    %v3327 = vadd.f32 %v3255, %v3326
    %v3328 = vpop.f32.mrf.mxu0
    %3329 = vdwg.mxu0
    %s3330 = scalar_lea.vmem %s9, 12
    %3331 = vst [vmem:[%s3330] sm:$0x3] %v3327
    %v3332 = vld [vmem:[%s1506] sm:$0x3]
    %v3333 = vld [vmem:[%s7] sm:$0xff]
    %v3334 = vld [vmem:[%s7 + $0x8] sm:$0xff]
    %v3335 = vld [vmem:[%s7 + $0x10] sm:$0xff]
    %v3336 = vld [vmem:[%s7 + $0x18] sm:$0xff]
    %v3337 = vld [vmem:[%s7 + $0x20] sm:$0xff]
    %v3338 = vld [vmem:[%s7 + $0x28] sm:$0xff]
    %v3339 = vld [vmem:[%s7 + $0x30] sm:$0xff]
    %v3340 = vld [vmem:[%s7 + $0x38] sm:$0xff]
    %v3341 = vld [vmem:[%s8] sm:$0x1]
    %v3343 = vlaneseq
    %v3344 = vshrl.u32 %v3343, 7
    %v3345 = vsub.s32 0, %v3344
    %v3346 = vrot.slane %v3341, %v3345
    %v3349 = vsel %vm2711, %v3332, 0
    %3351 = vmatprep.subr.mxu0 0.0
    %3352 = vmatpush1.msra.mxu0 0.0
    %3353 = vmatprep.subr.mxu0 0.0
    %3354 = vmatpush1.msra.mxu0 0.0
    %3355 = vmatprep.subr.mxu0 0.0
    %3356 = vmatpush1.msra.mxu0 0.0
    %3357 = vmatprep.subr.mxu0 0.0
    %3358 = vmatpush1.msra.mxu0 0.0
    %3359 = vmatprep.subr.mxu0 0.0
    %3360 = vmatpush1.msra.mxu0 0.0
    %3361 = vmatprep.subr.mxu0 0.0
    %3362 = vmatpush1.msra.mxu0 0.0
    %3363 = vmatprep.subr.mxu0 0.0
    %3364 = vmatpush1.msra.mxu0 0.0
    %3365 = vmatprep.subr.mxu0 0.0
    %3366 = vmatpush1.msra.mxu0 0.0
    %3367 = vmatprep.subr.mxu0 0.0
    %3368 = vmatpush1.msra.mxu0 %v3340
    %3369 = vmatprep.subr.mxu0 0.0
    %3370 = vmatpush1.msra.mxu0 %v3339
    %3371 = vmatprep.subr.mxu0 0.0
    %3372 = vmatpush1.msra.mxu0 %v3338
    %3373 = vmatprep.subr.mxu0 0.0
    %3374 = vmatpush1.msra.mxu0 %v3337
    %3375 = vmatprep.subr.mxu0 0.0
    %3376 = vmatpush1.msra.mxu0 %v3336
    %3377 = vmatprep.subr.mxu0 0.0
    %3378 = vmatpush1.msra.mxu0 %v3335
    %3379 = vmatprep.subr.mxu0 0.0
    %3380 = vmatpush1.msra.mxu0 %v3334
    %3381 = vmatprep.subr.mxu0 0.0
    %3382 = vmatpush1.msra.mxu0 %v3333
    %3383 = vmatprep.subr.mxu0 0.0
    %3384 = vmatpush2.msra.mxu0 0.0
    %3385 = vmatprep.subr.mxu0 0.0
    %3386 = vmatpush2.msra.mxu0 0.0
    %3387 = vmatprep.subr.mxu0 0.0
    %3388 = vmatpush2.msra.mxu0 0.0
    %3389 = vmatprep.subr.mxu0 0.0
    %3390 = vmatpush2.msra.mxu0 0.0
    %3391 = vmatprep.subr.mxu0 0.0
    %3392 = vmatpush2.msra.mxu0 0.0
    %3393 = vmatprep.subr.mxu0 0.0
    %3394 = vmatpush2.msra.mxu0 0.0
    %3395 = vmatprep.subr.mxu0 0.0
    %3396 = vmatpush2.msra.mxu0 0.0
    %3397 = vmatprep.subr.mxu0 0.0
    %3398 = vmatpush2.msra.mxu0 0.0
    %3399 = vmatprep.subr.mxu0 0.0
    %3400 = vmatpush2.msra.mxu0 0.0
    %3401 = vmatprep.subr.mxu0 0.0
    %3402 = vmatpush2.msra.mxu0 0.0
    %3403 = vmatprep.subr.mxu0 0.0
    %3404 = vmatpush2.msra.mxu0 0.0
    %3405 = vmatprep.subr.mxu0 0.0
    %3406 = vmatpush2.msra.mxu0 0.0
    %3407 = vmatprep.subr.mxu0 0.0
    %3408 = vmatpush2.msra.mxu0 0.0
    %3409 = vmatprep.subr.mxu0 0.0
    %3410 = vmatpush2.msra.mxu0 0.0
    %3411 = vmatprep.subr.mxu0 0.0
    %3412 = vmatpush2.msra.mxu0 0.0
    %3413 = vmatprep.subr.mxu0 0.0
    %3414 = vmatpush2.msra.mxu0 0.0
    %3415 = vmatprep.mubr.f32.mxu0 0.0
    %3416 = vmatmul.mubr.f32.gmra.mxu0 %v3349
    %v3417 = vpop.f32.mrf.mxu0
    %v3418 = vadd.f32 %v3346, %v3417
    %v3419 = vpop.f32.mrf.mxu0
    %3420 = vdwg.mxu0
    %s3421 = scalar_lea.vmem %s9, 14
    %3422 = vst [vmem:[%s3421] sm:$0x3] %v3418
    // Predicated region
    $region38: #{decoder_forward.1} parent=1 // pred_check
      _
    $region39: #{decoder_forward.1} parent=1 // pred_check_branch
      %3424 = sbr.rel (0) target = $region41
    $region40: #{decoder_forward.1} parent=1 // pred_region
      _
    $region41: #{decoder_forward.1} parent=1 // pred_fallthru
      _
    // Predicated region
    $region42: #{decoder_forward.1} parent=1 // pred_check
      _
    $region43: #{decoder_forward.1} parent=1 // pred_check_branch
      %3426 = sbr.rel (0) target = $region45
    $region44: #{decoder_forward.1} parent=1 // pred_region
      %s3428 = ssub.s32 128, 128
      %3429 = vsyncadd [#allocation8], %s3428
      %s3430 = sshll.u32 [#allocation7], 4
      %s3431 = int_to_ptr.vmem [resolvable:$true] %s3430
      %3436 = dma.vmem_to_hbm [thread:$0]  %s3431, 128, %s10, [#allocation8], 32, 32, 2
    $region45: #{decoder_forward.1} parent=1 // pred_fallthru
      _
    // Predicated region
    $region46: #{decoder_forward.1} parent=1 // pred_check
      _
    $region47: #{decoder_forward.1} parent=1 // pred_check_branch
      %3438 = sbr.rel (0) target = $region49
    $region48: #{decoder_forward.1} parent=1 // pred_region
      %s3440 = ssub.s32 128, 128
      %3441 = vsyncadd [#allocation10], %s3440
      %s3442 = sshll.u32 [#allocation9], 4
      %s3443 = int_to_ptr.vmem [resolvable:$true] %s3442
      %3448 = dma.vmem_to_hbm [thread:$0]  %s3443, 128, %s11, [#allocation10], 32, 32, 2
    $region49: #{decoder_forward.1} parent=1 // pred_fallthru
      _
    // Predicated region
    $region50: #{decoder_forward.1} parent=1 // pred_check
      _
    $region51: #{decoder_forward.1} parent=1 // pred_check_branch
      %3450 = sbr.rel (0) target = $region53
    $region52: #{decoder_forward.1} parent=1 // pred_region
      _
    $region53: #{decoder_forward.1} parent=1 // pred_fallthru
      _
    // Predicated region
    $region54: #{decoder_forward.1} parent=1 // pred_check
      _
    $region55: #{decoder_forward.1} parent=1 // pred_check_branch
      %3452 = sbr.rel (0) target = $region57
    $region56: #{decoder_forward.1} parent=1 // pred_region
      %3453 = dma.done [#allocation8], 128
    $region57: #{decoder_forward.1} parent=1 // pred_fallthru
      _
    // Predicated region
    $region58: #{decoder_forward.1} parent=1 // pred_check
      _
    $region59: #{decoder_forward.1} parent=1 // pred_check_branch
      %3455 = sbr.rel (0) target = $region61
    $region60: #{decoder_forward.1} parent=1 // pred_region
      %3456 = dma.done [#allocation10], 128
    $region61: #{decoder_forward.1} parent=1 // pred_fallthru
      _
    %3457 = vsyncpa [#allocation8], 1
    %3458 = vsyncpa [#allocation10], 1

</llo_original>
